<compile_context>
chip_gen: v7x
topology: tpu7x:2x2x1
jax: 0.10.0
libtpu: 0.0.40
codegen_flags: <defaults>
</compile_context>

<pallas_src>
import functools
import math

import jax
import jax.numpy as jnp
from jax import lax
from jax.experimental import pallas as pl
from jax.experimental.pallas import tpu as pltpu


def _layer_norm(x, g, b, eps=1e-5):
    m = jnp.mean(x, axis=-1, keepdims=True)
    v = jnp.mean((x - m) ** 2, axis=-1, keepdims=True)
    return (x - m) * lax.rsqrt(v + eps) * g + b


def _attention_stream_kernel(
    scal_ref,          # SMEM (2,): [mu, decay_bias]
    x_ref,             # (Bt,S,E)
    xprev_ref,         # (Bt,S,E)
    dw_ref,            # (1,E)   decay_net weight
    g1_ref, b1_ref,    # (1,E)   layernorm (sequence merging)
    wrv_t_ref,         # (E,2E)  fused [Wr^T | Wv^T], bf16
    brv_ref,           # (1,2E)  fused [br | bv], f32
    g2_ref, b2_ref,    # (1,E)   layernorm (state coupling)
    out_ref,           # (Bt,S,E)
    *, t_chunk,
):
    Bt, S, E = x_ref.shape
    mu = scal_ref[0]
    decay_b = scal_ref[1]

    # grid-invariant params: load once, reuse across all chunks
    dw = dw_ref[...]
    g1 = g1_ref[...]; b1 = b1_ref[...]
    g2 = g2_ref[...]; b2 = b2_ref[...]
    wrv_t = wrv_t_ref[...]
    brv = brv_ref[...]

    # recurrence carry across time chunks (lives in vregs)
    a = jnp.zeros((Bt, 1), jnp.float32)
    b = jnp.zeros((Bt, E), jnp.float32)

    # TODO(synk): for very long S*E, add a second ("arbitrary") grid axis over time
    # chunks carrying (a,b) in scratch so the (Bt,S,E) block need not fit VMEM.
    for lo in range(0, S, t_chunk):
        hi = min(lo + t_chunk, S)
        T = hi - lo

        # ---- Shift: mu*x + (1-mu)*x_prev (chunk-local) ----------------------
        x_c = x_ref[:, lo:hi, :]
        xp_c = xprev_ref[:, lo:hi, :]
        shifted = mu * x_c + (1.0 - mu) * xp_c                      # (Bt,T,E)

        # ---- decay in log space (stable log-sigmoid, clamped) ---------------
        z = jnp.sum(shifted * dw, axis=-1) + decay_b                # (Bt,T)
        logd = jnp.minimum(z, 0.0) - jnp.log(1.0 + jnp.exp(-jnp.abs(z)))
        logd = jnp.maximum(logd, -60.0)

        # TODO(synk): exp() is unstabilized (matches the PyTorch reference).
        ec = jnp.exp(shifted)                                       # (Bt,T,E)
        sa = jnp.sum(ec, axis=-1)                                   # (Bt,T)
        ecv = ec * shifted                                          # (Bt,T,E)

        # ---- chunked linear recurrence as a matmul ---------------------------
        #   A_t = P_t*a_in + sum_{k<=t} D[t,k]*sa_k
        #   B_t = P_t*b_in + sum_{k<=t} D[t,k]*ecv_k
        # P_t = prod_{j<=t} d_j, D[t,k] = prod_{k<j<=t} d_j (via cumulative logs);
        # the (T,T)x(T,E) contraction runs on the MXU, removing the serial scan.
        row = lax.broadcasted_iota(jnp.int32, (T, T), 0)
        col = lax.broadcasted_iota(jnp.int32, (T, T), 1)
        triu = (row <= col).astype(jnp.float32)                     # cumsum operator
        cum = jnp.dot(logd, triu, preferred_element_type=jnp.float32)   # (Bt,T)
        p_full = jnp.exp(cum)                                       # (Bt,T)

        diff = cum[:, :, None] - cum[:, None, :]                    # (Bt,T,T)
        dmat = jnp.exp(jnp.where((row >= col)[None, :, :], diff, -1e30))

        a_all = p_full * a + jnp.sum(dmat * sa[:, None, :], axis=-1)          # (Bt,T)
        b_all = (p_full[:, :, None] * b[:, None, :]
                 + jnp.einsum('btk,bke->bte', dmat, ecv,
                              preferred_element_type=jnp.float32))            # (Bt,T,E)
        a = a_all[:, -1:]
        b = b_all[:, -1, :]

        # deferred, vectorized divide: Bt*T reciprocals on the EUP
        inv = pl.reciprocal(a_all + 1e-8, approx=True)              # (Bt,T)
        merged = _layer_norm(b_all * inv[:, :, None], g1, b1)       # (Bt,T,E)

        # ---- fused StateCoupling: one (E,2E) bf16 MXU matmul, f32 accum ------
        m2 = merged.reshape(Bt * T, E).astype(jnp.bfloat16)
        rv = jnp.dot(m2, wrv_t, preferred_element_type=jnp.float32) + brv
        gate = jax.nn.sigmoid(rv[:, :E])
        value = rv[:, E:]
        coupled = _layer_norm(gate * value, g2, b2).reshape(Bt, T, E)

        # single lane-dense store per chunk (no per-step output writes)
        out_ref[:, lo:hi, :] = shifted + coupled


def _vmem_capacity_bytes():
    try:
        info = pltpu.get_tpu_info()
        cap = getattr(info, "vmem_capacity_bytes", None)
        if cap:
            return int(cap)
    except Exception:
        pass
    return 64 * 1024 * 1024            # conservative (v7x-sized) fallback


def _pick_batch_tile(B, S, E, t_chunk, vmem_limit):
    """Largest batch tile whose per-grid-step working set fits the budget."""
    budget = int(vmem_limit * 0.6)      # headroom for compiler temporaries
    lanes_e = 128 * pl.cdiv(E, 128)
    lanes_2e = 128 * pl.cdiv(2 * E, 128)
    lanes_t = 128 * pl.cdiv(t_chunk, 128)
    sub_s = 8 * pl.cdiv(S, 8)
    sub_t = 8 * pl.cdiv(t_chunk, 8)

    # single-buffered grid-invariant params (bf16 fused weight dominates)
    param_bytes = E * lanes_2e * 2 + 8 * lanes_2e * 4 + 6 * 8 * lanes_e * 4
    # per batch row: 3 double-buffered (S,E) I/O blocks + chunk intermediates
    # (shifted/ec/ecv/b_all/merged/coupled f32, D matrix, rv slab)
    io = 3 * 2 * sub_s * lanes_e * 4
    interm = sub_t * (8 * lanes_e + lanes_t + 2 * lanes_2e) * 4
    per_row = io + interm

    bt = max(1, (budget - param_bytes) // max(per_row, 1))
    bt = min(bt, B, 256)
    bt = min(bt, max(8, B // 4))        # keep >= ~4 grid steps (megacore/pipelining)
    if bt >= 8:
        bt = (bt // 8) * 8              # sublane-dense (Bt,E) tiles
    return int(max(bt, 1))


def attention_stream_block(x, x_prev, params, *, block_b=None, t_chunk=None):
    """x, x_prev: (B, S, E) float32.  If x_prev is None, shift is identity."""
    B0, S, E = x.shape
    if x_prev is None:
        x_prev = x                      # mu*x + (1-mu)*x == x
    x = x.astype(jnp.float32)
    x_prev = x_prev.astype(jnp.float32)

    # pad tiny batches to 8 rows so every recurrence tile is sublane-dense
    B = max(8, B0)
    if B != B0:
        pad = ((0, B - B0), (0, 0), (0, 0))
        x = jnp.pad(x, pad)
        x_prev = jnp.pad(x_prev, pad)

    if t_chunk is None:
        t_chunk = min(S, 128)
    t_chunk = int(max(1, min(t_chunk, S)))

    vmem_cap = _vmem_capacity_bytes()
    vmem_limit = int(min(vmem_cap * 3 // 4, 112 * 1024 * 1024))
    if block_b is None:
        block_b = _pick_batch_tile(B, S, E, t_chunk, vmem_limit)
    block_b = int(min(block_b, B))

    scal = jnp.stack([params["mu"], params["decay_b"]]).astype(jnp.float32)
    wrv_t = jnp.concatenate([params["wr_t"], params["wv_t"]], axis=1)
    wrv_t = wrv_t.astype(jnp.bfloat16)           # bf16 MXU inputs, f32 accum
    brv = jnp.concatenate([params["br"], params["bv"]], axis=1).astype(jnp.float32)

    data_spec = pl.BlockSpec((block_b, S, E), lambda i: (i, 0, 0))
    grid = (pl.cdiv(B, block_b),)

    def _build_specs(single_buffer_params):
        def rep(shape):
            nd = len(shape)
            if single_buffer_params:
                return pl.BlockSpec(shape, lambda i: (0,) * nd,
                                    pipeline_mode=pl.Buffered(1))
            return pl.BlockSpec(shape, lambda i: (0,) * nd)
        return [
            pl.BlockSpec(memory_space=pltpu.MemorySpace.SMEM),   # [mu, decay_b]
            data_spec, data_spec,                                # x, x_prev
            rep((1, E)),                                         # decay weight
            rep((1, E)), rep((1, E)),                            # ln1 gamma/beta
            rep((E, 2 * E)),                                     # fused Wr|Wv ^T
            rep((1, 2 * E)),                                     # fused bias
            rep((1, E)), rep((1, E)),                            # ln2 gamma/beta
        ]

    def _run(single_buffer_params):
        return pl.pallas_call(
            functools.partial(_attention_stream_kernel, t_chunk=t_chunk),
            grid=grid,
            out_shape=jax.ShapeDtypeStruct((B, S, E), jnp.float32),
            in_specs=_build_specs(single_buffer_params),
            out_specs=data_spec,
            compiler_params=pltpu.CompilerParams(
                dimension_semantics=("parallel",),               # megacore on v7x
                vmem_limit_bytes=vmem_limit,
            ),
        )(scal, x, x_prev,
          params["decay_w"], params["ln1_g"], params["ln1_b"],
          wrv_t, brv, params["ln2_g"], params["ln2_b"])

    try:
        out = _run(True)
    except Exception:
        # pl.Buffered(1) not supported on this jax build -> plain (double-buffered)
        # parameter specs; everything else identical.
        out = _run(False)
    return out[:B0]


def init_params(E, key):
    """Deterministic init mirroring the PyTorch module's parameter shapes."""
    ks = jax.random.split(key, 6)
    bound = 1.0 / math.sqrt(E)
    u = lambda k, shape: jax.random.uniform(k, shape, jnp.float32, -bound, bound)
    return dict(
        mu=jnp.float32(0.5),                       # Shift.mu
        decay_w=u(ks[0], (1, E)),                  # decay_net.weight (1,E)
        decay_b=u(ks[1], ()),                      # decay_net.bias   ()
        ln1_g=jnp.ones((1, E), jnp.float32),       # SequenceMerging layer_norm
        ln1_b=jnp.zeros((1, E), jnp.float32),
        wr_t=u(ks[2], (E, E)).T,                   # Wr.weight^T  (stored (in,out))
        br=u(ks[3], (1, E)),                       # Wr.bias
        wv_t=u(ks[4], (E, E)).T,                   # Wv.weight^T
        bv=u(ks[5], (1, E)),                       # Wv.bias
        ln2_g=jnp.ones((1, E), jnp.float32),       # StateCoupling layer_norm
        ln2_b=jnp.zeros((1, E), jnp.float32),
    )


def reference(x, x_prev, p):
    """Pure-JAX f32 reference of the PyTorch forward (for verification)."""
    mu = p["mu"]
    shifted = mu * x + (1.0 - mu) * x_prev
    B, S, E = x.shape

    def step(carry, ct):
        a, b = carry
        decay = jax.nn.sigmoid(ct @ p["decay_w"].T + p["decay_b"])  # (B,1)
        ec = jnp.exp(ct)
        a = decay * a + ec.sum(axis=1, keepdims=True)
        b = decay * b + ec * ct
        return (a, b), b / (a + 1e-8)

    (_, _), outs = lax.scan(
        step,
        (jnp.zeros((B, 1), jnp.float32), jnp.zeros((B, E), jnp.float32)),
        jnp.transpose(shifted, (1, 0, 2)),
    )
    merged = _layer_norm(jnp.transpose(outs, (1, 0, 2)), p["ln1_g"], p["ln1_b"])
    gate = jax.nn.sigmoid(merged @ p["wr_t"] + p["br"])
    value = merged @ p["wv_t"] + p["bv"]
    coupled = _layer_norm(gate * value, p["ln2_g"], p["ln2_b"])
    return shifted + coupled


if __name__ == "__main__":
    key = jax.random.PRNGKey(0)

    def run_case(B, S, E, kcase, **kw):
        kx, kp, kparams = jax.random.split(kcase, 3)
        x = jax.random.normal(kx, (B, S, E), jnp.float32)
        x_prev = jax.random.normal(kp, (B, S, E), jnp.float32)
        params = init_params(E, kparams)
        out = jax.block_until_ready(attention_stream_block(x, x_prev, params, **kw))
        ref = jax.block_until_ready(reference(x, x_prev, params))
        # Tolerance accounts for the bf16 MXU inputs in the fused StateCoupling
        # matmul and the log-space decay / approx-reciprocal reformulation.
        if not bool(jnp.allclose(out, ref, atol=5e-2, rtol=5e-2)):
            raise AssertionError(
                f"mismatch (B={B},S={S},E={E}): "
                f"max abs err = {float(jnp.max(jnp.abs(out - ref)))}"
            )

    k1, k2 = jax.random.split(key)
    run_case(2, 8, 32, k1)                                  # small spec-sized case
    run_case(12, 80, 64, k2, t_chunk=32, block_b=8)         # multi-chunk, grid>1, ragged tail
    print("KERNEL_OK")
</pallas_src>

<mosaic_0001>
module attributes {stable_mosaic.version = 11 : i64} {
  func.func @_attention_stream_kernel(%arg0: i32, %arg1: memref<2xf32, #tpu.memory_space<smem>>, %arg2: memref<8x8x32xf32, #tpu.memory_space<vmem>>, %arg3: memref<8x8x32xf32, #tpu.memory_space<vmem>>, %arg4: memref<1x32xf32, #tpu.memory_space<vmem>>, %arg5: memref<1x32xf32, #tpu.memory_space<vmem>>, %arg6: memref<1x32xf32, #tpu.memory_space<vmem>>, %arg7: memref<32x64xbf16, #tpu.memory_space<vmem>>, %arg8: memref<1x64xf32, #tpu.memory_space<vmem>>, %arg9: memref<1x32xf32, #tpu.memory_space<vmem>>, %arg10: memref<1x32xf32, #tpu.memory_space<vmem>>, %arg11: memref<8x8x32xf32, #tpu.memory_space<vmem>>) attributes {dimension_semantics = [#tpu.dimension_semantics<parallel>], iteration_bounds = array<i64: 1>, scalar_prefetch = 0 : i64, scratch_operands = 0 : i64, tpu.core_type = #tpu.core_type<tc>, window_params = [{transform_indices = @transform_0, window_bounds = array<i64: 2>}, {transform_indices = @transform_1, window_bounds = array<i64: 8, 8, 32>}, {transform_indices = @transform_2, window_bounds = array<i64: 8, 8, 32>}, {pipeline_mode = #tpu.pipeline_mode<synchronous>, transform_indices = @transform_3, window_bounds = array<i64: 1, 32>}, {pipeline_mode = #tpu.pipeline_mode<synchronous>, transform_indices = @transform_4, window_bounds = array<i64: 1, 32>}, {pipeline_mode = #tpu.pipeline_mode<synchronous>, transform_indices = @transform_5, window_bounds = array<i64: 1, 32>}, {pipeline_mode = #tpu.pipeline_mode<synchronous>, transform_indices = @transform_6, window_bounds = array<i64: 32, 64>}, {pipeline_mode = #tpu.pipeline_mode<synchronous>, transform_indices = @transform_7, window_bounds = array<i64: 1, 64>}, {pipeline_mode = #tpu.pipeline_mode<synchronous>, transform_indices = @transform_8, window_bounds = array<i64: 1, 32>}, {pipeline_mode = #tpu.pipeline_mode<synchronous>, transform_indices = @transform_9, window_bounds = array<i64: 1, 32>}, {transform_indices = @transform_10, window_bounds = array<i64: 8, 8, 32>}]} {
    %c0 = arith.constant 0 : index
    %0 = memref.load %arg1[%c0] : memref<2xf32, #tpu.memory_space<smem>>
    %c1 = arith.constant 1 : index
    %1 = memref.load %arg1[%c1] : memref<2xf32, #tpu.memory_space<smem>>
    %c0_0 = arith.constant 0 : index
    %c0_1 = arith.constant 0 : index
    %2 = vector.load %arg4[%c0_0, %c0_1] : memref<1x32xf32, #tpu.memory_space<vmem>>, vector<1x32xf32>
    %c0_2 = arith.constant 0 : index
    %c0_3 = arith.constant 0 : index
    %3 = vector.load %arg5[%c0_2, %c0_3] : memref<1x32xf32, #tpu.memory_space<vmem>>, vector<1x32xf32>
    %c0_4 = arith.constant 0 : index
    %c0_5 = arith.constant 0 : index
    %4 = vector.load %arg6[%c0_4, %c0_5] : memref<1x32xf32, #tpu.memory_space<vmem>>, vector<1x32xf32>
    %c0_6 = arith.constant 0 : index
    %c0_7 = arith.constant 0 : index
    %5 = vector.load %arg9[%c0_6, %c0_7] : memref<1x32xf32, #tpu.memory_space<vmem>>, vector<1x32xf32>
    %c0_8 = arith.constant 0 : index
    %c0_9 = arith.constant 0 : index
    %6 = vector.load %arg10[%c0_8, %c0_9] : memref<1x32xf32, #tpu.memory_space<vmem>>, vector<1x32xf32>
    %c0_10 = arith.constant 0 : index
    %c0_11 = arith.constant 0 : index
    %7 = vector.load %arg7[%c0_10, %c0_11] : memref<32x64xbf16, #tpu.memory_space<vmem>>, vector<32x64xbf16>
    %c0_12 = arith.constant 0 : index
    %c0_13 = arith.constant 0 : index
    %8 = vector.load %arg8[%c0_12, %c0_13] : memref<1x64xf32, #tpu.memory_space<vmem>>, vector<1x64xf32>
    %cst = arith.constant 0.000000e+00 : f32
    %9 = vector.broadcast %cst : f32 to vector<8x1xf32>
    %cst_14 = arith.constant 0.000000e+00 : f32
    %10 = vector.broadcast %cst_14 : f32 to vector<8x32xf32>
    %c0_15 = arith.constant 0 : index
    %c0_16 = arith.constant 0 : index
    %c0_17 = arith.constant 0 : index
    %11 = vector.load %arg2[%c0_15, %c0_16, %c0_17] : memref<8x8x32xf32, #tpu.memory_space<vmem>>, vector<8x8x32xf32>
    %c0_18 = arith.constant 0 : index
    %c0_19 = arith.constant 0 : index
    %c0_20 = arith.constant 0 : index
    %12 = vector.load %arg3[%c0_18, %c0_19, %c0_20] : memref<8x8x32xf32, #tpu.memory_space<vmem>>, vector<8x8x32xf32>
    %13 = vector.broadcast %0 : f32 to vector<8x8x32xf32>
    %14 = arith.mulf %13, %11 : vector<8x8x32xf32>
    %cst_21 = arith.constant 1.000000e+00 : f32
    %15 = arith.subf %cst_21, %0 : f32
    %16 = vector.broadcast %15 : f32 to vector<8x8x32xf32>
    %17 = arith.mulf %16, %12 : vector<8x8x32xf32>
    %18 = arith.addf %14, %17 : vector<8x8x32xf32>
    %19 = vector.shape_cast %2 : vector<1x32xf32> to vector<1x1x32xf32>
    %20 = vector.broadcast %19 : vector<1x1x32xf32> to vector<8x8x32xf32>
    %21 = arith.mulf %18, %20 : vector<8x8x32xf32>
    %cst_22 = arith.constant dense<0.000000e+00> : vector<8x8xf32>
    %22 = vector.multi_reduction <add>, %21, %cst_22 [2] : vector<8x8x32xf32> to vector<8x8xf32>
    %23 = vector.broadcast %1 : f32 to vector<8x8xf32>
    %24 = arith.addf %22, %23 : vector<8x8xf32>
    %cst_23 = arith.constant 0.000000e+00 : f32
    %25 = vector.broadcast %cst_23 : f32 to vector<8x8xf32>
    %26 = arith.minimumf %24, %25 : vector<8x8xf32>
    %27 = math.absf %24 : vector<8x8xf32>
    %cst_24 = arith.constant 0.000000e+00 : f32
    %28 = vector.broadcast %cst_24 : f32 to vector<8x8xf32>
    %29 = arith.subf %28, %27 : vector<8x8xf32>
    %30 = math.exp %29 : vector<8x8xf32>
    %cst_25 = arith.constant 1.000000e+00 : f32
    %31 = vector.broadcast %cst_25 : f32 to vector<8x8xf32>
    %32 = arith.addf %31, %30 : vector<8x8xf32>
    %33 = math.log %32 : vector<8x8xf32>
    %34 = arith.subf %26, %33 : vector<8x8xf32>
    %cst_26 = arith.constant -6.000000e+01 : f32
    %35 = vector.broadcast %cst_26 : f32 to vector<8x8xf32>
    %36 = arith.maximumf %34, %35 : vector<8x8xf32>
    %37 = math.exp %18 : vector<8x8x32xf32>
    %cst_27 = arith.constant dense<0.000000e+00> : vector<8x8xf32>
    %38 = vector.multi_reduction <add>, %37, %cst_27 [2] : vector<8x8x32xf32> to vector<8x8xf32>
    %39 = arith.mulf %37, %18 : vector<8x8x32xf32>
    %40 = tpu.iota {dimensions = array<i32: 0>} : vector<8x8xi32>
    %41 = tpu.iota {dimensions = array<i32: 1>} : vector<8x8xi32>
    %42 = arith.cmpi sle, %40, %41 : vector<8x8xi32>
    %43 = arith.extui %42 : vector<8x8xi1> to vector<8x8xi32>
    %44 = arith.sitofp %43 : vector<8x8xi32> to vector<8x8xf32>
    %cst_28 = arith.constant dense<0.000000e+00> : vector<8x8xf32>
    %45 = tpu.matmul %36, %44, %cst_28 {dimension_numbers = #tpu.dot_dimension_numbers<[1], [0], [0], [1], [0, 0, 1, 1], [], []>} : vector<8x8xf32>, vector<8x8xf32>, vector<8x8xf32> -> vector<8x8xf32>
    %46 = math.exp %45 : vector<8x8xf32>
    %47 = vector.shape_cast %45 : vector<8x8xf32> to vector<8x8x1xf32>
    %48 = vector.shape_cast %45 : vector<8x8xf32> to vector<8x1x8xf32>
    %49 = vector.broadcast %47 : vector<8x8x1xf32> to vector<8x8x8xf32>
    %50 = vector.broadcast %48 : vector<8x1x8xf32> to vector<8x8x8xf32>
    %51 = arith.subf %49, %50 : vector<8x8x8xf32>
    %52 = arith.cmpi sge, %40, %41 : vector<8x8xi32>
    %53 = vector.shape_cast %52 : vector<8x8xi1> to vector<1x8x8xi1>
    %cst_29 = arith.constant -1.000000e+30 : f32
    %54 = vector.shape_cast %53 : vector<1x8x8xi1> to vector<1x8x8xi1>
    %55 = vector.broadcast %54 : vector<1x8x8xi1> to vector<8x8x8xi1>
    %56 = vector.broadcast %cst_29 : f32 to vector<8x8x8xf32>
    %57 = arith.select %55, %51, %56 : vector<8x8x8xi1>, vector<8x8x8xf32>
    %58 = math.exp %57 : vector<8x8x8xf32>
    %59 = vector.broadcast %9 : vector<8x1xf32> to vector<8x8xf32>
    %60 = arith.mulf %46, %59 : vector<8x8xf32>
    %61 = vector.shape_cast %38 : vector<8x8xf32> to vector<8x1x8xf32>
    %62 = vector.broadcast %61 : vector<8x1x8xf32> to vector<8x8x8xf32>
    %63 = arith.mulf %58, %62 : vector<8x8x8xf32>
    %cst_30 = arith.constant dense<0.000000e+00> : vector<8x8xf32>
    %64 = vector.multi_reduction <add>, %63, %cst_30 [2] : vector<8x8x8xf32> to vector<8x8xf32>
    %65 = arith.addf %60, %64 : vector<8x8xf32>
    %66 = vector.shape_cast %46 : vector<8x8xf32> to vector<8x8x1xf32>
    %67 = vector.shape_cast %10 : vector<8x32xf32> to vector<8x1x32xf32>
    %68 = vector.broadcast %66 : vector<8x8x1xf32> to vector<8x8x32xf32>
    %69 = vector.broadcast %67 : vector<8x1x32xf32> to vector<8x8x32xf32>
    %70 = arith.mulf %68, %69 : vector<8x8x32xf32>
    "tpu.trace_start"() <{level = 10 : i32, message = "btk,bke->bte"}> : () -> ()
    %cst_31 = arith.constant dense<0.000000e+00> : vector<8x8x32xf32>
    %71 = tpu.matmul %58, %39, %cst_31 {dimension_numbers = #tpu.dot_dimension_numbers<[2], [1], [1], [2], [0, 0, 0, 1, 1, 2], [0], [0]>} : vector<8x8x8xf32>, vector<8x8x32xf32>, vector<8x8x32xf32> -> vector<8x8x32xf32>
    "tpu.trace_stop"() : () -> ()
    %72 = arith.addf %70, %71 : vector<8x8x32xf32>
    %cst_32 = arith.constant 9.99999993E-9 : f32
    %73 = vector.broadcast %cst_32 : f32 to vector<8x8xf32>
    %74 = arith.addf %65, %73 : vector<8x8xf32>
    %75 = tpu.reciprocal %74 {approx = true} : vector<8x8xf32> -> vector<8x8xf32>
    %76 = vector.shape_cast %75 : vector<8x8xf32> to vector<8x8x1xf32>
    %77 = vector.broadcast %76 : vector<8x8x1xf32> to vector<8x8x32xf32>
    %78 = arith.mulf %72, %77 : vector<8x8x32xf32>
    %cst_33 = arith.constant dense<0.000000e+00> : vector<8x8xf32>
    %79 = vector.multi_reduction <add>, %78, %cst_33 [2] : vector<8x8x32xf32> to vector<8x8xf32>
    %80 = vector.shape_cast %79 : vector<8x8xf32> to vector<8x8x1xf32>
    %cst_34 = arith.constant 3.200000e+01 : f32
    %81 = vector.broadcast %cst_34 : f32 to vector<8x8x1xf32>
    %82 = arith.divf %80, %81 : vector<8x8x1xf32>
    %83 = vector.broadcast %82 : vector<8x8x1xf32> to vector<8x8x32xf32>
    %84 = arith.subf %78, %83 : vector<8x8x32xf32>
    %85 = arith.mulf %84, %84 : vector<8x8x32xf32>
    %cst_35 = arith.constant dense<0.000000e+00> : vector<8x8xf32>
    %86 = vector.multi_reduction <add>, %85, %cst_35 [2] : vector<8x8x32xf32> to vector<8x8xf32>
    %87 = vector.shape_cast %86 : vector<8x8xf32> to vector<8x8x1xf32>
    %cst_36 = arith.constant 3.200000e+01 : f32
    %88 = vector.broadcast %cst_36 : f32 to vector<8x8x1xf32>
    %89 = arith.divf %87, %88 : vector<8x8x1xf32>
    %90 = vector.broadcast %82 : vector<8x8x1xf32> to vector<8x8x32xf32>
    %91 = arith.subf %78, %90 : vector<8x8x32xf32>
    %cst_37 = arith.constant 9.99999974E-6 : f32
    %92 = vector.broadcast %cst_37 : f32 to vector<8x8x1xf32>
    %93 = arith.addf %89, %92 : vector<8x8x1xf32>
    %94 = math.rsqrt %93 : vector<8x8x1xf32>
    %95 = vector.broadcast %94 : vector<8x8x1xf32> to vector<8x8x32xf32>
    %96 = arith.mulf %91, %95 : vector<8x8x32xf32>
    %97 = vector.shape_cast %3 : vector<1x32xf32> to vector<1x1x32xf32>
    %98 = vector.broadcast %97 : vector<1x1x32xf32> to vector<8x8x32xf32>
    %99 = arith.mulf %96, %98 : vector<8x8x32xf32>
    %100 = vector.shape_cast %4 : vector<1x32xf32> to vector<1x1x32xf32>
    %101 = vector.broadcast %100 : vector<1x1x32xf32> to vector<8x8x32xf32>
    %102 = arith.addf %99, %101 : vector<8x8x32xf32>
    %103 = vector.shape_cast %102 : vector<8x8x32xf32> to vector<64x32xf32>
    %104 = arith.truncf %103 : vector<64x32xf32> to vector<64x32xbf16>
    %cst_38 = arith.constant dense<0.000000e+00> : vector<64x64xf32>
    %105 = tpu.matmul %104, %7, %cst_38 {dimension_numbers = #tpu.dot_dimension_numbers<[1], [0], [0], [1], [0, 0, 1, 1], [], []>} : vector<64x32xbf16>, vector<32x64xbf16>, vector<64x64xf32> -> vector<64x64xf32>
    %106 = vector.broadcast %8 : vector<1x64xf32> to vector<64x64xf32>
    %107 = arith.addf %105, %106 : vector<64x64xf32>
    %108 = vector.extract_strided_slice %107 {offsets = [0, 0], sizes = [64, 32], strides = [1, 1]} : vector<64x64xf32> to vector<64x32xf32>
    %109 = arith.negf %108 : vector<64x32xf32>
    %110 = math.exp %109 : vector<64x32xf32>
    %cst_39 = arith.constant 1.000000e+00 : f32
    %111 = vector.broadcast %cst_39 : f32 to vector<64x32xf32>
    %112 = arith.addf %111, %110 : vector<64x32xf32>
    %113 = arith.divf %111, %112 : vector<64x32xf32>
    %114 = vector.extract_strided_slice %107 {offsets = [0, 32], sizes = [64, 32], strides = [1, 1]} : vector<64x64xf32> to vector<64x32xf32>
    %115 = arith.mulf %113, %114 : vector<64x32xf32>
    %cst_40 = arith.constant dense<0.000000e+00> : vector<64xf32>
    %116 = vector.multi_reduction <add>, %115, %cst_40 [1] : vector<64x32xf32> to vector<64xf32>
    %117 = vector.shape_cast %116 : vector<64xf32> to vector<64x1xf32>
    %cst_41 = arith.constant 3.200000e+01 : f32
    %118 = vector.broadcast %cst_41 : f32 to vector<64x1xf32>
    %119 = arith.divf %117, %118 : vector<64x1xf32>
    %120 = vector.broadcast %119 : vector<64x1xf32> to vector<64x32xf32>
    %121 = arith.subf %115, %120 : vector<64x32xf32>
    %122 = arith.mulf %121, %121 : vector<64x32xf32>
    %cst_42 = arith.constant dense<0.000000e+00> : vector<64xf32>
    %123 = vector.multi_reduction <add>, %122, %cst_42 [1] : vector<64x32xf32> to vector<64xf32>
    %124 = vector.shape_cast %123 : vector<64xf32> to vector<64x1xf32>
    %cst_43 = arith.constant 3.200000e+01 : f32
    %125 = vector.broadcast %cst_43 : f32 to vector<64x1xf32>
    %126 = arith.divf %124, %125 : vector<64x1xf32>
    %127 = vector.broadcast %119 : vector<64x1xf32> to vector<64x32xf32>
    %128 = arith.subf %115, %127 : vector<64x32xf32>
    %cst_44 = arith.constant 9.99999974E-6 : f32
    %129 = vector.broadcast %cst_44 : f32 to vector<64x1xf32>
    %130 = arith.addf %126, %129 : vector<64x1xf32>
    %131 = math.rsqrt %130 : vector<64x1xf32>
    %132 = vector.broadcast %131 : vector<64x1xf32> to vector<64x32xf32>
    %133 = arith.mulf %128, %132 : vector<64x32xf32>
    %134 = vector.broadcast %5 : vector<1x32xf32> to vector<64x32xf32>
    %135 = arith.mulf %133, %134 : vector<64x32xf32>
    %136 = vector.broadcast %6 : vector<1x32xf32> to vector<64x32xf32>
    %137 = arith.addf %135, %136 : vector<64x32xf32>
    %138 = vector.shape_cast %137 : vector<64x32xf32> to vector<8x8x32xf32>
    %139 = arith.addf %18, %138 : vector<8x8x32xf32>
    %c0_45 = arith.constant 0 : index
    %c0_46 = arith.constant 0 : index
    %c0_47 = arith.constant 0 : index
    %140 = vector.load %arg11[%c0_45, %c0_46, %c0_47] : memref<8x8x32xf32, #tpu.memory_space<vmem>>, vector<8x8x32xf32>
    tpu.vector_store %arg11[%c0_45, %c0_46, %c0_47], %139 {strides = array<i32>} : memref<8x8x32xf32, #tpu.memory_space<vmem>>, vector<8x8x32xf32>,
    return
  }
  func.func @transform_0(%arg0: i32) -> i32 {
    %c0_i32 = arith.constant 0 : i32
    %c0_i32_0 = arith.constant 0 : i32
    return %c0_i32 : i32
  }
  func.func @transform_1(%arg0: i32) -> (i32, i32, i32) {
    %c0_i32 = arith.constant 0 : i32
    %c0_i32_0 = arith.constant 0 : i32
    %c0_i32_1 = arith.constant 0 : i32
    return %arg0, %c0_i32, %c0_i32_0 : i32, i32, i32
  }
  func.func @transform_2(%arg0: i32) -> (i32, i32, i32) {
    %c0_i32 = arith.constant 0 : i32
    %c0_i32_0 = arith.constant 0 : i32
    %c0_i32_1 = arith.constant 0 : i32
    return %arg0, %c0_i32, %c0_i32_0 : i32, i32, i32
  }
  func.func @transform_3(%arg0: i32) -> (i32, i32) {
    %c0_i32 = arith.constant 0 : i32
    %c0_i32_0 = arith.constant 0 : i32
    %c0_i32_1 = arith.constant 0 : i32
    return %c0_i32, %c0_i32_0 : i32, i32
  }
  func.func @transform_4(%arg0: i32) -> (i32, i32) {
    %c0_i32 = arith.constant 0 : i32
    %c0_i32_0 = arith.constant 0 : i32
    %c0_i32_1 = arith.constant 0 : i32
    return %c0_i32, %c0_i32_0 : i32, i32
  }
  func.func @transform_5(%arg0: i32) -> (i32, i32) {
    %c0_i32 = arith.constant 0 : i32
    %c0_i32_0 = arith.constant 0 : i32
    %c0_i32_1 = arith.constant 0 : i32
    return %c0_i32, %c0_i32_0 : i32, i32
  }
  func.func @transform_6(%arg0: i32) -> (i32, i32) {
    %c0_i32 = arith.constant 0 : i32
    %c0_i32_0 = arith.constant 0 : i32
    %c0_i32_1 = arith.constant 0 : i32
    return %c0_i32, %c0_i32_0 : i32, i32
  }
  func.func @transform_7(%arg0: i32) -> (i32, i32) {
    %c0_i32 = arith.constant 0 : i32
    %c0_i32_0 = arith.constant 0 : i32
    %c0_i32_1 = arith.constant 0 : i32
    return %c0_i32, %c0_i32_0 : i32, i32
  }
  func.func @transform_8(%arg0: i32) -> (i32, i32) {
    %c0_i32 = arith.constant 0 : i32
    %c0_i32_0 = arith.constant 0 : i32
    %c0_i32_1 = arith.constant 0 : i32
    return %c0_i32, %c0_i32_0 : i32, i32
  }
  func.func @transform_9(%arg0: i32) -> (i32, i32) {
    %c0_i32 = arith.constant 0 : i32
    %c0_i32_0 = arith.constant 0 : i32
    %c0_i32_1 = arith.constant 0 : i32
    return %c0_i32, %c0_i32_0 : i32, i32
  }
  func.func @transform_10(%arg0: i32) -> (i32, i32, i32) {
    %c0_i32 = arith.constant 0 : i32
    %c0_i32_0 = arith.constant 0 : i32
    %c0_i32_1 = arith.constant 0 : i32
    return %arg0, %c0_i32, %c0_i32_0 : i32, i32, i32
  }
}

module attributes {stable_mosaic.version = 11 : i64} {
  func.func @_attention_stream_kernel(%arg0: i32, %arg1: memref<2xf32, #tpu.memory_space<smem>>, %arg2: memref<8x8x32xf32, #tpu.memory_space<vmem>>, %arg3: memref<8x8x32xf32, #tpu.memory_space<vmem>>, %arg4: memref<1x32xf32, #tpu.memory_space<vmem>>, %arg5: memref<1x32xf32, #tpu.memory_space<vmem>>, %arg6: memref<1x32xf32, #tpu.memory_space<vmem>>, %arg7: memref<32x64xbf16, #tpu.memory_space<vmem>>, %arg8: memref<1x64xf32, #tpu.memory_space<vmem>>, %arg9: memref<1x32xf32, #tpu.memory_space<vmem>>, %arg10: memref<1x32xf32, #tpu.memory_space<vmem>>, %arg11: memref<8x8x32xf32, #tpu.memory_space<vmem>>) attributes {dimension_semantics = [#tpu.dimension_semantics<parallel>], iteration_bounds = array<i64: 1>, scalar_prefetch = 0 : i64, scratch_operands = 0 : i64, tpu.core_type = #tpu.core_type<tc>, window_params = [{transform_indices = @transform_0, window_bounds = array<i64: 2>}, {transform_indices = @transform_1, window_bounds = array<i64: 8, 8, 32>}, {transform_indices = @transform_2, window_bounds = array<i64: 8, 8, 32>}, {pipeline_mode = #tpu.pipeline_mode<synchronous>, transform_indices = @transform_3, window_bounds = array<i64: 1, 32>}, {pipeline_mode = #tpu.pipeline_mode<synchronous>, transform_indices = @transform_4, window_bounds = array<i64: 1, 32>}, {pipeline_mode = #tpu.pipeline_mode<synchronous>, transform_indices = @transform_5, window_bounds = array<i64: 1, 32>}, {pipeline_mode = #tpu.pipeline_mode<synchronous>, transform_indices = @transform_6, window_bounds = array<i64: 32, 64>}, {pipeline_mode = #tpu.pipeline_mode<synchronous>, transform_indices = @transform_7, window_bounds = array<i64: 1, 64>}, {pipeline_mode = #tpu.pipeline_mode<synchronous>, transform_indices = @transform_8, window_bounds = array<i64: 1, 32>}, {pipeline_mode = #tpu.pipeline_mode<synchronous>, transform_indices = @transform_9, window_bounds = array<i64: 1, 32>}, {transform_indices = @transform_10, window_bounds = array<i64: 8, 8, 32>}]} {
    %c0 = arith.constant 0 : index
    %0 = memref.load %arg1[%c0] : memref<2xf32, #tpu.memory_space<smem>>
    %c1 = arith.constant 1 : index
    %1 = memref.load %arg1[%c1] : memref<2xf32, #tpu.memory_space<smem>>
    %c0_0 = arith.constant 0 : index
    %c0_1 = arith.constant 0 : index
    %2 = vector.load %arg4[%c0_0, %c0_1] : memref<1x32xf32, #tpu.memory_space<vmem>>, vector<1x32xf32>
    %c0_2 = arith.constant 0 : index
    %c0_3 = arith.constant 0 : index
    %3 = vector.load %arg5[%c0_2, %c0_3] : memref<1x32xf32, #tpu.memory_space<vmem>>, vector<1x32xf32>
    %c0_4 = arith.constant 0 : index
    %c0_5 = arith.constant 0 : index
    %4 = vector.load %arg6[%c0_4, %c0_5] : memref<1x32xf32, #tpu.memory_space<vmem>>, vector<1x32xf32>
    %c0_6 = arith.constant 0 : index
    %c0_7 = arith.constant 0 : index
    %5 = vector.load %arg9[%c0_6, %c0_7] : memref<1x32xf32, #tpu.memory_space<vmem>>, vector<1x32xf32>
    %c0_8 = arith.constant 0 : index
    %c0_9 = arith.constant 0 : index
    %6 = vector.load %arg10[%c0_8, %c0_9] : memref<1x32xf32, #tpu.memory_space<vmem>>, vector<1x32xf32>
    %c0_10 = arith.constant 0 : index
    %c0_11 = arith.constant 0 : index
    %7 = vector.load %arg7[%c0_10, %c0_11] : memref<32x64xbf16, #tpu.memory_space<vmem>>, vector<32x64xbf16>
    %c0_12 = arith.constant 0 : index
    %c0_13 = arith.constant 0 : index
    %8 = vector.load %arg8[%c0_12, %c0_13] : memref<1x64xf32, #tpu.memory_space<vmem>>, vector<1x64xf32>
    %cst = arith.constant 0.000000e+00 : f32
    %9 = vector.broadcast %cst : f32 to vector<8x1xf32>
    %cst_14 = arith.constant 0.000000e+00 : f32
    %10 = vector.broadcast %cst_14 : f32 to vector<8x32xf32>
    %c0_15 = arith.constant 0 : index
    %c0_16 = arith.constant 0 : index
    %c0_17 = arith.constant 0 : index
    %11 = vector.load %arg2[%c0_15, %c0_16, %c0_17] : memref<8x8x32xf32, #tpu.memory_space<vmem>>, vector<8x8x32xf32>
    %c0_18 = arith.constant 0 : index
    %c0_19 = arith.constant 0 : index
    %c0_20 = arith.constant 0 : index
    %12 = vector.load %arg3[%c0_18, %c0_19, %c0_20] : memref<8x8x32xf32, #tpu.memory_space<vmem>>, vector<8x8x32xf32>
    %13 = vector.broadcast %0 : f32 to vector<8x8x32xf32>
    %14 = arith.mulf %13, %11 : vector<8x8x32xf32>
    %cst_21 = arith.constant 1.000000e+00 : f32
    %15 = arith.subf %cst_21, %0 : f32
    %16 = vector.broadcast %15 : f32 to vector<8x8x32xf32>
    %17 = arith.mulf %16, %12 : vector<8x8x32xf32>
    %18 = arith.addf %14, %17 : vector<8x8x32xf32>
    %19 = vector.shape_cast %2 : vector<1x32xf32> to vector<1x1x32xf32>
    %20 = vector.broadcast %19 : vector<1x1x32xf32> to vector<8x8x32xf32>
    %21 = arith.mulf %18, %20 : vector<8x8x32xf32>
    %cst_22 = arith.constant dense<0.000000e+00> : vector<8x8xf32>
    %22 = vector.multi_reduction <add>, %21, %cst_22 [2] : vector<8x8x32xf32> to vector<8x8xf32>
    %23 = vector.broadcast %1 : f32 to vector<8x8xf32>
    %24 = arith.addf %22, %23 : vector<8x8xf32>
    %cst_23 = arith.constant 0.000000e+00 : f32
    %25 = vector.broadcast %cst_23 : f32 to vector<8x8xf32>
    %26 = arith.minimumf %24, %25 : vector<8x8xf32>
    %27 = math.absf %24 : vector<8x8xf32>
    %cst_24 = arith.constant 0.000000e+00 : f32
    %28 = vector.broadcast %cst_24 : f32 to vector<8x8xf32>
    %29 = arith.subf %28, %27 : vector<8x8xf32>
    %30 = math.exp %29 : vector<8x8xf32>
    %cst_25 = arith.constant 1.000000e+00 : f32
    %31 = vector.broadcast %cst_25 : f32 to vector<8x8xf32>
    %32 = arith.addf %31, %30 : vector<8x8xf32>
    %33 = math.log %32 : vector<8x8xf32>
    %34 = arith.subf %26, %33 : vector<8x8xf32>
    %cst_26 = arith.constant -6.000000e+01 : f32
    %35 = vector.broadcast %cst_26 : f32 to vector<8x8xf32>
    %36 = arith.maximumf %34, %35 : vector<8x8xf32>
    %37 = math.exp %18 : vector<8x8x32xf32>
    %cst_27 = arith.constant dense<0.000000e+00> : vector<8x8xf32>
    %38 = vector.multi_reduction <add>, %37, %cst_27 [2] : vector<8x8x32xf32> to vector<8x8xf32>
    %39 = arith.mulf %37, %18 : vector<8x8x32xf32>
    %40 = tpu.iota {dimensions = array<i32: 0>} : vector<8x8xi32>
    %41 = tpu.iota {dimensions = array<i32: 1>} : vector<8x8xi32>
    %42 = arith.cmpi sle, %40, %41 : vector<8x8xi32>
    %43 = arith.extui %42 : vector<8x8xi1> to vector<8x8xi32>
    %44 = arith.sitofp %43 : vector<8x8xi32> to vector<8x8xf32>
    %cst_28 = arith.constant dense<0.000000e+00> : vector<8x8xf32>
    %45 = tpu.matmul %36, %44, %cst_28 {dimension_numbers = #tpu.dot_dimension_numbers<[1], [0], [0], [1], [0, 0, 1, 1], [], []>} : vector<8x8xf32>, vector<8x8xf32>, vector<8x8xf32> -> vector<8x8xf32>
    %46 = math.exp %45 : vector<8x8xf32>
    %47 = vector.shape_cast %45 : vector<8x8xf32> to vector<8x8x1xf32>
    %48 = vector.shape_cast %45 : vector<8x8xf32> to vector<8x1x8xf32>
    %49 = vector.broadcast %47 : vector<8x8x1xf32> to vector<8x8x8xf32>
    %50 = vector.broadcast %48 : vector<8x1x8xf32> to vector<8x8x8xf32>
    %51 = arith.subf %49, %50 : vector<8x8x8xf32>
    %52 = arith.cmpi sge, %40, %41 : vector<8x8xi32>
    %53 = vector.shape_cast %52 : vector<8x8xi1> to vector<1x8x8xi1>
    %cst_29 = arith.constant -1.000000e+30 : f32
    %54 = vector.shape_cast %53 : vector<1x8x8xi1> to vector<1x8x8xi1>
    %55 = vector.broadcast %54 : vector<1x8x8xi1> to vector<8x8x8xi1>
    %56 = vector.broadcast %cst_29 : f32 to vector<8x8x8xf32>
    %57 = arith.select %55, %51, %56 : vector<8x8x8xi1>, vector<8x8x8xf32>
    %58 = math.exp %57 : vector<8x8x8xf32>
    %59 = vector.broadcast %9 : vector<8x1xf32> to vector<8x8xf32>
    %60 = arith.mulf %46, %59 : vector<8x8xf32>
    %61 = vector.shape_cast %38 : vector<8x8xf32> to vector<8x1x8xf32>
    %62 = vector.broadcast %61 : vector<8x1x8xf32> to vector<8x8x8xf32>
    %63 = arith.mulf %58, %62 : vector<8x8x8xf32>
    %cst_30 = arith.constant dense<0.000000e+00> : vector<8x8xf32>
    %64 = vector.multi_reduction <add>, %63, %cst_30 [2] : vector<8x8x8xf32> to vector<8x8xf32>
    %65 = arith.addf %60, %64 : vector<8x8xf32>
    %66 = vector.shape_cast %46 : vector<8x8xf32> to vector<8x8x1xf32>
    %67 = vector.shape_cast %10 : vector<8x32xf32> to vector<8x1x32xf32>
    %68 = vector.broadcast %66 : vector<8x8x1xf32> to vector<8x8x32xf32>
    %69 = vector.broadcast %67 : vector<8x1x32xf32> to vector<8x8x32xf32>
    %70 = arith.mulf %68, %69 : vector<8x8x32xf32>
    "tpu.trace_start"() <{level = 10 : i32, message = "btk,bke->bte"}> : () -> ()
    %cst_31 = arith.constant dense<0.000000e+00> : vector<8x8x32xf32>
    %71 = tpu.matmul %58, %39, %cst_31 {dimension_numbers = #tpu.dot_dimension_numbers<[2], [1], [1], [2], [0, 0, 0, 1, 1, 2], [0], [0]>} : vector<8x8x8xf32>, vector<8x8x32xf32>, vector<8x8x32xf32> -> vector<8x8x32xf32>
    "tpu.trace_stop"() : () -> ()
    %72 = arith.addf %70, %71 : vector<8x8x32xf32>
    %cst_32 = arith.constant 9.99999993E-9 : f32
    %73 = vector.broadcast %cst_32 : f32 to vector<8x8xf32>
    %74 = arith.addf %65, %73 : vector<8x8xf32>
    %75 = tpu.reciprocal %74 {approx = true} : vector<8x8xf32> -> vector<8x8xf32>
    %76 = vector.shape_cast %75 : vector<8x8xf32> to vector<8x8x1xf32>
    %77 = vector.broadcast %76 : vector<8x8x1xf32> to vector<8x8x32xf32>
    %78 = arith.mulf %72, %77 : vector<8x8x32xf32>
    %cst_33 = arith.constant dense<0.000000e+00> : vector<8x8xf32>
    %79 = vector.multi_reduction <add>, %78, %cst_33 [2] : vector<8x8x32xf32> to vector<8x8xf32>
    %80 = vector.shape_cast %79 : vector<8x8xf32> to vector<8x8x1xf32>
    %cst_34 = arith.constant 3.200000e+01 : f32
    %81 = vector.broadcast %cst_34 : f32 to vector<8x8x1xf32>
    %82 = arith.divf %80, %81 : vector<8x8x1xf32>
    %83 = vector.broadcast %82 : vector<8x8x1xf32> to vector<8x8x32xf32>
    %84 = arith.subf %78, %83 : vector<8x8x32xf32>
    %85 = arith.mulf %84, %84 : vector<8x8x32xf32>
    %cst_35 = arith.constant dense<0.000000e+00> : vector<8x8xf32>
    %86 = vector.multi_reduction <add>, %85, %cst_35 [2] : vector<8x8x32xf32> to vector<8x8xf32>
    %87 = vector.shape_cast %86 : vector<8x8xf32> to vector<8x8x1xf32>
    %cst_36 = arith.constant 3.200000e+01 : f32
    %88 = vector.broadcast %cst_36 : f32 to vector<8x8x1xf32>
    %89 = arith.divf %87, %88 : vector<8x8x1xf32>
    %90 = vector.broadcast %82 : vector<8x8x1xf32> to vector<8x8x32xf32>
    %91 = arith.subf %78, %90 : vector<8x8x32xf32>
    %cst_37 = arith.constant 9.99999974E-6 : f32
    %92 = vector.broadcast %cst_37 : f32 to vector<8x8x1xf32>
    %93 = arith.addf %89, %92 : vector<8x8x1xf32>
    %94 = math.rsqrt %93 : vector<8x8x1xf32>
    %95 = vector.broadcast %94 : vector<8x8x1xf32> to vector<8x8x32xf32>
    %96 = arith.mulf %91, %95 : vector<8x8x32xf32>
    %97 = vector.shape_cast %3 : vector<1x32xf32> to vector<1x1x32xf32>
    %98 = vector.broadcast %97 : vector<1x1x32xf32> to vector<8x8x32xf32>
    %99 = arith.mulf %96, %98 : vector<8x8x32xf32>
    %100 = vector.shape_cast %4 : vector<1x32xf32> to vector<1x1x32xf32>
    %101 = vector.broadcast %100 : vector<1x1x32xf32> to vector<8x8x32xf32>
    %102 = arith.addf %99, %101 : vector<8x8x32xf32>
    %103 = vector.shape_cast %102 : vector<8x8x32xf32> to vector<64x32xf32>
    %104 = arith.truncf %103 : vector<64x32xf32> to vector<64x32xbf16>
    %cst_38 = arith.constant dense<0.000000e+00> : vector<64x64xf32>
    %105 = tpu.matmul %104, %7, %cst_38 {dimension_numbers = #tpu.dot_dimension_numbers<[1], [0], [0], [1], [0, 0, 1, 1], [], []>} : vector<64x32xbf16>, vector<32x64xbf16>, vector<64x64xf32> -> vector<64x64xf32>
    %106 = vector.broadcast %8 : vector<1x64xf32> to vector<64x64xf32>
    %107 = arith.addf %105, %106 : vector<64x64xf32>
    %108 = vector.extract_strided_slice %107 {offsets = [0, 0], sizes = [64, 32], strides = [1, 1]} : vector<64x64xf32> to vector<64x32xf32>
    %109 = arith.negf %108 : vector<64x32xf32>
    %110 = math.exp %109 : vector<64x32xf32>
    %cst_39 = arith.constant 1.000000e+00 : f32
    %111 = vector.broadcast %cst_39 : f32 to vector<64x32xf32>
    %112 = arith.addf %111, %110 : vector<64x32xf32>
    %113 = arith.divf %111, %112 : vector<64x32xf32>
    %114 = vector.extract_strided_slice %107 {offsets = [0, 32], sizes = [64, 32], strides = [1, 1]} : vector<64x64xf32> to vector<64x32xf32>
    %115 = arith.mulf %113, %114 : vector<64x32xf32>
    %cst_40 = arith.constant dense<0.000000e+00> : vector<64xf32>
    %116 = vector.multi_reduction <add>, %115, %cst_40 [1] : vector<64x32xf32> to vector<64xf32>
    %117 = vector.shape_cast %116 : vector<64xf32> to vector<64x1xf32>
    %cst_41 = arith.constant 3.200000e+01 : f32
    %118 = vector.broadcast %cst_41 : f32 to vector<64x1xf32>
    %119 = arith.divf %117, %118 : vector<64x1xf32>
    %120 = vector.broadcast %119 : vector<64x1xf32> to vector<64x32xf32>
    %121 = arith.subf %115, %120 : vector<64x32xf32>
    %122 = arith.mulf %121, %121 : vector<64x32xf32>
    %cst_42 = arith.constant dense<0.000000e+00> : vector<64xf32>
    %123 = vector.multi_reduction <add>, %122, %cst_42 [1] : vector<64x32xf32> to vector<64xf32>
    %124 = vector.shape_cast %123 : vector<64xf32> to vector<64x1xf32>
    %cst_43 = arith.constant 3.200000e+01 : f32
    %125 = vector.broadcast %cst_43 : f32 to vector<64x1xf32>
    %126 = arith.divf %124, %125 : vector<64x1xf32>
    %127 = vector.broadcast %119 : vector<64x1xf32> to vector<64x32xf32>
    %128 = arith.subf %115, %127 : vector<64x32xf32>
    %cst_44 = arith.constant 9.99999974E-6 : f32
    %129 = vector.broadcast %cst_44 : f32 to vector<64x1xf32>
    %130 = arith.addf %126, %129 : vector<64x1xf32>
    %131 = math.rsqrt %130 : vector<64x1xf32>
    %132 = vector.broadcast %131 : vector<64x1xf32> to vector<64x32xf32>
    %133 = arith.mulf %128, %132 : vector<64x32xf32>
    %134 = vector.broadcast %5 : vector<1x32xf32> to vector<64x32xf32>
    %135 = arith.mulf %133, %134 : vector<64x32xf32>
    %136 = vector.broadcast %6 : vector<1x32xf32> to vector<64x32xf32>
    %137 = arith.addf %135, %136 : vector<64x32xf32>
    %138 = vector.shape_cast %137 : vector<64x32xf32> to vector<8x8x32xf32>
    %139 = arith.addf %18, %138 : vector<8x8x32xf32>
    %c0_45 = arith.constant 0 : index
    %c0_46 = arith.constant 0 : index
    %c0_47 = arith.constant 0 : index
    %140 = vector.load %arg11[%c0_45, %c0_46, %c0_47] : memref<8x8x32xf32, #tpu.memory_space<vmem>>, vector<8x8x32xf32>
    tpu.vector_store %arg11[%c0_45, %c0_46, %c0_47], %139 {strides = array<i32>} : memref<8x8x32xf32, #tpu.memory_space<vmem>>, vector<8x8x32xf32>,
    return
  }
  func.func @transform_0(%arg0: i32) -> i32 {
    %c0_i32 = arith.constant 0 : i32
    %c0_i32_0 = arith.constant 0 : i32
    return %c0_i32 : i32
  }
  func.func @transform_1(%arg0: i32) -> (i32, i32, i32) {
    %c0_i32 = arith.constant 0 : i32
    %c0_i32_0 = arith.constant 0 : i32
    %c0_i32_1 = arith.constant 0 : i32
    return %arg0, %c0_i32, %c0_i32_0 : i32, i32, i32
  }
  func.func @transform_2(%arg0: i32) -> (i32, i32, i32) {
    %c0_i32 = arith.constant 0 : i32
    %c0_i32_0 = arith.constant 0 : i32
    %c0_i32_1 = arith.constant 0 : i32
    return %arg0, %c0_i32, %c0_i32_0 : i32, i32, i32
  }
  func.func @transform_3(%arg0: i32) -> (i32, i32) {
    %c0_i32 = arith.constant 0 : i32
    %c0_i32_0 = arith.constant 0 : i32
    %c0_i32_1 = arith.constant 0 : i32
    return %c0_i32, %c0_i32_0 : i32, i32
  }
  func.func @transform_4(%arg0: i32) -> (i32, i32) {
    %c0_i32 = arith.constant 0 : i32
    %c0_i32_0 = arith.constant 0 : i32
    %c0_i32_1 = arith.constant 0 : i32
    return %c0_i32, %c0_i32_0 : i32, i32
  }
  func.func @transform_5(%arg0: i32) -> (i32, i32) {
    %c0_i32 = arith.constant 0 : i32
    %c0_i32_0 = arith.constant 0 : i32
    %c0_i32_1 = arith.constant 0 : i32
    return %c0_i32, %c0_i32_0 : i32, i32
  }
  func.func @transform_6(%arg0: i32) -> (i32, i32) {
    %c0_i32 = arith.constant 0 : i32
    %c0_i32_0 = arith.constant 0 : i32
    %c0_i32_1 = arith.constant 0 : i32
    return %c0_i32, %c0_i32_0 : i32, i32
  }
  func.func @transform_7(%arg0: i32) -> (i32, i32) {
    %c0_i32 = arith.constant 0 : i32
    %c0_i32_0 = arith.constant 0 : i32
    %c0_i32_1 = arith.constant 0 : i32
    return %c0_i32, %c0_i32_0 : i32, i32
  }
  func.func @transform_8(%arg0: i32) -> (i32, i32) {
    %c0_i32 = arith.constant 0 : i32
    %c0_i32_0 = arith.constant 0 : i32
    %c0_i32_1 = arith.constant 0 : i32
    return %c0_i32, %c0_i32_0 : i32, i32
  }
  func.func @transform_9(%arg0: i32) -> (i32, i32) {
    %c0_i32 = arith.constant 0 : i32
    %c0_i32_0 = arith.constant 0 : i32
    %c0_i32_1 = arith.constant 0 : i32
    return %c0_i32, %c0_i32_0 : i32, i32
  }
  func.func @transform_10(%arg0: i32) -> (i32, i32, i32) {
    %c0_i32 = arith.constant 0 : i32
    %c0_i32_0 = arith.constant 0 : i32
    %c0_i32_1 = arith.constant 0 : i32
    return %arg0, %c0_i32, %c0_i32_0 : i32, i32, i32
  }
}

</mosaic_0001>

<llo_original>
// kernel: tpu_custom_call.1
$region0: #{tpu_custom_call.1}
  #allocation0 [shape = 'u32[]', space=smem, size = 0x4, offset = 0x4, fixed_abs, tag = 'smem constant byte address 0x4 - core index']
  #allocation1 [shape = 'u32[144,128]{1,0:T(1,128)}', space=vmem, size = 0x12000, scoped, tag = 'internal scratch']
  %s0 = inlined_call_operand.hbm [shape: f32[2], index: 0, kind: input, shape index: {}]
  %s1 = inlined_call_operand.hbm [shape: f32[8,8,32], index: 1, kind: input, shape index: {}]
  %s2 = inlined_call_operand.hbm [shape: f32[8,8,32], index: 2, kind: input, shape index: {}]
  %s3 = inlined_call_operand.vmem [shape: f32[1,32], index: 3, kind: input, shape index: {}]
  %s4 = inlined_call_operand.vmem [shape: f32[1,32], index: 4, kind: input, shape index: {}]
  %s5 = inlined_call_operand.vmem [shape: f32[1,32], index: 5, kind: input, shape index: {}]
  %s6 = inlined_call_operand.vmem [shape: bf16[32,64], index: 6, kind: input, shape index: {}]
  %s7 = inlined_call_operand.vmem [shape: f32[1,64], index: 7, kind: input, shape index: {}]
  %s8 = inlined_call_operand.vmem [shape: f32[1,32], index: 8, kind: input, shape index: {}]
  %s9 = inlined_call_operand.vmem [shape: f32[1,32], index: 9, kind: input, shape index: {}]
  %s10 = inlined_call_operand.hbm [shape: f32[8,8,32], index: 10, kind: output, shape index: {}]
  %s11 = sld [smem:[#allocation0]]
  $region62: #{tpu_custom_call.1} parent=0
    _
  %s13 = ssub.s32 1, %s11
  %s14 = scalar_select 0, %s13, %s11
  $region1: #{tpu_custom_call.1} parent=0
    #allocation2 [shape = 'u8[512]{0}', space=smem, size = 0x200, scoped, tag = 'input window, operand 0, single buffered']
    #allocation3 [shape = 's32[1]{0}', space=sflag, size = 0x4, scoped, tag = 'scoped memory for tpu_custom_call.1']
    #allocation4 [shape = 's32[1]{0}', space=sflag, size = 0x4, scoped, tag = 'scoped memory for tpu_custom_call.1']
    #allocation5 [shape = 's32[1]{0}', space=sflag, size = 0x4, scoped, tag = 'scoped memory for tpu_custom_call.1']
    #allocation6 [shape = 'u8[32768]{0}', space=vmem, size = 0x8000, scoped, tag = 'input window, operand 1, single buffered']
    #allocation7 [shape = 'u8[32768]{0}', space=vmem, size = 0x8000, scoped, tag = 'input window, operand 2, single buffered']
    #allocation8 [shape = 's32[1]{0}', space=sflag, size = 0x4, scoped, tag = 'scoped memory for tpu_custom_call.1']
    #allocation9 [shape = 'u8[32768]{0}', space=vmem, size = 0x8000, scoped, tag = 'output window, operand 0, single buffered']
    %15 = vsyncpa [#allocation5], 0
    %16 = vsyncpa [#allocation3], 0
    %17 = vsyncpa [#allocation8], 0
    %18 = vsyncpa [#allocation4], 0
    // Predicated region
    $region2: #{tpu_custom_call.1} parent=1 // pred_check
      _
    $region3: #{tpu_custom_call.1} parent=1 // pred_check_branch
      %20 = sbr.rel (0) target = $region5
    $region4: #{tpu_custom_call.1} parent=1 // pred_region
      %s22 = ssub.s32 16, 16
      %23 = vsyncadd [#allocation5], %s22
      %26 = dma.hbm_to_smem %s0, 16, [#allocation2], [#allocation5]
    $region5: #{tpu_custom_call.1} parent=1 // pred_fallthru
      _
    // Predicated region
    $region6: #{tpu_custom_call.1} parent=1 // pred_check
      _
    $region7: #{tpu_custom_call.1} parent=1 // pred_check_branch
      %28 = sbr.rel (0) target = $region9
    $region8: #{tpu_custom_call.1} parent=1 // pred_region
      %s30 = ssub.s32 1024, 1024
      %31 = vsyncadd [#allocation3], %s30
      %s32 = sshll.u32 [#allocation6], 4
      %s33 = int_to_ptr.vmem [resolvable:$true] %s32
      %38 = dma.hbm_to_vmem [thread:$0]  %s1, 1024, %s33, [#allocation3], 128, 128, 8
    $region9: #{tpu_custom_call.1} parent=1 // pred_fallthru
      _
    // Predicated region
    $region10: #{tpu_custom_call.1} parent=1 // pred_check
      _
    $region11: #{tpu_custom_call.1} parent=1 // pred_check_branch
      %40 = sbr.rel (0) target = $region13
    $region12: #{tpu_custom_call.1} parent=1 // pred_region
      %s42 = ssub.s32 1024, 1024
      %43 = vsyncadd [#allocation8], %s42
      %s44 = sshll.u32 [#allocation7], 4
      %s45 = int_to_ptr.vmem [resolvable:$true] %s44
      %50 = dma.hbm_to_vmem [thread:$0]  %s2, 1024, %s45, [#allocation8], 128, 128, 8
    $region13: #{tpu_custom_call.1} parent=1 // pred_fallthru
      _
    // Predicated region
    $region14: #{tpu_custom_call.1} parent=1 // pred_check
      _
    $region15: #{tpu_custom_call.1} parent=1 // pred_check_branch
      %52 = sbr.rel (0) target = $region17
    $region16: #{tpu_custom_call.1} parent=1 // pred_region
      _
    $region17: #{tpu_custom_call.1} parent=1 // pred_fallthru
      _
    // Predicated region
    $region18: #{tpu_custom_call.1} parent=1 // pred_check
      _
    $region19: #{tpu_custom_call.1} parent=1 // pred_check_branch
      %54 = sbr.rel (0) target = $region21
    $region20: #{tpu_custom_call.1} parent=1 // pred_region
      _
    $region21: #{tpu_custom_call.1} parent=1 // pred_fallthru
      _
    // Predicated region
    $region22: #{tpu_custom_call.1} parent=1 // pred_check
      _
    $region23: #{tpu_custom_call.1} parent=1 // pred_check_branch
      %56 = sbr.rel (0) target = $region25
    $region24: #{tpu_custom_call.1} parent=1 // pred_region
      _
    $region25: #{tpu_custom_call.1} parent=1 // pred_fallthru
      _
    // Predicated region
    $region26: #{tpu_custom_call.1} parent=1 // pred_check
      _
    $region27: #{tpu_custom_call.1} parent=1 // pred_check_branch
      %58 = sbr.rel (0) target = $region29
    $region28: #{tpu_custom_call.1} parent=1 // pred_region
      _
    $region29: #{tpu_custom_call.1} parent=1 // pred_fallthru
      _
    // Predicated region
    $region30: #{tpu_custom_call.1} parent=1 // pred_check
      _
    $region31: #{tpu_custom_call.1} parent=1 // pred_check_branch
      %60 = sbr.rel (0) target = $region33
    $region32: #{tpu_custom_call.1} parent=1 // pred_region
      _
    $region33: #{tpu_custom_call.1} parent=1 // pred_fallthru
      _
    // Predicated region
    $region34: #{tpu_custom_call.1} parent=1 // pred_check
      _
    $region35: #{tpu_custom_call.1} parent=1 // pred_check_branch
      %62 = sbr.rel (0) target = $region37
    $region36: #{tpu_custom_call.1} parent=1 // pred_region
      _
    $region37: #{tpu_custom_call.1} parent=1 // pred_fallthru
      _
    // Predicated region
    $region38: #{tpu_custom_call.1} parent=1 // pred_check
      _
    $region39: #{tpu_custom_call.1} parent=1 // pred_check_branch
      %64 = sbr.rel (0) target = $region41
    $region40: #{tpu_custom_call.1} parent=1 // pred_region
      _
    $region41: #{tpu_custom_call.1} parent=1 // pred_fallthru
      _
    // Predicated region
    $region42: #{tpu_custom_call.1} parent=1 // pred_check
      _
    $region43: #{tpu_custom_call.1} parent=1 // pred_check_branch
      %66 = sbr.rel (0) target = $region45
    $region44: #{tpu_custom_call.1} parent=1 // pred_region
      %67 = dma.done [#allocation5], 16
    $region45: #{tpu_custom_call.1} parent=1 // pred_fallthru
      _
    // Predicated region
    $region46: #{tpu_custom_call.1} parent=1 // pred_check
      _
    $region47: #{tpu_custom_call.1} parent=1 // pred_check_branch
      %69 = sbr.rel (0) target = $region49
    $region48: #{tpu_custom_call.1} parent=1 // pred_region
      %70 = dma.done [#allocation3], 1024
    $region49: #{tpu_custom_call.1} parent=1 // pred_fallthru
      _
    // Predicated region
    $region50: #{tpu_custom_call.1} parent=1 // pred_check
      _
    $region51: #{tpu_custom_call.1} parent=1 // pred_check_branch
      %72 = sbr.rel (0) target = $region53
    $region52: #{tpu_custom_call.1} parent=1 // pred_region
      %73 = dma.done [#allocation8], 1024
    $region53: #{tpu_custom_call.1} parent=1 // pred_fallthru
      _
    %74 = sfence
    %s76 = sld [smem:[#allocation2]]
    %s77 = sld [smem:[#allocation2 + $0x1]]
    %v78 = vld [vmem:[%s3] sm:$0x1]
    %v79 = vld [vmem:[%s4] sm:$0x1]
    %v80 = vld [vmem:[%s5] sm:$0x1]
    %v81 = vld [vmem:[%s8] sm:$0x1]
    %v82 = vld [vmem:[%s9] sm:$0x1]
    %v83 = vld [vmem:[%s6] sm:$0xf]
    %v84 = vld [vmem:[%s6 + $0x4] sm:$0xf]
    %v85 = vld [vmem:[%s6 + $0x8] sm:$0xf]
    %v86 = vld [vmem:[%s6 + $0xc] sm:$0xf]
    %v87 = vld [vmem:[%s7] sm:$0x1]
    %v88 = vld [vmem:[#allocation6] sm:$0xff]
    %v89 = vld [vmem:[#allocation6 + $0x8] sm:$0xff]
    %v90 = vld [vmem:[#allocation6 + $0x10] sm:$0xff]
    %v91 = vld [vmem:[#allocation6 + $0x18] sm:$0xff]
    %v92 = vld [vmem:[#allocation6 + $0x20] sm:$0xff]
    %v93 = vld [vmem:[#allocation6 + $0x28] sm:$0xff]
    %v94 = vld [vmem:[#allocation6 + $0x30] sm:$0xff]
    %v95 = vld [vmem:[#allocation6 + $0x38] sm:$0xff]
    %v96 = vld [vmem:[#allocation7] sm:$0xff]
    %v97 = vld [vmem:[#allocation7 + $0x8] sm:$0xff]
    %v98 = vld [vmem:[#allocation7 + $0x10] sm:$0xff]
    %v99 = vld [vmem:[#allocation7 + $0x18] sm:$0xff]
    %v100 = vld [vmem:[#allocation7 + $0x20] sm:$0xff]
    %v101 = vld [vmem:[#allocation7 + $0x28] sm:$0xff]
    %v102 = vld [vmem:[#allocation7 + $0x30] sm:$0xff]
    %v103 = vld [vmem:[#allocation7 + $0x38] sm:$0xff]
    %v104 = vstv %s76
    %v105 = vmul.f32 %v104, %v88
    %v106 = vmul.f32 %v104, %v89
    %v107 = vmul.f32 %v104, %v90
    %v108 = vmul.f32 %v104, %v91
    %v109 = vmul.f32 %v104, %v92
    %v110 = vmul.f32 %v104, %v93
    %v111 = vmul.f32 %v104, %v94
    %v112 = vmul.f32 %v104, %v95
    %s113 = ssub.f32 1.0, %s76
    %v114 = vstv %s113
    %v115 = vmul.f32 %v114, %v96
    %v116 = vmul.f32 %v114, %v97
    %v117 = vmul.f32 %v114, %v98
    %v118 = vmul.f32 %v114, %v99
    %v119 = vmul.f32 %v114, %v100
    %v120 = vmul.f32 %v114, %v101
    %v121 = vmul.f32 %v114, %v102
    %v122 = vmul.f32 %v114, %v103
    %v123 = vadd.f32 %v105, %v115
    %v124 = vadd.f32 %v106, %v116
    %v125 = vadd.f32 %v107, %v117
    %v126 = vadd.f32 %v108, %v118
    %v127 = vadd.f32 %v109, %v119
    %v128 = vadd.f32 %v110, %v120
    %v129 = vadd.f32 %v111, %v121
    %v130 = vadd.f32 %v112, %v122
    %v132 = vlaneseq
    %v133 = vshrl.u32 %v132, 7
    %v134 = vsub.s32 0, %v133
    %v135 = vrot.slane %v78, %v134
    %v137 = vmul.f32 %v123, %v135
    %v138 = vmul.f32 %v124, %v135
    %v139 = vmul.f32 %v125, %v135
    %v140 = vmul.f32 %v126, %v135
    %v141 = vmul.f32 %v127, %v135
    %v142 = vmul.f32 %v128, %v135
    %v143 = vmul.f32 %v129, %v135
    %v144 = vmul.f32 %v130, %v135
    %vm145 = vcmask 261120
    %v146 = vsel %vm145, %v137, 0.0
    %147 = vadd.xlane.f32.xlu0 %v146
    %v148 = vpop.xlane.xlu0 %147
    %v149 = vsel %vm145, %v138, 0.0
    %150 = vadd.xlane.f32.xlu0 %v149
    %v151 = vpop.xlane.xlu0 %150
    %v152 = vsel %vm145, %v139, 0.0
    %153 = vadd.xlane.f32.xlu0 %v152
    %v154 = vpop.xlane.xlu0 %153
    %v155 = vsel %vm145, %v140, 0.0
    %156 = vadd.xlane.f32.xlu0 %v155
    %v157 = vpop.xlane.xlu0 %156
    %v158 = vsel %vm145, %v141, 0.0
    %159 = vadd.xlane.f32.xlu0 %v158
    %v160 = vpop.xlane.xlu0 %159
    %v161 = vsel %vm145, %v142, 0.0
    %162 = vadd.xlane.f32.xlu0 %v161
    %v163 = vpop.xlane.xlu0 %162
    %v164 = vsel %vm145, %v143, 0.0
    %165 = vadd.xlane.f32.xlu0 %v164
    %v166 = vpop.xlane.xlu0 %165
    %v167 = vsel %vm145, %v144, 0.0
    %168 = vadd.xlane.f32.xlu0 %v167
    %v169 = vpop.xlane.xlu0 %168
    %v170 = vstv %s77
    %v171 = vadd.f32 %v148, %v170
    %v172 = vadd.f32 %v151, %v170
    %v173 = vadd.f32 %v154, %v170
    %v174 = vadd.f32 %v157, %v170
    %v175 = vadd.f32 %v160, %v170
    %v176 = vadd.f32 %v163, %v170
    %v177 = vadd.f32 %v166, %v170
    %v178 = vadd.f32 %v169, %v170
    %v179 = vmin.f32 %v171, 0.0
    %v180 = vmin.f32 %v172, 0.0
    %v181 = vmin.f32 %v173, 0.0
    %v182 = vmin.f32 %v174, 0.0
    %v183 = vmin.f32 %v175, 0.0
    %v184 = vmin.f32 %v176, 0.0
    %v185 = vmin.f32 %v177, 0.0
    %v186 = vmin.f32 %v178, 0.0
    %v187 = vand.u32 2147483647, %v171
    %v188 = vand.u32 2147483647, %v172
    %v189 = vand.u32 2147483647, %v173
    %v190 = vand.u32 2147483647, %v174
    %v191 = vand.u32 2147483647, %v175
    %v192 = vand.u32 2147483647, %v176
    %v193 = vand.u32 2147483647, %v177
    %v194 = vand.u32 2147483647, %v178
    %v195 = vsub.f32 0.0, %v187
    %v196 = vsub.f32 0.0, %v188
    %v197 = vsub.f32 0.0, %v189
    %v198 = vsub.f32 0.0, %v190
    %v199 = vsub.f32 0.0, %v191
    %v200 = vsub.f32 0.0, %v192
    %v201 = vsub.f32 0.0, %v193
    %v202 = vsub.f32 0.0, %v194
    %v203 = vmul.f32 %v195, 1.442695
    %v204 = vpow.pop %v203
    %v205 = vmul.f32 %v196, 1.442695
    %v206 = vpow.pop %v205
    %v207 = vmul.f32 %v197, 1.442695
    %v208 = vpow.pop %v207
    %v209 = vmul.f32 %v198, 1.442695
    %v210 = vpow.pop %v209
    %v211 = vmul.f32 %v199, 1.442695
    %v212 = vpow.pop %v211
    %v213 = vmul.f32 %v200, 1.442695
    %v214 = vpow.pop %v213
    %v215 = vmul.f32 %v201, 1.442695
    %v216 = vpow.pop %v215
    %v217 = vmul.f32 %v202, 1.442695
    %v218 = vpow.pop %v217
    %v219 = vadd.f32 %v204, 1.0
    %v220 = vadd.f32 %v206, 1.0
    %v221 = vadd.f32 %v208, 1.0
    %v222 = vadd.f32 %v210, 1.0
    %v223 = vadd.f32 %v212, 1.0
    %v224 = vadd.f32 %v214, 1.0
    %v225 = vadd.f32 %v216, 1.0
    %v226 = vadd.f32 %v218, 1.0
    %v227 = vlog2.pop %v219
    %v228 = vmul.f32 %v227, 0.6931472
    %v229 = vlog2.pop %v220
    %v230 = vmul.f32 %v229, 0.6931472
    %v231 = vlog2.pop %v221
    %v232 = vmul.f32 %v231, 0.6931472
    %v233 = vlog2.pop %v222
    %v234 = vmul.f32 %v233, 0.6931472
    %v235 = vlog2.pop %v223
    %v236 = vmul.f32 %v235, 0.6931472
    %v237 = vlog2.pop %v224
    %v238 = vmul.f32 %v237, 0.6931472
    %v239 = vlog2.pop %v225
    %v240 = vmul.f32 %v239, 0.6931472
    %v241 = vlog2.pop %v226
    %v242 = vmul.f32 %v241, 0.6931472
    %v243 = vsub.f32 %v179, %v228
    %v244 = vsub.f32 %v180, %v230
    %v245 = vsub.f32 %v181, %v232
    %v246 = vsub.f32 %v182, %v234
    %v247 = vsub.f32 %v183, %v236
    %v248 = vsub.f32 %v184, %v238
    %v249 = vsub.f32 %v185, %v240
    %v250 = vsub.f32 %v186, %v242
    %v251 = vmax.f32 %v243, -60.0
    %v252 = vmax.f32 %v244, -60.0
    %v253 = vmax.f32 %v245, -60.0
    %v254 = vmax.f32 %v246, -60.0
    %v255 = vmax.f32 %v247, -60.0
    %v256 = vmax.f32 %v248, -60.0
    %v257 = vmax.f32 %v249, -60.0
    %v258 = vmax.f32 %v250, -60.0
    %v259 = vmul.f32 %v123, 1.442695
    %v260 = vpow.pop %v259
    %v261 = vmul.f32 %v124, 1.442695
    %v262 = vpow.pop %v261
    %v263 = vmul.f32 %v125, 1.442695
    %v264 = vpow.pop %v263
    %v265 = vmul.f32 %v126, 1.442695
    %v266 = vpow.pop %v265
    %v267 = vmul.f32 %v127, 1.442695
    %v268 = vpow.pop %v267
    %v269 = vmul.f32 %v128, 1.442695
    %v270 = vpow.pop %v269
    %v271 = vmul.f32 %v129, 1.442695
    %v272 = vpow.pop %v271
    %v273 = vmul.f32 %v130, 1.442695
    %v274 = vpow.pop %v273
    %v275 = vsel %vm145, %v260, 0.0
    %276 = vadd.xlane.f32.xlu0 %v275
    %v277 = vpop.xlane.xlu0 %276
    %v278 = vsel %vm145, %v262, 0.0
    %279 = vadd.xlane.f32.xlu0 %v278
    %v280 = vpop.xlane.xlu0 %279
    %v281 = vsel %vm145, %v264, 0.0
    %282 = vadd.xlane.f32.xlu0 %v281
    %v283 = vpop.xlane.xlu0 %282
    %v284 = vsel %vm145, %v266, 0.0
    %285 = vadd.xlane.f32.xlu0 %v284
    %v286 = vpop.xlane.xlu0 %285
    %v287 = vsel %vm145, %v268, 0.0
    %288 = vadd.xlane.f32.xlu0 %v287
    %v289 = vpop.xlane.xlu0 %288
    %v290 = vsel %vm145, %v270, 0.0
    %291 = vadd.xlane.f32.xlu0 %v290
    %v292 = vpop.xlane.xlu0 %291
    %v293 = vsel %vm145, %v272, 0.0
    %294 = vadd.xlane.f32.xlu0 %v293
    %v295 = vpop.xlane.xlu0 %294
    %v296 = vsel %vm145, %v274, 0.0
    %297 = vadd.xlane.f32.xlu0 %v296
    %v298 = vpop.xlane.xlu0 %297
    %v299 = vmul.f32 %v260, %v123
    %v300 = vmul.f32 %v262, %v124
    %v301 = vmul.f32 %v264, %v125
    %v302 = vmul.f32 %v266, %v126
    %v303 = vmul.f32 %v268, %v127
    %v304 = vmul.f32 %v270, %v128
    %v305 = vmul.f32 %v272, %v129
    %v306 = vmul.f32 %v274, %v130
    %v307 = vlaneseq
    %v308 = vshrl.u32 %v307, 7
    %v309 = vlaneseq
    %v310 = vand.u32 %v309, 127
    %vm311 = vcmp.le.s32.totalorder %v308, %v310
    %v312 = vsel %vm311, 1, 0
    %v313 = vcvt.s32.f32 %v312
    %v322 = vlaneseq
    %v323 = vshrl.u32 %v322, 7
    %v324 = vsub.s32 %v310, %v323
    %v325 = vrot.slane %v251, %v324
    %v326 = vlaneseq
    %v327 = vshrl.u32 %v326, 7
    %v328 = vsub.s32 %v310, %v327
    %v329 = vrot.slane %v252, %v328
    %v330 = vlaneseq
    %v331 = vshrl.u32 %v330, 7
    %v332 = vsub.s32 %v310, %v331
    %v333 = vrot.slane %v253, %v332
    %v334 = vlaneseq
    %v335 = vshrl.u32 %v334, 7
    %v336 = vsub.s32 %v310, %v335
    %v337 = vrot.slane %v254, %v336
    %v338 = vlaneseq
    %v339 = vshrl.u32 %v338, 7
    %v340 = vsub.s32 %v310, %v339
    %v341 = vrot.slane %v255, %v340
    %v342 = vlaneseq
    %v343 = vshrl.u32 %v342, 7
    %v344 = vsub.s32 %v310, %v343
    %v345 = vrot.slane %v256, %v344
    %v346 = vlaneseq
    %v347 = vshrl.u32 %v346, 7
    %v348 = vsub.s32 %v310, %v347
    %v349 = vrot.slane %v257, %v348
    %v350 = vlaneseq
    %v351 = vshrl.u32 %v350, 7
    %v352 = vsub.s32 %v310, %v351
    %v353 = vrot.slane %v258, %v352
    %vm354 = vcmask 1041409
    %v355 = vsel %vm354, %v329, %v325
    %vm356 = vcmask 1042434
    %v357 = vsel %vm356, %v333, %v355
    %vm358 = vcmask 1043459
    %v359 = vsel %vm358, %v337, %v357
    %vm360 = vcmask 1044484
    %v361 = vsel %vm360, %v341, %v359
    %vm362 = vcmask 1045509
    %v363 = vsel %vm362, %v345, %v361
    %vm364 = vcmask 1046534
    %v365 = vsel %vm364, %v349, %v363
    %vm366 = vcmask 1047559
    %v367 = vsel %vm366, %v353, %v365
    %vm368 = vcmask 64512
    %v369 = vsel %vm368, %v367, 0
    %371 = vmatprep.subr.mxu0 0.0
    %372 = vmatpush1.msra.mxu0 %v313
    %373 = vmatprep.subr.mxu0 0.0
    %374 = vmatpush1.msra.mxu0 0.0
    %375 = vmatprep.subr.mxu0 0.0
    %376 = vmatpush1.msra.mxu0 0.0
    %377 = vmatprep.subr.mxu0 0.0
    %378 = vmatpush1.msra.mxu0 0.0
    %379 = vmatprep.subr.mxu0 0.0
    %380 = vmatpush1.msra.mxu0 0.0
    %381 = vmatprep.subr.mxu0 0.0
    %382 = vmatpush1.msra.mxu0 0.0
    %383 = vmatprep.subr.mxu0 0.0
    %384 = vmatpush1.msra.mxu0 0.0
    %385 = vmatprep.subr.mxu0 0.0
    %386 = vmatpush1.msra.mxu0 0.0
    %387 = vmatprep.subr.mxu0 0.0
    %388 = vmatpush1.msra.mxu0 0.0
    %389 = vmatprep.subr.mxu0 0.0
    %390 = vmatpush1.msra.mxu0 0.0
    %391 = vmatprep.subr.mxu0 0.0
    %392 = vmatpush1.msra.mxu0 0.0
    %393 = vmatprep.subr.mxu0 0.0
    %394 = vmatpush1.msra.mxu0 0.0
    %395 = vmatprep.subr.mxu0 0.0
    %396 = vmatpush1.msra.mxu0 0.0
    %397 = vmatprep.subr.mxu0 0.0
    %398 = vmatpush1.msra.mxu0 0.0
    %399 = vmatprep.subr.mxu0 0.0
    %400 = vmatpush1.msra.mxu0 0.0
    %401 = vmatprep.subr.mxu0 0.0
    %402 = vmatpush1.msra.mxu0 0.0
    %403 = vmatprep.subr.mxu0 0.0
    %404 = vmatpush1.msra.mxu0 0.0
    %405 = vmatprep.subr.mxu0 0.0
    %406 = vmatpush1.msra.mxu0 0.0
    %407 = vmatprep.subr.mxu0 0.0
    %408 = vmatpush1.msra.mxu0 0.0
    %409 = vmatprep.subr.mxu0 0.0
    %410 = vmatpush1.msra.mxu0 0.0
    %411 = vmatprep.subr.mxu0 0.0
    %412 = vmatpush1.msra.mxu0 0.0
    %413 = vmatprep.subr.mxu0 0.0
    %414 = vmatpush1.msra.mxu0 0.0
    %415 = vmatprep.subr.mxu0 0.0
    %416 = vmatpush1.msra.mxu0 0.0
    %417 = vmatprep.subr.mxu0 0.0
    %418 = vmatpush1.msra.mxu0 0.0
    %419 = vmatprep.subr.mxu0 0.0
    %420 = vmatpush1.msra.mxu0 0.0
    %421 = vmatprep.subr.mxu0 0.0
    %422 = vmatpush1.msra.mxu0 0.0
    %423 = vmatprep.subr.mxu0 0.0
    %424 = vmatpush1.msra.mxu0 0.0
    %425 = vmatprep.subr.mxu0 0.0
    %426 = vmatpush1.msra.mxu0 0.0
    %427 = vmatprep.subr.mxu0 0.0
    %428 = vmatpush1.msra.mxu0 0.0
    %429 = vmatprep.subr.mxu0 0.0
    %430 = vmatpush1.msra.mxu0 0.0
    %431 = vmatprep.subr.mxu0 0.0
    %432 = vmatpush1.msra.mxu0 0.0
    %433 = vmatprep.subr.mxu0 0.0
    %434 = vmatpush1.msra.mxu0 0.0
    %435 = vmatprep.mubr.f32.mxu0 0.0
    %436 = vmatmul.mubr.f32.gmra.mrb[0].mxu0 %v369
    %v437 = vpop.f32.mrb[0].mxu0
    %v438 = vadd.f32 0.0, %v437
    %v439 = vpop.f32.mrb[0].mxu0
    %440 = vdwg.mxu0
    %v441 = vmul.f32 %v438, 1.442695
    %v442 = vpow.pop %v441
    %v443 = vlaneseq
    %v444 = vshrl.u32 %v443, 7
    %v445 = vsub.s32 0, %v444
    %v446 = vrot.slane %v438, %v445
    %448 = vbcast.lane.b32.xlu0 %v446, 256
    %v449 = vpop.permute.xlu0 %448
    %v450 = vlaneseq
    %v451 = vshrl.u32 %v450, 7
    %v452 = vsub.s32 1, %v451
    %v453 = vrot.slane %v438, %v452
    %455 = vbcast.lane.b32.xlu0 %v453, 256
    %v456 = vpop.permute.xlu0 %455
    %v457 = vlaneseq
    %v458 = vshrl.u32 %v457, 7
    %v459 = vsub.s32 2, %v458
    %v460 = vrot.slane %v438, %v459
    %462 = vbcast.lane.b32.xlu0 %v460, 256
    %v463 = vpop.permute.xlu0 %462
    %v464 = vlaneseq
    %v465 = vshrl.u32 %v464, 7
    %v466 = vsub.s32 3, %v465
    %v467 = vrot.slane %v438, %v466
    %469 = vbcast.lane.b32.xlu0 %v467, 256
    %v470 = vpop.permute.xlu0 %469
    %v471 = vlaneseq
    %v472 = vshrl.u32 %v471, 7
    %v473 = vsub.s32 4, %v472
    %v474 = vrot.slane %v438, %v473
    %476 = vbcast.lane.b32.xlu0 %v474, 256
    %v477 = vpop.permute.xlu0 %476
    %v478 = vlaneseq
    %v479 = vshrl.u32 %v478, 7
    %v480 = vsub.s32 5, %v479
    %v481 = vrot.slane %v438, %v480
    %483 = vbcast.lane.b32.xlu0 %v481, 256
    %v484 = vpop.permute.xlu0 %483
    %v485 = vlaneseq
    %v486 = vshrl.u32 %v485, 7
    %v487 = vsub.s32 6, %v486
    %v488 = vrot.slane %v438, %v487
    %490 = vbcast.lane.b32.xlu0 %v488, 256
    %v491 = vpop.permute.xlu0 %490
    %v492 = vlaneseq
    %v493 = vshrl.u32 %v492, 7
    %v494 = vsub.s32 7, %v493
    %v495 = vrot.slane %v438, %v494
    %497 = vbcast.lane.b32.xlu0 %v495, 256
    %v498 = vpop.permute.xlu0 %497
    %v500 = vcombine.high %v438, %v438
    %v502 = vunpack.c.l.s4 1966171168
    %v503 = vunpack.c.0.s8 %v502
    %v504 = vlaneseq
    %v505 = vshrl.u32 %v504, 7
    %v506 = vsub.s32 %v503, %v505
    %v507 = vrot.slane %v438, %v506
    %v509 = vunpack.c.l.s4 1966171168
    %v510 = vunpack.c.0.s8 %v509
    %v511 = vlaneseq
    %v512 = vshrl.u32 %v511, 7
    %v513 = vsub.s32 %v510, %v512
    %v514 = vrot.slane %v500, %v513
    %v515 = vcombine.high %v507, %v507
    %v516 = vcombine.high %v514, %v514
    %v518 = vunpack.c.l.s4 1966171168
    %v519 = vunpack.c.0.s8 %v518
    %v520 = vlaneseq
    %v521 = vshrl.u32 %v520, 7
    %v522 = vsub.s32 %v519, %v521
    %v523 = vrot.slane %v507, %v522
    %v525 = vunpack.c.l.s4 1966171168
    %v526 = vunpack.c.0.s8 %v525
    %v527 = vlaneseq
    %v528 = vshrl.u32 %v527, 7
    %v529 = vsub.s32 %v526, %v528
    %v530 = vrot.slane %v514, %v529
    %v532 = vunpack.c.l.s4 1966171168
    %v533 = vunpack.c.0.s8 %v532
    %v534 = vlaneseq
    %v535 = vshrl.u32 %v534, 7
    %v536 = vsub.s32 %v533, %v535
    %v537 = vrot.slane %v515, %v536
    %v539 = vunpack.c.l.s4 1966171168
    %v540 = vunpack.c.0.s8 %v539
    %v541 = vlaneseq
    %v542 = vshrl.u32 %v541, 7
    %v543 = vsub.s32 %v540, %v542
    %v544 = vrot.slane %v516, %v543
    %v545 = vcombine.high %v523, %v523
    %v546 = vcombine.high %v530, %v530
    %v547 = vcombine.high %v537, %v537
    %v548 = vcombine.high %v544, %v544
    %v549 = vlaneseq
    %v550 = vshrl.u32 %v549, 7
    %v551 = vsub.s32 0, %v550
    %v552 = vrot.slane %v523, %v551
    %v553 = vlaneseq
    %v554 = vshrl.u32 %v553, 7
    %v555 = vsub.s32 0, %v554
    %v556 = vrot.slane %v537, %v555
    %v557 = vlaneseq
    %v558 = vshrl.u32 %v557, 7
    %v559 = vsub.s32 0, %v558
    %v560 = vrot.slane %v545, %v559
    %v561 = vlaneseq
    %v562 = vshrl.u32 %v561, 7
    %v563 = vsub.s32 0, %v562
    %v564 = vrot.slane %v547, %v563
    %v565 = vlaneseq
    %v566 = vshrl.u32 %v565, 7
    %v567 = vsub.s32 0, %v566
    %v568 = vrot.slane %v530, %v567
    %v569 = vlaneseq
    %v570 = vshrl.u32 %v569, 7
    %v571 = vsub.s32 0, %v570
    %v572 = vrot.slane %v544, %v571
    %v573 = vlaneseq
    %v574 = vshrl.u32 %v573, 7
    %v575 = vsub.s32 0, %v574
    %v576 = vrot.slane %v546, %v575
    %v577 = vlaneseq
    %v578 = vshrl.u32 %v577, 7
    %v579 = vsub.s32 0, %v578
    %v580 = vrot.slane %v548, %v579
    %v589 = vsub.f32 %v449, %v552
    %v590 = vsub.f32 %v456, %v556
    %v591 = vsub.f32 %v463, %v560
    %v592 = vsub.f32 %v470, %v564
    %v593 = vsub.f32 %v477, %v568
    %v594 = vsub.f32 %v484, %v572
    %v595 = vsub.f32 %v491, %v576
    %v596 = vsub.f32 %v498, %v580
    %vm597 = vcmp.ge.s32.totalorder %v308, %v310
    %v598 = vsel %vm597, 1, 0
    %vm599 = vcmp.eq.s32.totalorder %v598, 1
    %v600 = vsel %vm599, %v589, -1e+30
    %v601 = vsel %vm599, %v590, -1e+30
    %v602 = vsel %vm599, %v591, -1e+30
    %v603 = vsel %vm599, %v592, -1e+30
    %v604 = vsel %vm599, %v593, -1e+30
    %v605 = vsel %vm599, %v594, -1e+30
    %v606 = vsel %vm599, %v595, -1e+30
    %v607 = vsel %vm599, %v596, -1e+30
    %v608 = vmul.f32 %v600, 1.442695
    %v609 = vpow.pop %v608
    %v610 = vmul.f32 %v601, 1.442695
    %v611 = vpow.pop %v610
    %v612 = vmul.f32 %v602, 1.442695
    %v613 = vpow.pop %v612
    %v614 = vmul.f32 %v603, 1.442695
    %v615 = vpow.pop %v614
    %v616 = vmul.f32 %v604, 1.442695
    %v617 = vpow.pop %v616
    %v618 = vmul.f32 %v605, 1.442695
    %v619 = vpow.pop %v618
    %v620 = vmul.f32 %v606, 1.442695
    %v621 = vpow.pop %v620
    %v622 = vmul.f32 %v607, 1.442695
    %v623 = vpow.pop %v622
    %v624 = vmul.f32 %v442, 0.0
    %v633 = vlaneseq
    %v634 = vshrl.u32 %v633, 7
    %v635 = vsub.s32 %v310, %v634
    %v636 = vrot.slane %v277, %v635
    %v637 = vlaneseq
    %v638 = vshrl.u32 %v637, 7
    %v639 = vsub.s32 %v310, %v638
    %v640 = vrot.slane %v280, %v639
    %v641 = vlaneseq
    %v642 = vshrl.u32 %v641, 7
    %v643 = vsub.s32 %v310, %v642
    %v644 = vrot.slane %v283, %v643
    %v645 = vlaneseq
    %v646 = vshrl.u32 %v645, 7
    %v647 = vsub.s32 %v310, %v646
    %v648 = vrot.slane %v286, %v647
    %v649 = vlaneseq
    %v650 = vshrl.u32 %v649, 7
    %v651 = vsub.s32 %v310, %v650
    %v652 = vrot.slane %v289, %v651
    %v653 = vlaneseq
    %v654 = vshrl.u32 %v653, 7
    %v655 = vsub.s32 %v310, %v654
    %v656 = vrot.slane %v292, %v655
    %v657 = vlaneseq
    %v658 = vshrl.u32 %v657, 7
    %v659 = vsub.s32 %v310, %v658
    %v660 = vrot.slane %v295, %v659
    %v661 = vlaneseq
    %v662 = vshrl.u32 %v661, 7
    %v663 = vsub.s32 %v310, %v662
    %v664 = vrot.slane %v298, %v663
    %v665 = vsel %vm356, %v636, %v636
    %v666 = vsel %vm358, %v636, %v665
    %v667 = vsel %vm360, %v636, %v666
    %v668 = vsel %vm362, %v636, %v667
    %v669 = vsel %vm364, %v636, %v668
    %v670 = vsel %vm366, %v636, %v669
    %v671 = vsel %vm356, %v640, %v640
    %v672 = vsel %vm358, %v640, %v671
    %v673 = vsel %vm360, %v640, %v672
    %v674 = vsel %vm362, %v640, %v673
    %v675 = vsel %vm364, %v640, %v674
    %v676 = vsel %vm366, %v640, %v675
    %v677 = vsel %vm356, %v644, %v644
    %v678 = vsel %vm358, %v644, %v677
    %v679 = vsel %vm360, %v644, %v678
    %v680 = vsel %vm362, %v644, %v679
    %v681 = vsel %vm364, %v644, %v680
    %v682 = vsel %vm366, %v644, %v681
    %v683 = vsel %vm356, %v648, %v648
    %v684 = vsel %vm358, %v648, %v683
    %v685 = vsel %vm360, %v648, %v684
    %v686 = vsel %vm362, %v648, %v685
    %v687 = vsel %vm364, %v648, %v686
    %v688 = vsel %vm366, %v648, %v687
    %v689 = vsel %vm356, %v652, %v652
    %v690 = vsel %vm358, %v652, %v689
    %v691 = vsel %vm360, %v652, %v690
    %v692 = vsel %vm362, %v652, %v691
    %v693 = vsel %vm364, %v652, %v692
    %v694 = vsel %vm366, %v652, %v693
    %v695 = vsel %vm356, %v656, %v656
    %v696 = vsel %vm358, %v656, %v695
    %v697 = vsel %vm360, %v656, %v696
    %v698 = vsel %vm362, %v656, %v697
    %v699 = vsel %vm364, %v656, %v698
    %v700 = vsel %vm366, %v656, %v699
    %v701 = vsel %vm356, %v660, %v660
    %v702 = vsel %vm358, %v660, %v701
    %v703 = vsel %vm360, %v660, %v702
    %v704 = vsel %vm362, %v660, %v703
    %v705 = vsel %vm364, %v660, %v704
    %v706 = vsel %vm366, %v660, %v705
    %v707 = vsel %vm356, %v664, %v664
    %v708 = vsel %vm358, %v664, %v707
    %v709 = vsel %vm360, %v664, %v708
    %v710 = vsel %vm362, %v664, %v709
    %v711 = vsel %vm364, %v664, %v710
    %v712 = vsel %vm366, %v664, %v711
    %v721 = vmul.f32 %v609, %v670
    %v722 = vmul.f32 %v611, %v676
    %v723 = vmul.f32 %v613, %v682
    %v724 = vmul.f32 %v615, %v688
    %v725 = vmul.f32 %v617, %v694
    %v726 = vmul.f32 %v619, %v700
    %v727 = vmul.f32 %v621, %v706
    %v728 = vmul.f32 %v623, %v712
    %v729 = vsel %vm368, %v721, 0.0
    %730 = vadd.xlane.f32.xlu0 %v729
    %v731 = vpop.xlane.xlu0 %730
    %v732 = vsel %vm368, %v722, 0.0
    %733 = vadd.xlane.f32.xlu0 %v732
    %v734 = vpop.xlane.xlu0 %733
    %v735 = vsel %vm368, %v723, 0.0
    %736 = vadd.xlane.f32.xlu0 %v735
    %v737 = vpop.xlane.xlu0 %736
    %v738 = vsel %vm368, %v724, 0.0
    %739 = vadd.xlane.f32.xlu0 %v738
    %v740 = vpop.xlane.xlu0 %739
    %v741 = vsel %vm368, %v725, 0.0
    %742 = vadd.xlane.f32.xlu0 %v741
    %v743 = vpop.xlane.xlu0 %742
    %v744 = vsel %vm368, %v726, 0.0
    %745 = vadd.xlane.f32.xlu0 %v744
    %v746 = vpop.xlane.xlu0 %745
    %v747 = vsel %vm368, %v727, 0.0
    %748 = vadd.xlane.f32.xlu0 %v747
    %v749 = vpop.xlane.xlu0 %748
    %v750 = vsel %vm368, %v728, 0.0
    %751 = vadd.xlane.f32.xlu0 %v750
    %v752 = vpop.xlane.xlu0 %751
    %v761 = vlaneseq
    %v762 = vshrl.u32 %v761, 7
    %v763 = vsub.s32 %v310, %v762
    %v764 = vrot.slane %v731, %v763
    %v765 = vlaneseq
    %v766 = vshrl.u32 %v765, 7
    %v767 = vsub.s32 %v310, %v766
    %v768 = vrot.slane %v734, %v767
    %v769 = vlaneseq
    %v770 = vshrl.u32 %v769, 7
    %v771 = vsub.s32 %v310, %v770
    %v772 = vrot.slane %v737, %v771
    %v773 = vlaneseq
    %v774 = vshrl.u32 %v773, 7
    %v775 = vsub.s32 %v310, %v774
    %v776 = vrot.slane %v740, %v775
    %v777 = vlaneseq
    %v778 = vshrl.u32 %v777, 7
    %v779 = vsub.s32 %v310, %v778
    %v780 = vrot.slane %v743, %v779
    %v781 = vlaneseq
    %v782 = vshrl.u32 %v781, 7
    %v783 = vsub.s32 %v310, %v782
    %v784 = vrot.slane %v746, %v783
    %v785 = vlaneseq
    %v786 = vshrl.u32 %v785, 7
    %v787 = vsub.s32 %v310, %v786
    %v788 = vrot.slane %v749, %v787
    %v789 = vlaneseq
    %v790 = vshrl.u32 %v789, 7
    %v791 = vsub.s32 %v310, %v790
    %v792 = vrot.slane %v752, %v791
    %v793 = vsel %vm354, %v768, %v764
    %v794 = vsel %vm356, %v772, %v793
    %v795 = vsel %vm358, %v776, %v794
    %v796 = vsel %vm360, %v780, %v795
    %v797 = vsel %vm362, %v784, %v796
    %v798 = vsel %vm364, %v788, %v797
    %v799 = vsel %vm366, %v792, %v798
    %v801 = vadd.f32 %v624, %v799
    %v802 = vlaneseq
    %v803 = vshrl.u32 %v802, 7
    %v804 = vsub.s32 0, %v803
    %v805 = vrot.slane %v442, %v804
    %807 = vbcast.lane.b32.xlu0 %v805, 256
    %v808 = vpop.permute.xlu0 %807
    %v809 = vlaneseq
    %v810 = vshrl.u32 %v809, 7
    %v811 = vsub.s32 1, %v810
    %v812 = vrot.slane %v442, %v811
    %814 = vbcast.lane.b32.xlu0 %v812, 256
    %v815 = vpop.permute.xlu0 %814
    %v816 = vlaneseq
    %v817 = vshrl.u32 %v816, 7
    %v818 = vsub.s32 2, %v817
    %v819 = vrot.slane %v442, %v818
    %821 = vbcast.lane.b32.xlu0 %v819, 256
    %v822 = vpop.permute.xlu0 %821
    %v823 = vlaneseq
    %v824 = vshrl.u32 %v823, 7
    %v825 = vsub.s32 3, %v824
    %v826 = vrot.slane %v442, %v825
    %828 = vbcast.lane.b32.xlu0 %v826, 256
    %v829 = vpop.permute.xlu0 %828
    %v830 = vlaneseq
    %v831 = vshrl.u32 %v830, 7
    %v832 = vsub.s32 4, %v831
    %v833 = vrot.slane %v442, %v832
    %835 = vbcast.lane.b32.xlu0 %v833, 256
    %v836 = vpop.permute.xlu0 %835
    %v837 = vlaneseq
    %v838 = vshrl.u32 %v837, 7
    %v839 = vsub.s32 5, %v838
    %v840 = vrot.slane %v442, %v839
    %842 = vbcast.lane.b32.xlu0 %v840, 256
    %v843 = vpop.permute.xlu0 %842
    %v844 = vlaneseq
    %v845 = vshrl.u32 %v844, 7
    %v846 = vsub.s32 6, %v845
    %v847 = vrot.slane %v442, %v846
    %849 = vbcast.lane.b32.xlu0 %v847, 256
    %v850 = vpop.permute.xlu0 %849
    %v851 = vlaneseq
    %v852 = vshrl.u32 %v851, 7
    %v853 = vsub.s32 7, %v852
    %v854 = vrot.slane %v442, %v853
    %856 = vbcast.lane.b32.xlu0 %v854, 256
    %v857 = vpop.permute.xlu0 %856
    %v858 = vmul.f32 %v808, 0.0
    %v859 = vmul.f32 %v815, 0.0
    %v860 = vmul.f32 %v822, 0.0
    %v861 = vmul.f32 %v829, 0.0
    %v862 = vmul.f32 %v836, 0.0
    %v863 = vmul.f32 %v843, 0.0
    %v864 = vmul.f32 %v850, 0.0
    %v865 = vmul.f32 %v857, 0.0
    %v867 = vsel %vm368, %v609, 0
    %869 = vmatprep.subr.mxu0 0.0
    %870 = vmatpush1.msra.mxu0 %v299
    %871 = vmatprep.subr.mxu0 0.0
    %872 = vmatpush1.msra.mxu0 0.0
    %873 = vmatprep.subr.mxu0 0.0
    %874 = vmatpush1.msra.mxu0 0.0
    %875 = vmatprep.subr.mxu0 0.0
    %876 = vmatpush1.msra.mxu0 0.0
    %877 = vmatprep.subr.mxu0 0.0
    %878 = vmatpush1.msra.mxu0 0.0
    %879 = vmatprep.subr.mxu0 0.0
    %880 = vmatpush1.msra.mxu0 0.0
    %881 = vmatprep.subr.mxu0 0.0
    %882 = vmatpush1.msra.mxu0 0.0
    %883 = vmatprep.subr.mxu0 0.0
    %884 = vmatpush1.msra.mxu0 0.0
    %885 = vmatprep.subr.mxu0 0.0
    %886 = vmatpush1.msra.mxu0 0.0
    %887 = vmatprep.subr.mxu0 0.0
    %888 = vmatpush1.msra.mxu0 0.0
    %889 = vmatprep.subr.mxu0 0.0
    %890 = vmatpush1.msra.mxu0 0.0
    %891 = vmatprep.subr.mxu0 0.0
    %892 = vmatpush1.msra.mxu0 0.0
    %893 = vmatprep.subr.mxu0 0.0
    %894 = vmatpush1.msra.mxu0 0.0
    %895 = vmatprep.subr.mxu0 0.0
    %896 = vmatpush1.msra.mxu0 0.0
    %897 = vmatprep.subr.mxu0 0.0
    %898 = vmatpush1.msra.mxu0 0.0
    %899 = vmatprep.subr.mxu0 0.0
    %900 = vmatpush1.msra.mxu0 0.0
    %901 = vmatprep.subr.mxu0 0.0
    %902 = vmatpush1.msra.mxu0 0.0
    %903 = vmatprep.subr.mxu0 0.0
    %904 = vmatpush1.msra.mxu0 0.0
    %905 = vmatprep.subr.mxu0 0.0
    %906 = vmatpush1.msra.mxu0 0.0
    %907 = vmatprep.subr.mxu0 0.0
    %908 = vmatpush1.msra.mxu0 0.0
    %909 = vmatprep.subr.mxu0 0.0
    %910 = vmatpush1.msra.mxu0 0.0
    %911 = vmatprep.subr.mxu0 0.0
    %912 = vmatpush1.msra.mxu0 0.0
    %913 = vmatprep.subr.mxu0 0.0
    %914 = vmatpush1.msra.mxu0 0.0
    %915 = vmatprep.subr.mxu0 0.0
    %916 = vmatpush1.msra.mxu0 0.0
    %917 = vmatprep.subr.mxu0 0.0
    %918 = vmatpush1.msra.mxu0 0.0
    %919 = vmatprep.subr.mxu0 0.0
    %920 = vmatpush1.msra.mxu0 0.0
    %921 = vmatprep.subr.mxu0 0.0
    %922 = vmatpush1.msra.mxu0 0.0
    %923 = vmatprep.subr.mxu0 0.0
    %924 = vmatpush1.msra.mxu0 0.0
    %925 = vmatprep.subr.mxu0 0.0
    %926 = vmatpush1.msra.mxu0 0.0
    %927 = vmatprep.subr.mxu0 0.0
    %928 = vmatpush1.msra.mxu0 0.0
    %929 = vmatprep.subr.mxu0 0.0
    %930 = vmatpush1.msra.mxu0 0.0
    %931 = vmatprep.subr.mxu0 0.0
    %932 = vmatpush1.msra.mxu0 0.0
    %933 = vmatprep.mubr.f32.mxu0 0.0
    %934 = vmatmul.mubr.f32.gmra.mrb[0].mxu0 %v867
    %v935 = vpop.f32.mrb[0].mxu0
    %v936 = vadd.f32 0.0, %v935
    %v937 = vpop.f32.mrb[0].mxu0
    %938 = vdwg.mxu0
    %v940 = vsel %vm368, %v611, 0
    %942 = vmatprep.subr.mxu0 0.0
    %943 = vmatpush1.msra.mxu0 %v300
    %944 = vmatprep.subr.mxu0 0.0
    %945 = vmatpush1.msra.mxu0 0.0
    %946 = vmatprep.subr.mxu0 0.0
    %947 = vmatpush1.msra.mxu0 0.0
    %948 = vmatprep.subr.mxu0 0.0
    %949 = vmatpush1.msra.mxu0 0.0
    %950 = vmatprep.subr.mxu0 0.0
    %951 = vmatpush1.msra.mxu0 0.0
    %952 = vmatprep.subr.mxu0 0.0
    %953 = vmatpush1.msra.mxu0 0.0
    %954 = vmatprep.subr.mxu0 0.0
    %955 = vmatpush1.msra.mxu0 0.0
    %956 = vmatprep.subr.mxu0 0.0
    %957 = vmatpush1.msra.mxu0 0.0
    %958 = vmatprep.subr.mxu0 0.0
    %959 = vmatpush1.msra.mxu0 0.0
    %960 = vmatprep.subr.mxu0 0.0
    %961 = vmatpush1.msra.mxu0 0.0
    %962 = vmatprep.subr.mxu0 0.0
    %963 = vmatpush1.msra.mxu0 0.0
    %964 = vmatprep.subr.mxu0 0.0
    %965 = vmatpush1.msra.mxu0 0.0
    %966 = vmatprep.subr.mxu0 0.0
    %967 = vmatpush1.msra.mxu0 0.0
    %968 = vmatprep.subr.mxu0 0.0
    %969 = vmatpush1.msra.mxu0 0.0
    %970 = vmatprep.subr.mxu0 0.0
    %971 = vmatpush1.msra.mxu0 0.0
    %972 = vmatprep.subr.mxu0 0.0
    %973 = vmatpush1.msra.mxu0 0.0
    %974 = vmatprep.subr.mxu0 0.0
    %975 = vmatpush1.msra.mxu0 0.0
    %976 = vmatprep.subr.mxu0 0.0
    %977 = vmatpush1.msra.mxu0 0.0
    %978 = vmatprep.subr.mxu0 0.0
    %979 = vmatpush1.msra.mxu0 0.0
    %980 = vmatprep.subr.mxu0 0.0
    %981 = vmatpush1.msra.mxu0 0.0
    %982 = vmatprep.subr.mxu0 0.0
    %983 = vmatpush1.msra.mxu0 0.0
    %984 = vmatprep.subr.mxu0 0.0
    %985 = vmatpush1.msra.mxu0 0.0
    %986 = vmatprep.subr.mxu0 0.0
    %987 = vmatpush1.msra.mxu0 0.0
    %988 = vmatprep.subr.mxu0 0.0
    %989 = vmatpush1.msra.mxu0 0.0
    %990 = vmatprep.subr.mxu0 0.0
    %991 = vmatpush1.msra.mxu0 0.0
    %992 = vmatprep.subr.mxu0 0.0
    %993 = vmatpush1.msra.mxu0 0.0
    %994 = vmatprep.subr.mxu0 0.0
    %995 = vmatpush1.msra.mxu0 0.0
    %996 = vmatprep.subr.mxu0 0.0
    %997 = vmatpush1.msra.mxu0 0.0
    %998 = vmatprep.subr.mxu0 0.0
    %999 = vmatpush1.msra.mxu0 0.0
    %1000 = vmatprep.subr.mxu0 0.0
    %1001 = vmatpush1.msra.mxu0 0.0
    %1002 = vmatprep.subr.mxu0 0.0
    %1003 = vmatpush1.msra.mxu0 0.0
    %1004 = vmatprep.subr.mxu0 0.0
    %1005 = vmatpush1.msra.mxu0 0.0
    %1006 = vmatprep.mubr.f32.mxu0 0.0
    %1007 = vmatmul.mubr.f32.gmra.mrb[0].mxu0 %v940
    %v1008 = vpop.f32.mrb[0].mxu0
    %v1009 = vadd.f32 0.0, %v1008
    %v1010 = vpop.f32.mrb[0].mxu0
    %1011 = vdwg.mxu0
    %v1013 = vsel %vm368, %v613, 0
    %1015 = vmatprep.subr.mxu0 0.0
    %1016 = vmatpush1.msra.mxu0 %v301
    %1017 = vmatprep.subr.mxu0 0.0
    %1018 = vmatpush1.msra.mxu0 0.0
    %1019 = vmatprep.subr.mxu0 0.0
    %1020 = vmatpush1.msra.mxu0 0.0
    %1021 = vmatprep.subr.mxu0 0.0
    %1022 = vmatpush1.msra.mxu0 0.0
    %1023 = vmatprep.subr.mxu0 0.0
    %1024 = vmatpush1.msra.mxu0 0.0
    %1025 = vmatprep.subr.mxu0 0.0
    %1026 = vmatpush1.msra.mxu0 0.0
    %1027 = vmatprep.subr.mxu0 0.0
    %1028 = vmatpush1.msra.mxu0 0.0
    %1029 = vmatprep.subr.mxu0 0.0
    %1030 = vmatpush1.msra.mxu0 0.0
    %1031 = vmatprep.subr.mxu0 0.0
    %1032 = vmatpush1.msra.mxu0 0.0
    %1033 = vmatprep.subr.mxu0 0.0
    %1034 = vmatpush1.msra.mxu0 0.0
    %1035 = vmatprep.subr.mxu0 0.0
    %1036 = vmatpush1.msra.mxu0 0.0
    %1037 = vmatprep.subr.mxu0 0.0
    %1038 = vmatpush1.msra.mxu0 0.0
    %1039 = vmatprep.subr.mxu0 0.0
    %1040 = vmatpush1.msra.mxu0 0.0
    %1041 = vmatprep.subr.mxu0 0.0
    %1042 = vmatpush1.msra.mxu0 0.0
    %1043 = vmatprep.subr.mxu0 0.0
    %1044 = vmatpush1.msra.mxu0 0.0
    %1045 = vmatprep.subr.mxu0 0.0
    %1046 = vmatpush1.msra.mxu0 0.0
    %1047 = vmatprep.subr.mxu0 0.0
    %1048 = vmatpush1.msra.mxu0 0.0
    %1049 = vmatprep.subr.mxu0 0.0
    %1050 = vmatpush1.msra.mxu0 0.0
    %1051 = vmatprep.subr.mxu0 0.0
    %1052 = vmatpush1.msra.mxu0 0.0
    %1053 = vmatprep.subr.mxu0 0.0
    %1054 = vmatpush1.msra.mxu0 0.0
    %1055 = vmatprep.subr.mxu0 0.0
    %1056 = vmatpush1.msra.mxu0 0.0
    %1057 = vmatprep.subr.mxu0 0.0
    %1058 = vmatpush1.msra.mxu0 0.0
    %1059 = vmatprep.subr.mxu0 0.0
    %1060 = vmatpush1.msra.mxu0 0.0
    %1061 = vmatprep.subr.mxu0 0.0
    %1062 = vmatpush1.msra.mxu0 0.0
    %1063 = vmatprep.subr.mxu0 0.0
    %1064 = vmatpush1.msra.mxu0 0.0
    %1065 = vmatprep.subr.mxu0 0.0
    %1066 = vmatpush1.msra.mxu0 0.0
    %1067 = vmatprep.subr.mxu0 0.0
    %1068 = vmatpush1.msra.mxu0 0.0
    %1069 = vmatprep.subr.mxu0 0.0
    %1070 = vmatpush1.msra.mxu0 0.0
    %1071 = vmatprep.subr.mxu0 0.0
    %1072 = vmatpush1.msra.mxu0 0.0
    %1073 = vmatprep.subr.mxu0 0.0
    %1074 = vmatpush1.msra.mxu0 0.0
    %1075 = vmatprep.subr.mxu0 0.0
    %1076 = vmatpush1.msra.mxu0 0.0
    %1077 = vmatprep.subr.mxu0 0.0
    %1078 = vmatpush1.msra.mxu0 0.0
    %1079 = vmatprep.mubr.f32.mxu0 0.0
    %1080 = vmatmul.mubr.f32.gmra.mrb[0].mxu0 %v1013
    %v1081 = vpop.f32.mrb[0].mxu0
    %v1082 = vadd.f32 0.0, %v1081
    %v1083 = vpop.f32.mrb[0].mxu0
    %1084 = vdwg.mxu0
    %v1086 = vsel %vm368, %v615, 0
    %1088 = vmatprep.subr.mxu0 0.0
    %1089 = vmatpush1.msra.mxu0 %v302
    %1090 = vmatprep.subr.mxu0 0.0
    %1091 = vmatpush1.msra.mxu0 0.0
    %1092 = vmatprep.subr.mxu0 0.0
    %1093 = vmatpush1.msra.mxu0 0.0
    %1094 = vmatprep.subr.mxu0 0.0
    %1095 = vmatpush1.msra.mxu0 0.0
    %1096 = vmatprep.subr.mxu0 0.0
    %1097 = vmatpush1.msra.mxu0 0.0
    %1098 = vmatprep.subr.mxu0 0.0
    %1099 = vmatpush1.msra.mxu0 0.0
    %1100 = vmatprep.subr.mxu0 0.0
    %1101 = vmatpush1.msra.mxu0 0.0
    %1102 = vmatprep.subr.mxu0 0.0
    %1103 = vmatpush1.msra.mxu0 0.0
    %1104 = vmatprep.subr.mxu0 0.0
    %1105 = vmatpush1.msra.mxu0 0.0
    %1106 = vmatprep.subr.mxu0 0.0
    %1107 = vmatpush1.msra.mxu0 0.0
    %1108 = vmatprep.subr.mxu0 0.0
    %1109 = vmatpush1.msra.mxu0 0.0
    %1110 = vmatprep.subr.mxu0 0.0
    %1111 = vmatpush1.msra.mxu0 0.0
    %1112 = vmatprep.subr.mxu0 0.0
    %1113 = vmatpush1.msra.mxu0 0.0
    %1114 = vmatprep.subr.mxu0 0.0
    %1115 = vmatpush1.msra.mxu0 0.0
    %1116 = vmatprep.subr.mxu0 0.0
    %1117 = vmatpush1.msra.mxu0 0.0
    %1118 = vmatprep.subr.mxu0 0.0
    %1119 = vmatpush1.msra.mxu0 0.0
    %1120 = vmatprep.subr.mxu0 0.0
    %1121 = vmatpush1.msra.mxu0 0.0
    %1122 = vmatprep.subr.mxu0 0.0
    %1123 = vmatpush1.msra.mxu0 0.0
    %1124 = vmatprep.subr.mxu0 0.0
    %1125 = vmatpush1.msra.mxu0 0.0
    %1126 = vmatprep.subr.mxu0 0.0
    %1127 = vmatpush1.msra.mxu0 0.0
    %1128 = vmatprep.subr.mxu0 0.0
    %1129 = vmatpush1.msra.mxu0 0.0
    %1130 = vmatprep.subr.mxu0 0.0
    %1131 = vmatpush1.msra.mxu0 0.0
    %1132 = vmatprep.subr.mxu0 0.0
    %1133 = vmatpush1.msra.mxu0 0.0
    %1134 = vmatprep.subr.mxu0 0.0
    %1135 = vmatpush1.msra.mxu0 0.0
    %1136 = vmatprep.subr.mxu0 0.0
    %1137 = vmatpush1.msra.mxu0 0.0
    %1138 = vmatprep.subr.mxu0 0.0
    %1139 = vmatpush1.msra.mxu0 0.0
    %1140 = vmatprep.subr.mxu0 0.0
    %1141 = vmatpush1.msra.mxu0 0.0
    %1142 = vmatprep.subr.mxu0 0.0
    %1143 = vmatpush1.msra.mxu0 0.0
    %1144 = vmatprep.subr.mxu0 0.0
    %1145 = vmatpush1.msra.mxu0 0.0
    %1146 = vmatprep.subr.mxu0 0.0
    %1147 = vmatpush1.msra.mxu0 0.0
    %1148 = vmatprep.subr.mxu0 0.0
    %1149 = vmatpush1.msra.mxu0 0.0
    %1150 = vmatprep.subr.mxu0 0.0
    %1151 = vmatpush1.msra.mxu0 0.0
    %1152 = vmatprep.mubr.f32.mxu0 0.0
    %1153 = vmatmul.mubr.f32.gmra.mrb[0].mxu0 %v1086
    %v1154 = vpop.f32.mrb[0].mxu0
    %v1155 = vadd.f32 0.0, %v1154
    %v1156 = vpop.f32.mrb[0].mxu0
    %1157 = vdwg.mxu0
    %v1159 = vsel %vm368, %v617, 0
    %1161 = vmatprep.subr.mxu0 0.0
    %1162 = vmatpush1.msra.mxu0 %v303
    %1163 = vmatprep.subr.mxu0 0.0
    %1164 = vmatpush1.msra.mxu0 0.0
    %1165 = vmatprep.subr.mxu0 0.0
    %1166 = vmatpush1.msra.mxu0 0.0
    %1167 = vmatprep.subr.mxu0 0.0
    %1168 = vmatpush1.msra.mxu0 0.0
    %1169 = vmatprep.subr.mxu0 0.0
    %1170 = vmatpush1.msra.mxu0 0.0
    %1171 = vmatprep.subr.mxu0 0.0
    %1172 = vmatpush1.msra.mxu0 0.0
    %1173 = vmatprep.subr.mxu0 0.0
    %1174 = vmatpush1.msra.mxu0 0.0
    %1175 = vmatprep.subr.mxu0 0.0
    %1176 = vmatpush1.msra.mxu0 0.0
    %1177 = vmatprep.subr.mxu0 0.0
    %1178 = vmatpush1.msra.mxu0 0.0
    %1179 = vmatprep.subr.mxu0 0.0
    %1180 = vmatpush1.msra.mxu0 0.0
    %1181 = vmatprep.subr.mxu0 0.0
    %1182 = vmatpush1.msra.mxu0 0.0
    %1183 = vmatprep.subr.mxu0 0.0
    %1184 = vmatpush1.msra.mxu0 0.0
    %1185 = vmatprep.subr.mxu0 0.0
    %1186 = vmatpush1.msra.mxu0 0.0
    %1187 = vmatprep.subr.mxu0 0.0
    %1188 = vmatpush1.msra.mxu0 0.0
    %1189 = vmatprep.subr.mxu0 0.0
    %1190 = vmatpush1.msra.mxu0 0.0
    %1191 = vmatprep.subr.mxu0 0.0
    %1192 = vmatpush1.msra.mxu0 0.0
    %1193 = vmatprep.subr.mxu0 0.0
    %1194 = vmatpush1.msra.mxu0 0.0
    %1195 = vmatprep.subr.mxu0 0.0
    %1196 = vmatpush1.msra.mxu0 0.0
    %1197 = vmatprep.subr.mxu0 0.0
    %1198 = vmatpush1.msra.mxu0 0.0
    %1199 = vmatprep.subr.mxu0 0.0
    %1200 = vmatpush1.msra.mxu0 0.0
    %1201 = vmatprep.subr.mxu0 0.0
    %1202 = vmatpush1.msra.mxu0 0.0
    %1203 = vmatprep.subr.mxu0 0.0
    %1204 = vmatpush1.msra.mxu0 0.0
    %1205 = vmatprep.subr.mxu0 0.0
    %1206 = vmatpush1.msra.mxu0 0.0
    %1207 = vmatprep.subr.mxu0 0.0
    %1208 = vmatpush1.msra.mxu0 0.0
    %1209 = vmatprep.subr.mxu0 0.0
    %1210 = vmatpush1.msra.mxu0 0.0
    %1211 = vmatprep.subr.mxu0 0.0
    %1212 = vmatpush1.msra.mxu0 0.0
    %1213 = vmatprep.subr.mxu0 0.0
    %1214 = vmatpush1.msra.mxu0 0.0
    %1215 = vmatprep.subr.mxu0 0.0
    %1216 = vmatpush1.msra.mxu0 0.0
    %1217 = vmatprep.subr.mxu0 0.0
    %1218 = vmatpush1.msra.mxu0 0.0
    %1219 = vmatprep.subr.mxu0 0.0
    %1220 = vmatpush1.msra.mxu0 0.0
    %1221 = vmatprep.subr.mxu0 0.0
    %1222 = vmatpush1.msra.mxu0 0.0
    %1223 = vmatprep.subr.mxu0 0.0
    %1224 = vmatpush1.msra.mxu0 0.0
    %1225 = vmatprep.mubr.f32.mxu0 0.0
    %1226 = vmatmul.mubr.f32.gmra.mrb[0].mxu0 %v1159
    %v1227 = vpop.f32.mrb[0].mxu0
    %v1228 = vadd.f32 0.0, %v1227
    %v1229 = vpop.f32.mrb[0].mxu0
    %1230 = vdwg.mxu0
    %v1232 = vsel %vm368, %v619, 0
    %1234 = vmatprep.subr.mxu0 0.0
    %1235 = vmatpush1.msra.mxu0 %v304
    %1236 = vmatprep.subr.mxu0 0.0
    %1237 = vmatpush1.msra.mxu0 0.0
    %1238 = vmatprep.subr.mxu0 0.0
    %1239 = vmatpush1.msra.mxu0 0.0
    %1240 = vmatprep.subr.mxu0 0.0
    %1241 = vmatpush1.msra.mxu0 0.0
    %1242 = vmatprep.subr.mxu0 0.0
    %1243 = vmatpush1.msra.mxu0 0.0
    %1244 = vmatprep.subr.mxu0 0.0
    %1245 = vmatpush1.msra.mxu0 0.0
    %1246 = vmatprep.subr.mxu0 0.0
    %1247 = vmatpush1.msra.mxu0 0.0
    %1248 = vmatprep.subr.mxu0 0.0
    %1249 = vmatpush1.msra.mxu0 0.0
    %1250 = vmatprep.subr.mxu0 0.0
    %1251 = vmatpush1.msra.mxu0 0.0
    %1252 = vmatprep.subr.mxu0 0.0
    %1253 = vmatpush1.msra.mxu0 0.0
    %1254 = vmatprep.subr.mxu0 0.0
    %1255 = vmatpush1.msra.mxu0 0.0
    %1256 = vmatprep.subr.mxu0 0.0
    %1257 = vmatpush1.msra.mxu0 0.0
    %1258 = vmatprep.subr.mxu0 0.0
    %1259 = vmatpush1.msra.mxu0 0.0
    %1260 = vmatprep.subr.mxu0 0.0
    %1261 = vmatpush1.msra.mxu0 0.0
    %1262 = vmatprep.subr.mxu0 0.0
    %1263 = vmatpush1.msra.mxu0 0.0
    %1264 = vmatprep.subr.mxu0 0.0
    %1265 = vmatpush1.msra.mxu0 0.0
    %1266 = vmatprep.subr.mxu0 0.0
    %1267 = vmatpush1.msra.mxu0 0.0
    %1268 = vmatprep.subr.mxu0 0.0
    %1269 = vmatpush1.msra.mxu0 0.0
    %1270 = vmatprep.subr.mxu0 0.0
    %1271 = vmatpush1.msra.mxu0 0.0
    %1272 = vmatprep.subr.mxu0 0.0
    %1273 = vmatpush1.msra.mxu0 0.0
    %1274 = vmatprep.subr.mxu0 0.0
    %1275 = vmatpush1.msra.mxu0 0.0
    %1276 = vmatprep.subr.mxu0 0.0
    %1277 = vmatpush1.msra.mxu0 0.0
    %1278 = vmatprep.subr.mxu0 0.0
    %1279 = vmatpush1.msra.mxu0 0.0
    %1280 = vmatprep.subr.mxu0 0.0
    %1281 = vmatpush1.msra.mxu0 0.0
    %1282 = vmatprep.subr.mxu0 0.0
    %1283 = vmatpush1.msra.mxu0 0.0
    %1284 = vmatprep.subr.mxu0 0.0
    %1285 = vmatpush1.msra.mxu0 0.0
    %1286 = vmatprep.subr.mxu0 0.0
    %1287 = vmatpush1.msra.mxu0 0.0
    %1288 = vmatprep.subr.mxu0 0.0
    %1289 = vmatpush1.msra.mxu0 0.0
    %1290 = vmatprep.subr.mxu0 0.0
    %1291 = vmatpush1.msra.mxu0 0.0
    %1292 = vmatprep.subr.mxu0 0.0
    %1293 = vmatpush1.msra.mxu0 0.0
    %1294 = vmatprep.subr.mxu0 0.0
    %1295 = vmatpush1.msra.mxu0 0.0
    %1296 = vmatprep.subr.mxu0 0.0
    %1297 = vmatpush1.msra.mxu0 0.0
    %1298 = vmatprep.mubr.f32.mxu0 0.0
    %1299 = vmatmul.mubr.f32.gmra.mrb[0].mxu0 %v1232
    %v1300 = vpop.f32.mrb[0].mxu0
    %v1301 = vadd.f32 0.0, %v1300
    %v1302 = vpop.f32.mrb[0].mxu0
    %1303 = vdwg.mxu0
    %v1305 = vsel %vm368, %v621, 0
    %1307 = vmatprep.subr.mxu0 0.0
    %1308 = vmatpush1.msra.mxu0 %v305
    %1309 = vmatprep.subr.mxu0 0.0
    %1310 = vmatpush1.msra.mxu0 0.0
    %1311 = vmatprep.subr.mxu0 0.0
    %1312 = vmatpush1.msra.mxu0 0.0
    %1313 = vmatprep.subr.mxu0 0.0
    %1314 = vmatpush1.msra.mxu0 0.0
    %1315 = vmatprep.subr.mxu0 0.0
    %1316 = vmatpush1.msra.mxu0 0.0
    %1317 = vmatprep.subr.mxu0 0.0
    %1318 = vmatpush1.msra.mxu0 0.0
    %1319 = vmatprep.subr.mxu0 0.0
    %1320 = vmatpush1.msra.mxu0 0.0
    %1321 = vmatprep.subr.mxu0 0.0
    %1322 = vmatpush1.msra.mxu0 0.0
    %1323 = vmatprep.subr.mxu0 0.0
    %1324 = vmatpush1.msra.mxu0 0.0
    %1325 = vmatprep.subr.mxu0 0.0
    %1326 = vmatpush1.msra.mxu0 0.0
    %1327 = vmatprep.subr.mxu0 0.0
    %1328 = vmatpush1.msra.mxu0 0.0
    %1329 = vmatprep.subr.mxu0 0.0
    %1330 = vmatpush1.msra.mxu0 0.0
    %1331 = vmatprep.subr.mxu0 0.0
    %1332 = vmatpush1.msra.mxu0 0.0
    %1333 = vmatprep.subr.mxu0 0.0
    %1334 = vmatpush1.msra.mxu0 0.0
    %1335 = vmatprep.subr.mxu0 0.0
    %1336 = vmatpush1.msra.mxu0 0.0
    %1337 = vmatprep.subr.mxu0 0.0
    %1338 = vmatpush1.msra.mxu0 0.0
    %1339 = vmatprep.subr.mxu0 0.0
    %1340 = vmatpush1.msra.mxu0 0.0
    %1341 = vmatprep.subr.mxu0 0.0
    %1342 = vmatpush1.msra.mxu0 0.0
    %1343 = vmatprep.subr.mxu0 0.0
    %1344 = vmatpush1.msra.mxu0 0.0
    %1345 = vmatprep.subr.mxu0 0.0
    %1346 = vmatpush1.msra.mxu0 0.0
    %1347 = vmatprep.subr.mxu0 0.0
    %1348 = vmatpush1.msra.mxu0 0.0
    %1349 = vmatprep.subr.mxu0 0.0
    %1350 = vmatpush1.msra.mxu0 0.0
    %1351 = vmatprep.subr.mxu0 0.0
    %1352 = vmatpush1.msra.mxu0 0.0
    %1353 = vmatprep.subr.mxu0 0.0
    %1354 = vmatpush1.msra.mxu0 0.0
    %1355 = vmatprep.subr.mxu0 0.0
    %1356 = vmatpush1.msra.mxu0 0.0
    %1357 = vmatprep.subr.mxu0 0.0
    %1358 = vmatpush1.msra.mxu0 0.0
    %1359 = vmatprep.subr.mxu0 0.0
    %1360 = vmatpush1.msra.mxu0 0.0
    %1361 = vmatprep.subr.mxu0 0.0
    %1362 = vmatpush1.msra.mxu0 0.0
    %1363 = vmatprep.subr.mxu0 0.0
    %1364 = vmatpush1.msra.mxu0 0.0
    %1365 = vmatprep.subr.mxu0 0.0
    %1366 = vmatpush1.msra.mxu0 0.0
    %1367 = vmatprep.subr.mxu0 0.0
    %1368 = vmatpush1.msra.mxu0 0.0
    %1369 = vmatprep.subr.mxu0 0.0
    %1370 = vmatpush1.msra.mxu0 0.0
    %1371 = vmatprep.mubr.f32.mxu0 0.0
    %1372 = vmatmul.mubr.f32.gmra.mrb[0].mxu0 %v1305
    %v1373 = vpop.f32.mrb[0].mxu0
    %v1374 = vadd.f32 0.0, %v1373
    %v1375 = vpop.f32.mrb[0].mxu0
    %1376 = vdwg.mxu0
    %v1378 = vsel %vm368, %v623, 0
    %1380 = vmatprep.subr.mxu0 0.0
    %1381 = vmatpush1.msra.mxu0 %v306
    %1382 = vmatprep.subr.mxu0 0.0
    %1383 = vmatpush1.msra.mxu0 0.0
    %1384 = vmatprep.subr.mxu0 0.0
    %1385 = vmatpush1.msra.mxu0 0.0
    %1386 = vmatprep.subr.mxu0 0.0
    %1387 = vmatpush1.msra.mxu0 0.0
    %1388 = vmatprep.subr.mxu0 0.0
    %1389 = vmatpush1.msra.mxu0 0.0
    %1390 = vmatprep.subr.mxu0 0.0
    %1391 = vmatpush1.msra.mxu0 0.0
    %1392 = vmatprep.subr.mxu0 0.0
    %1393 = vmatpush1.msra.mxu0 0.0
    %1394 = vmatprep.subr.mxu0 0.0
    %1395 = vmatpush1.msra.mxu0 0.0
    %1396 = vmatprep.subr.mxu0 0.0
    %1397 = vmatpush1.msra.mxu0 0.0
    %1398 = vmatprep.subr.mxu0 0.0
    %1399 = vmatpush1.msra.mxu0 0.0
    %1400 = vmatprep.subr.mxu0 0.0
    %1401 = vmatpush1.msra.mxu0 0.0
    %1402 = vmatprep.subr.mxu0 0.0
    %1403 = vmatpush1.msra.mxu0 0.0
    %1404 = vmatprep.subr.mxu0 0.0
    %1405 = vmatpush1.msra.mxu0 0.0
    %1406 = vmatprep.subr.mxu0 0.0
    %1407 = vmatpush1.msra.mxu0 0.0
    %1408 = vmatprep.subr.mxu0 0.0
    %1409 = vmatpush1.msra.mxu0 0.0
    %1410 = vmatprep.subr.mxu0 0.0
    %1411 = vmatpush1.msra.mxu0 0.0
    %1412 = vmatprep.subr.mxu0 0.0
    %1413 = vmatpush1.msra.mxu0 0.0
    %1414 = vmatprep.subr.mxu0 0.0
    %1415 = vmatpush1.msra.mxu0 0.0
    %1416 = vmatprep.subr.mxu0 0.0
    %1417 = vmatpush1.msra.mxu0 0.0
    %1418 = vmatprep.subr.mxu0 0.0
    %1419 = vmatpush1.msra.mxu0 0.0
    %1420 = vmatprep.subr.mxu0 0.0
    %1421 = vmatpush1.msra.mxu0 0.0
    %1422 = vmatprep.subr.mxu0 0.0
    %1423 = vmatpush1.msra.mxu0 0.0
    %1424 = vmatprep.subr.mxu0 0.0
    %1425 = vmatpush1.msra.mxu0 0.0
    %1426 = vmatprep.subr.mxu0 0.0
    %1427 = vmatpush1.msra.mxu0 0.0
    %1428 = vmatprep.subr.mxu0 0.0
    %1429 = vmatpush1.msra.mxu0 0.0
    %1430 = vmatprep.subr.mxu0 0.0
    %1431 = vmatpush1.msra.mxu0 0.0
    %1432 = vmatprep.subr.mxu0 0.0
    %1433 = vmatpush1.msra.mxu0 0.0
    %1434 = vmatprep.subr.mxu0 0.0
    %1435 = vmatpush1.msra.mxu0 0.0
    %1436 = vmatprep.subr.mxu0 0.0
    %1437 = vmatpush1.msra.mxu0 0.0
    %1438 = vmatprep.subr.mxu0 0.0
    %1439 = vmatpush1.msra.mxu0 0.0
    %1440 = vmatprep.subr.mxu0 0.0
    %1441 = vmatpush1.msra.mxu0 0.0
    %1442 = vmatprep.subr.mxu0 0.0
    %1443 = vmatpush1.msra.mxu0 0.0
    %1444 = vmatprep.mubr.f32.mxu0 0.0
    %1445 = vmatmul.mubr.f32.gmra.mrb[0].mxu0 %v1378
    %v1446 = vpop.f32.mrb[0].mxu0
    %v1447 = vadd.f32 0.0, %v1446
    %v1448 = vpop.f32.mrb[0].mxu0
    %1449 = vdwg.mxu0
    %v1450 = vadd.f32 %v858, %v936
    %v1451 = vadd.f32 %v859, %v1009
    %v1452 = vadd.f32 %v860, %v1082
    %v1453 = vadd.f32 %v861, %v1155
    %v1454 = vadd.f32 %v862, %v1228
    %v1455 = vadd.f32 %v863, %v1301
    %v1456 = vadd.f32 %v864, %v1374
    %v1457 = vadd.f32 %v865, %v1447
    %v1458 = vadd.f32 %v801, 1e-08
    %v1459 = vrcp.pop %v1458
    %v1460 = vlaneseq
    %v1461 = vshrl.u32 %v1460, 7
    %v1462 = vsub.s32 0, %v1461
    %v1463 = vrot.slane %v1459, %v1462
    %1465 = vbcast.lane.b32.xlu0 %v1463, 256
    %v1466 = vpop.permute.xlu0 %1465
    %v1467 = vlaneseq
    %v1468 = vshrl.u32 %v1467, 7
    %v1469 = vsub.s32 1, %v1468
    %v1470 = vrot.slane %v1459, %v1469
    %1472 = vbcast.lane.b32.xlu0 %v1470, 256
    %v1473 = vpop.permute.xlu0 %1472
    %v1474 = vlaneseq
    %v1475 = vshrl.u32 %v1474, 7
    %v1476 = vsub.s32 2, %v1475
    %v1477 = vrot.slane %v1459, %v1476
    %1479 = vbcast.lane.b32.xlu0 %v1477, 256
    %v1480 = vpop.permute.xlu0 %1479
    %v1481 = vlaneseq
    %v1482 = vshrl.u32 %v1481, 7
    %v1483 = vsub.s32 3, %v1482
    %v1484 = vrot.slane %v1459, %v1483
    %1486 = vbcast.lane.b32.xlu0 %v1484, 256
    %v1487 = vpop.permute.xlu0 %1486
    %v1488 = vlaneseq
    %v1489 = vshrl.u32 %v1488, 7
    %v1490 = vsub.s32 4, %v1489
    %v1491 = vrot.slane %v1459, %v1490
    %1493 = vbcast.lane.b32.xlu0 %v1491, 256
    %v1494 = vpop.permute.xlu0 %1493
    %v1495 = vlaneseq
    %v1496 = vshrl.u32 %v1495, 7
    %v1497 = vsub.s32 5, %v1496
    %v1498 = vrot.slane %v1459, %v1497
    %1500 = vbcast.lane.b32.xlu0 %v1498, 256
    %v1501 = vpop.permute.xlu0 %1500
    %v1502 = vlaneseq
    %v1503 = vshrl.u32 %v1502, 7
    %v1504 = vsub.s32 6, %v1503
    %v1505 = vrot.slane %v1459, %v1504
    %1507 = vbcast.lane.b32.xlu0 %v1505, 256
    %v1508 = vpop.permute.xlu0 %1507
    %v1509 = vlaneseq
    %v1510 = vshrl.u32 %v1509, 7
    %v1511 = vsub.s32 7, %v1510
    %v1512 = vrot.slane %v1459, %v1511
    %1514 = vbcast.lane.b32.xlu0 %v1512, 256
    %v1515 = vpop.permute.xlu0 %1514
    %v1516 = vmul.f32 %v1450, %v1466
    %v1517 = vmul.f32 %v1451, %v1473
    %v1518 = vmul.f32 %v1452, %v1480
    %v1519 = vmul.f32 %v1453, %v1487
    %v1520 = vmul.f32 %v1454, %v1494
    %v1521 = vmul.f32 %v1455, %v1501
    %v1522 = vmul.f32 %v1456, %v1508
    %v1523 = vmul.f32 %v1457, %v1515
    %v1524 = vsel %vm145, %v1516, 0.0
    %1525 = vadd.xlane.f32.xlu0 %v1524
    %v1526 = vpop.xlane.xlu0 %1525
    %v1527 = vsel %vm145, %v1517, 0.0
    %1528 = vadd.xlane.f32.xlu0 %v1527
    %v1529 = vpop.xlane.xlu0 %1528
    %v1530 = vsel %vm145, %v1518, 0.0
    %1531 = vadd.xlane.f32.xlu0 %v1530
    %v1532 = vpop.xlane.xlu0 %1531
    %v1533 = vsel %vm145, %v1519, 0.0
    %1534 = vadd.xlane.f32.xlu0 %v1533
    %v1535 = vpop.xlane.xlu0 %1534
    %v1536 = vsel %vm145, %v1520, 0.0
    %1537 = vadd.xlane.f32.xlu0 %v1536
    %v1538 = vpop.xlane.xlu0 %1537
    %v1539 = vsel %vm145, %v1521, 0.0
    %1540 = vadd.xlane.f32.xlu0 %v1539
    %v1541 = vpop.xlane.xlu0 %1540
    %v1542 = vsel %vm145, %v1522, 0.0
    %1543 = vadd.xlane.f32.xlu0 %v1542
    %v1544 = vpop.xlane.xlu0 %1543
    %v1545 = vsel %vm145, %v1523, 0.0
    %1546 = vadd.xlane.f32.xlu0 %v1545
    %v1547 = vpop.xlane.xlu0 %1546
    %v1548 = vrcp.pop 32.0
    %v1549 = vmul.f32 %v1526, %v1548
    %v1550 = vmul.f32 %v1529, %v1548
    %v1551 = vmul.f32 %v1532, %v1548
    %v1552 = vmul.f32 %v1535, %v1548
    %v1553 = vmul.f32 %v1538, %v1548
    %v1554 = vmul.f32 %v1541, %v1548
    %v1555 = vmul.f32 %v1544, %v1548
    %v1556 = vmul.f32 %v1547, %v1548
    %v1557 = vsub.f32 %v1516, %v1549
    %v1558 = vsub.f32 %v1517, %v1550
    %v1559 = vsub.f32 %v1518, %v1551
    %v1560 = vsub.f32 %v1519, %v1552
    %v1561 = vsub.f32 %v1520, %v1553
    %v1562 = vsub.f32 %v1521, %v1554
    %v1563 = vsub.f32 %v1522, %v1555
    %v1564 = vsub.f32 %v1523, %v1556
    %v1565 = vmul.f32 %v1557, %v1557
    %v1566 = vmul.f32 %v1558, %v1558
    %v1567 = vmul.f32 %v1559, %v1559
    %v1568 = vmul.f32 %v1560, %v1560
    %v1569 = vmul.f32 %v1561, %v1561
    %v1570 = vmul.f32 %v1562, %v1562
    %v1571 = vmul.f32 %v1563, %v1563
    %v1572 = vmul.f32 %v1564, %v1564
    %v1573 = vsel %vm145, %v1565, 0.0
    %1574 = vadd.xlane.f32.xlu0 %v1573
    %v1575 = vpop.xlane.xlu0 %1574
    %v1576 = vsel %vm145, %v1566, 0.0
    %1577 = vadd.xlane.f32.xlu0 %v1576
    %v1578 = vpop.xlane.xlu0 %1577
    %v1579 = vsel %vm145, %v1567, 0.0
    %1580 = vadd.xlane.f32.xlu0 %v1579
    %v1581 = vpop.xlane.xlu0 %1580
    %v1582 = vsel %vm145, %v1568, 0.0
    %1583 = vadd.xlane.f32.xlu0 %v1582
    %v1584 = vpop.xlane.xlu0 %1583
    %v1585 = vsel %vm145, %v1569, 0.0
    %1586 = vadd.xlane.f32.xlu0 %v1585
    %v1587 = vpop.xlane.xlu0 %1586
    %v1588 = vsel %vm145, %v1570, 0.0
    %1589 = vadd.xlane.f32.xlu0 %v1588
    %v1590 = vpop.xlane.xlu0 %1589
    %v1591 = vsel %vm145, %v1571, 0.0
    %1592 = vadd.xlane.f32.xlu0 %v1591
    %v1593 = vpop.xlane.xlu0 %1592
    %v1594 = vsel %vm145, %v1572, 0.0
    %1595 = vadd.xlane.f32.xlu0 %v1594
    %v1596 = vpop.xlane.xlu0 %1595
    %v1597 = vmul.f32 %v1575, %v1548
    %v1598 = vmul.f32 %v1578, %v1548
    %v1599 = vmul.f32 %v1581, %v1548
    %v1600 = vmul.f32 %v1584, %v1548
    %v1601 = vmul.f32 %v1587, %v1548
    %v1602 = vmul.f32 %v1590, %v1548
    %v1603 = vmul.f32 %v1593, %v1548
    %v1604 = vmul.f32 %v1596, %v1548
    %v1605 = vadd.f32 %v1597, 1e-05
    %v1606 = vadd.f32 %v1598, 1e-05
    %v1607 = vadd.f32 %v1599, 1e-05
    %v1608 = vadd.f32 %v1600, 1e-05
    %v1609 = vadd.f32 %v1601, 1e-05
    %v1610 = vadd.f32 %v1602, 1e-05
    %v1611 = vadd.f32 %v1603, 1e-05
    %v1612 = vadd.f32 %v1604, 1e-05
    %v1613 = vrsqrt.pop %v1605
    %v1614 = vrsqrt.pop %v1606
    %v1615 = vrsqrt.pop %v1607
    %v1616 = vrsqrt.pop %v1608
    %v1617 = vrsqrt.pop %v1609
    %v1618 = vrsqrt.pop %v1610
    %v1619 = vrsqrt.pop %v1611
    %v1620 = vrsqrt.pop %v1612
    %v1621 = vmul.f32 %v1557, %v1613
    %v1622 = vmul.f32 %v1558, %v1614
    %v1623 = vmul.f32 %v1559, %v1615
    %v1624 = vmul.f32 %v1560, %v1616
    %v1625 = vmul.f32 %v1561, %v1617
    %v1626 = vmul.f32 %v1562, %v1618
    %v1627 = vmul.f32 %v1563, %v1619
    %v1628 = vmul.f32 %v1564, %v1620
    %v1630 = vlaneseq
    %v1631 = vshrl.u32 %v1630, 7
    %v1632 = vsub.s32 0, %v1631
    %v1633 = vrot.slane %v79, %v1632
    %v1635 = vmul.f32 %v1621, %v1633
    %v1636 = vmul.f32 %v1622, %v1633
    %v1637 = vmul.f32 %v1623, %v1633
    %v1638 = vmul.f32 %v1624, %v1633
    %v1639 = vmul.f32 %v1625, %v1633
    %v1640 = vmul.f32 %v1626, %v1633
    %v1641 = vmul.f32 %v1627, %v1633
    %v1642 = vmul.f32 %v1628, %v1633
    %v1644 = vlaneseq
    %v1645 = vshrl.u32 %v1644, 7
    %v1646 = vsub.s32 0, %v1645
    %v1647 = vrot.slane %v80, %v1646
    %v1649 = vadd.f32 %v1635, %v1647
    %v1650 = vadd.f32 %v1636, %v1647
    %v1651 = vadd.f32 %v1637, %v1647
    %v1652 = vadd.f32 %v1638, %v1647
    %v1653 = vadd.f32 %v1639, %v1647
    %v1654 = vadd.f32 %v1640, %v1647
    %v1655 = vadd.f32 %v1641, %v1647
    %v1656 = vadd.f32 %v1642, %v1647
    %v1657 = vpack.c.bf16 %v1650, %v1649
    %v1658 = vpack.c.bf16 %v1652, %v1651
    %v1659 = vpack.c.bf16 %v1654, %v1653
    %v1660 = vpack.c.bf16 %v1656, %v1655
    %v1662 = vlaneseq
    %v1663 = vshrl.u32 %v1662, 7
    %v1664 = vsub.s32 0, %v1663
    %v1665 = vrot.slane %v87, %v1664
    %v1671 = vunpack.c.l.b16 %v83
    %v1672 = vunpack.c.l.b16 %v84
    %v1673 = vunpack.c.l.b16 %v85
    %v1674 = vunpack.c.l.b16 %v86
    %v1675 = vpack.c.b16 %v1672, %v1671
    %v1676 = vpack.c.b16 %v1674, %v1673
    %v1680 = vsel %vm145, %v1657, 0
    %v1683 = vsel %vm145, %v1658, 0
    %v1686 = vsel %vm145, %v1659, 0
    %v1689 = vsel %vm145, %v1660, 0
    %1691 = vmatprep.subr.bf16.mxu0 0
    %1692 = vmatpush1.bf16.msra.mxu0 %v1675
    %1693 = vmatprep.subr.bf16.mxu0 0
    %1694 = vmatpush1.bf16.msra.mxu0 %v1676
    %1695 = vmatprep.subr.bf16.mxu0 0
    %1696 = vmatpush1.bf16.msra.mxu0 0
    %1697 = vmatprep.subr.bf16.mxu0 0
    %1698 = vmatpush1.bf16.msra.mxu0 0
    %1699 = vmatprep.subr.bf16.mxu0 0
    %1700 = vmatpush1.bf16.msra.mxu0 0
    %1701 = vmatprep.subr.bf16.mxu0 0
    %1702 = vmatpush1.bf16.msra.mxu0 0
    %1703 = vmatprep.subr.bf16.mxu0 0
    %1704 = vmatpush1.bf16.msra.mxu0 0
    %1705 = vmatprep.subr.bf16.mxu0 0
    %1706 = vmatpush1.bf16.msra.mxu0 0
    %1707 = vmatprep.subr.bf16.mxu0 0
    %1708 = vmatpush1.bf16.msra.mxu0 0
    %1709 = vmatprep.subr.bf16.mxu0 0
    %1710 = vmatpush1.bf16.msra.mxu0 0
    %1711 = vmatprep.subr.bf16.mxu0 0
    %1712 = vmatpush1.bf16.msra.mxu0 0
    %1713 = vmatprep.subr.bf16.mxu0 0
    %1714 = vmatpush1.bf16.msra.mxu0 0
    %1715 = vmatprep.subr.bf16.mxu0 0
    %1716 = vmatpush1.bf16.msra.mxu0 0
    %1717 = vmatprep.subr.bf16.mxu0 0
    %1718 = vmatpush1.bf16.msra.mxu0 0
    %1719 = vmatprep.subr.bf16.mxu0 0
    %1720 = vmatpush1.bf16.msra.mxu0 0
    %1721 = vmatprep.subr.bf16.mxu0 0
    %1722 = vmatpush1.bf16.msra.mxu0 0
    %1723 = vmatprep.mubr.bf16.mxu0 0
    %1724 = vmatmul.mubr.bf16.gmra.mrb[0].mxu0 %v1680
    %v1725 = vpop.f32.mrb[0].mxu0
    %v1726 = vadd.f32 %v1665, %v1725
    %v1727 = vpop.f32.mrb[0].mxu0
    %v1728 = vpop.f32.mrb[0].mxu0
    %v1729 = vadd.f32 %v1665, %v1728
    %v1730 = vpop.f32.mrb[0].mxu0
    %1731 = vmatprep.mubr.bf16.mxu0 0
    %1732 = vmatmul.mubr.bf16.gmra.mrb[0].mxu0 %v1683
    %v1733 = vpop.f32.mrb[0].mxu0
    %v1734 = vadd.f32 %v1665, %v1733
    %v1735 = vpop.f32.mrb[0].mxu0
    %v1736 = vpop.f32.mrb[0].mxu0
    %v1737 = vadd.f32 %v1665, %v1736
    %v1738 = vpop.f32.mrb[0].mxu0
    %1739 = vmatprep.mubr.bf16.mxu0 0
    %1740 = vmatmul.mubr.bf16.gmra.mrb[0].mxu0 %v1686
    %v1741 = vpop.f32.mrb[0].mxu0
    %v1742 = vadd.f32 %v1665, %v1741
    %v1743 = vpop.f32.mrb[0].mxu0
    %v1744 = vpop.f32.mrb[0].mxu0
    %v1745 = vadd.f32 %v1665, %v1744
    %v1746 = vpop.f32.mrb[0].mxu0
    %1747 = vmatprep.mubr.bf16.mxu0 0
    %1748 = vmatmul.mubr.bf16.gmra.mrb[0].mxu0 %v1689
    %v1749 = vpop.f32.mrb[0].mxu0
    %v1750 = vadd.f32 %v1665, %v1749
    %v1751 = vpop.f32.mrb[0].mxu0
    %v1752 = vpop.f32.mrb[0].mxu0
    %v1753 = vadd.f32 %v1665, %v1752
    %v1754 = vpop.f32.mrb[0].mxu0
    %1755 = vdwg.mxu0
    %v1756 = vxor.u32 %v1726, 2147483648
    %v1757 = vxor.u32 %v1729, 2147483648
    %v1758 = vxor.u32 %v1734, 2147483648
    %v1759 = vxor.u32 %v1737, 2147483648
    %v1760 = vxor.u32 %v1742, 2147483648
    %v1761 = vxor.u32 %v1745, 2147483648
    %v1762 = vxor.u32 %v1750, 2147483648
    %v1763 = vxor.u32 %v1753, 2147483648
    %v1764 = vmul.f32 %v1756, 1.442695
    %v1765 = vpow.pop %v1764
    %v1766 = vmul.f32 %v1757, 1.442695
    %v1767 = vpow.pop %v1766
    %v1768 = vmul.f32 %v1758, 1.442695
    %v1769 = vpow.pop %v1768
    %v1770 = vmul.f32 %v1759, 1.442695
    %v1771 = vpow.pop %v1770
    %v1772 = vmul.f32 %v1760, 1.442695
    %v1773 = vpow.pop %v1772
    %v1774 = vmul.f32 %v1761, 1.442695
    %v1775 = vpow.pop %v1774
    %v1776 = vmul.f32 %v1762, 1.442695
    %v1777 = vpow.pop %v1776
    %v1778 = vmul.f32 %v1763, 1.442695
    %v1779 = vpow.pop %v1778
    %v1780 = vadd.f32 %v1765, 1.0
    %v1781 = vadd.f32 %v1767, 1.0
    %v1782 = vadd.f32 %v1769, 1.0
    %v1783 = vadd.f32 %v1771, 1.0
    %v1784 = vadd.f32 %v1773, 1.0
    %v1785 = vadd.f32 %v1775, 1.0
    %v1786 = vadd.f32 %v1777, 1.0
    %v1787 = vadd.f32 %v1779, 1.0
    %v1788 = vrcp.pop %v1780
    %v1789 = vmul.f32 1.0, %v1788
    %v1790 = vrcp.pop %v1781
    %v1791 = vmul.f32 1.0, %v1790
    %v1792 = vrcp.pop %v1782
    %v1793 = vmul.f32 1.0, %v1792
    %v1794 = vrcp.pop %v1783
    %v1795 = vmul.f32 1.0, %v1794
    %v1796 = vrcp.pop %v1784
    %v1797 = vmul.f32 1.0, %v1796
    %v1798 = vrcp.pop %v1785
    %v1799 = vmul.f32 1.0, %v1798
    %v1800 = vrcp.pop %v1786
    %v1801 = vmul.f32 1.0, %v1800
    %v1802 = vrcp.pop %v1787
    %v1803 = vmul.f32 1.0, %v1802
    %1812 = vrot.lane.b32.xlu0 %v1726, 96
    %v1813 = vpop.permute.xlu0 %1812
    %1814 = vrot.lane.b32.xlu0 %v1729, 96
    %v1815 = vpop.permute.xlu0 %1814
    %1816 = vrot.lane.b32.xlu0 %v1734, 96
    %v1817 = vpop.permute.xlu0 %1816
    %1818 = vrot.lane.b32.xlu0 %v1737, 96
    %v1819 = vpop.permute.xlu0 %1818
    %1820 = vrot.lane.b32.xlu0 %v1742, 96
    %v1821 = vpop.permute.xlu0 %1820
    %1822 = vrot.lane.b32.xlu0 %v1745, 96
    %v1823 = vpop.permute.xlu0 %1822
    %1824 = vrot.lane.b32.xlu0 %v1750, 96
    %v1825 = vpop.permute.xlu0 %1824
    %1826 = vrot.lane.b32.xlu0 %v1753, 96
    %v1827 = vpop.permute.xlu0 %1826
    %v1836 = vmul.f32 %v1789, %v1813
    %v1837 = vmul.f32 %v1791, %v1815
    %v1838 = vmul.f32 %v1793, %v1817
    %v1839 = vmul.f32 %v1795, %v1819
    %v1840 = vmul.f32 %v1797, %v1821
    %v1841 = vmul.f32 %v1799, %v1823
    %v1842 = vmul.f32 %v1801, %v1825
    %v1843 = vmul.f32 %v1803, %v1827
    %v1844 = vsel %vm145, %v1836, 0.0
    %1845 = vadd.xlane.f32.xlu0 %v1844
    %v1846 = vpop.xlane.xlu0 %1845
    %v1847 = vsel %vm145, %v1837, 0.0
    %1848 = vadd.xlane.f32.xlu0 %v1847
    %v1849 = vpop.xlane.xlu0 %1848
    %v1850 = vsel %vm145, %v1838, 0.0
    %1851 = vadd.xlane.f32.xlu0 %v1850
    %v1852 = vpop.xlane.xlu0 %1851
    %v1853 = vsel %vm145, %v1839, 0.0
    %1854 = vadd.xlane.f32.xlu0 %v1853
    %v1855 = vpop.xlane.xlu0 %1854
    %v1856 = vsel %vm145, %v1840, 0.0
    %1857 = vadd.xlane.f32.xlu0 %v1856
    %v1858 = vpop.xlane.xlu0 %1857
    %v1859 = vsel %vm145, %v1841, 0.0
    %1860 = vadd.xlane.f32.xlu0 %v1859
    %v1861 = vpop.xlane.xlu0 %1860
    %v1862 = vsel %vm145, %v1842, 0.0
    %1863 = vadd.xlane.f32.xlu0 %v1862
    %v1864 = vpop.xlane.xlu0 %1863
    %v1865 = vsel %vm145, %v1843, 0.0
    %1866 = vadd.xlane.f32.xlu0 %v1865
    %v1867 = vpop.xlane.xlu0 %1866
    %v1868 = vmul.f32 %v1846, %v1548
    %v1869 = vmul.f32 %v1849, %v1548
    %v1870 = vmul.f32 %v1852, %v1548
    %v1871 = vmul.f32 %v1855, %v1548
    %v1872 = vmul.f32 %v1858, %v1548
    %v1873 = vmul.f32 %v1861, %v1548
    %v1874 = vmul.f32 %v1864, %v1548
    %v1875 = vmul.f32 %v1867, %v1548
    %v1876 = vsub.f32 %v1836, %v1868
    %v1877 = vsub.f32 %v1837, %v1869
    %v1878 = vsub.f32 %v1838, %v1870
    %v1879 = vsub.f32 %v1839, %v1871
    %v1880 = vsub.f32 %v1840, %v1872
    %v1881 = vsub.f32 %v1841, %v1873
    %v1882 = vsub.f32 %v1842, %v1874
    %v1883 = vsub.f32 %v1843, %v1875
    %v1884 = vmul.f32 %v1876, %v1876
    %v1885 = vmul.f32 %v1877, %v1877
    %v1886 = vmul.f32 %v1878, %v1878
    %v1887 = vmul.f32 %v1879, %v1879
    %v1888 = vmul.f32 %v1880, %v1880
    %v1889 = vmul.f32 %v1881, %v1881
    %v1890 = vmul.f32 %v1882, %v1882
    %v1891 = vmul.f32 %v1883, %v1883
    %v1892 = vsel %vm145, %v1884, 0.0
    %1893 = vadd.xlane.f32.xlu0 %v1892
    %v1894 = vpop.xlane.xlu0 %1893
    %v1895 = vsel %vm145, %v1885, 0.0
    %1896 = vadd.xlane.f32.xlu0 %v1895
    %v1897 = vpop.xlane.xlu0 %1896
    %v1898 = vsel %vm145, %v1886, 0.0
    %1899 = vadd.xlane.f32.xlu0 %v1898
    %v1900 = vpop.xlane.xlu0 %1899
    %v1901 = vsel %vm145, %v1887, 0.0
    %1902 = vadd.xlane.f32.xlu0 %v1901
    %v1903 = vpop.xlane.xlu0 %1902
    %v1904 = vsel %vm145, %v1888, 0.0
    %1905 = vadd.xlane.f32.xlu0 %v1904
    %v1906 = vpop.xlane.xlu0 %1905
    %v1907 = vsel %vm145, %v1889, 0.0
    %1908 = vadd.xlane.f32.xlu0 %v1907
    %v1909 = vpop.xlane.xlu0 %1908
    %v1910 = vsel %vm145, %v1890, 0.0
    %1911 = vadd.xlane.f32.xlu0 %v1910
    %v1912 = vpop.xlane.xlu0 %1911
    %v1913 = vsel %vm145, %v1891, 0.0
    %1914 = vadd.xlane.f32.xlu0 %v1913
    %v1915 = vpop.xlane.xlu0 %1914
    %v1916 = vmul.f32 %v1894, %v1548
    %v1917 = vmul.f32 %v1897, %v1548
    %v1918 = vmul.f32 %v1900, %v1548
    %v1919 = vmul.f32 %v1903, %v1548
    %v1920 = vmul.f32 %v1906, %v1548
    %v1921 = vmul.f32 %v1909, %v1548
    %v1922 = vmul.f32 %v1912, %v1548
    %v1923 = vmul.f32 %v1915, %v1548
    %v1924 = vadd.f32 %v1916, 1e-05
    %v1925 = vadd.f32 %v1917, 1e-05
    %v1926 = vadd.f32 %v1918, 1e-05
    %v1927 = vadd.f32 %v1919, 1e-05
    %v1928 = vadd.f32 %v1920, 1e-05
    %v1929 = vadd.f32 %v1921, 1e-05
    %v1930 = vadd.f32 %v1922, 1e-05
    %v1931 = vadd.f32 %v1923, 1e-05
    %v1932 = vrsqrt.pop %v1924
    %v1933 = vrsqrt.pop %v1925
    %v1934 = vrsqrt.pop %v1926
    %v1935 = vrsqrt.pop %v1927
    %v1936 = vrsqrt.pop %v1928
    %v1937 = vrsqrt.pop %v1929
    %v1938 = vrsqrt.pop %v1930
    %v1939 = vrsqrt.pop %v1931
    %v1940 = vmul.f32 %v1876, %v1932
    %v1941 = vmul.f32 %v1877, %v1933
    %v1942 = vmul.f32 %v1878, %v1934
    %v1943 = vmul.f32 %v1879, %v1935
    %v1944 = vmul.f32 %v1880, %v1936
    %v1945 = vmul.f32 %v1881, %v1937
    %v1946 = vmul.f32 %v1882, %v1938
    %v1947 = vmul.f32 %v1883, %v1939
    %v1949 = vlaneseq
    %v1950 = vshrl.u32 %v1949, 7
    %v1951 = vsub.s32 0, %v1950
    %v1952 = vrot.slane %v81, %v1951
    %v1954 = vmul.f32 %v1940, %v1952
    %v1955 = vmul.f32 %v1941, %v1952
    %v1956 = vmul.f32 %v1942, %v1952
    %v1957 = vmul.f32 %v1943, %v1952
    %v1958 = vmul.f32 %v1944, %v1952
    %v1959 = vmul.f32 %v1945, %v1952
    %v1960 = vmul.f32 %v1946, %v1952
    %v1961 = vmul.f32 %v1947, %v1952
    %v1963 = vlaneseq
    %v1964 = vshrl.u32 %v1963, 7
    %v1965 = vsub.s32 0, %v1964
    %v1966 = vrot.slane %v82, %v1965
    %v1968 = vadd.f32 %v1954, %v1966
    %v1969 = vadd.f32 %v1955, %v1966
    %v1970 = vadd.f32 %v1956, %v1966
    %v1971 = vadd.f32 %v1957, %v1966
    %v1972 = vadd.f32 %v1958, %v1966
    %v1973 = vadd.f32 %v1959, %v1966
    %v1974 = vadd.f32 %v1960, %v1966
    %v1975 = vadd.f32 %v1961, %v1966
    %v1976 = vadd.f32 %v123, %v1968
    %v1977 = vadd.f32 %v124, %v1969
    %v1978 = vadd.f32 %v125, %v1970
    %v1979 = vadd.f32 %v126, %v1971
    %v1980 = vadd.f32 %v127, %v1972
    %v1981 = vadd.f32 %v128, %v1973
    %v1982 = vadd.f32 %v129, %v1974
    %v1983 = vadd.f32 %v130, %v1975
    %1984 = vst.msk [vmem:[#allocation9] sm:$0xff] %vm145, %v1976
    %1985 = vst.msk [vmem:[#allocation9 + $0x8] sm:$0xff] %vm145, %v1977
    %1986 = vst.msk [vmem:[#allocation9 + $0x10] sm:$0xff] %vm145, %v1978
    %1987 = vst.msk [vmem:[#allocation9 + $0x18] sm:$0xff] %vm145, %v1979
    %1988 = vst.msk [vmem:[#allocation9 + $0x20] sm:$0xff] %vm145, %v1980
    %1989 = vst.msk [vmem:[#allocation9 + $0x28] sm:$0xff] %vm145, %v1981
    %1990 = vst.msk [vmem:[#allocation9 + $0x30] sm:$0xff] %vm145, %v1982
    %1991 = vst.msk [vmem:[#allocation9 + $0x38] sm:$0xff] %vm145, %v1983
    // Predicated region
    $region54: #{tpu_custom_call.1} parent=1 // pred_check
      _
    $region55: #{tpu_custom_call.1} parent=1 // pred_check_branch
      %1993 = sbr.rel (0) target = $region57
    $region56: #{tpu_custom_call.1} parent=1 // pred_region
      %s1995 = ssub.s32 1024, 1024
      %1996 = vsyncadd [#allocation4], %s1995
      %s1997 = sshll.u32 [#allocation9], 4
      %s1998 = int_to_ptr.vmem [resolvable:$true] %s1997
      %2003 = dma.vmem_to_hbm [thread:$0]  %s1998, 1024, %s10, [#allocation4], 128, 128, 8
    $region57: #{tpu_custom_call.1} parent=1 // pred_fallthru
      _
    // Predicated region
    $region58: #{tpu_custom_call.1} parent=1 // pred_check
      _
    $region59: #{tpu_custom_call.1} parent=1 // pred_check_branch
      %2005 = sbr.rel (0) target = $region61
    $region60: #{tpu_custom_call.1} parent=1 // pred_region
      %2006 = dma.done [#allocation4], 1024
    $region61: #{tpu_custom_call.1} parent=1 // pred_fallthru
      _
    %2007 = vsyncpa [#allocation3], 1
    %2008 = vsyncpa [#allocation8], 1
    %2009 = vsyncpa [#allocation4], 1
    %2010 = vsyncpa [#allocation5], 1

// kernel: tpu_custom_call.1
$region0: #{tpu_custom_call.1}
  #allocation0 [shape = 'u32[]', space=smem, size = 0x4, offset = 0x4, fixed_abs, tag = 'smem constant byte address 0x4 - core index']
  #allocation1 [shape = 'u32[144,128]{1,0:T(1,128)}', space=vmem, size = 0x12000, scoped, tag = 'internal scratch']
  %s0 = inlined_call_operand.hbm [shape: f32[2], index: 0, kind: input, shape index: {}]
  %s1 = inlined_call_operand.hbm [shape: f32[8,8,32], index: 1, kind: input, shape index: {}]
  %s2 = inlined_call_operand.hbm [shape: f32[8,8,32], index: 2, kind: input, shape index: {}]
  %s3 = inlined_call_operand.vmem [shape: f32[1,32], index: 3, kind: input, shape index: {}]
  %s4 = inlined_call_operand.vmem [shape: f32[1,32], index: 4, kind: input, shape index: {}]
  %s5 = inlined_call_operand.vmem [shape: f32[1,32], index: 5, kind: input, shape index: {}]
  %s6 = inlined_call_operand.vmem [shape: bf16[32,64], index: 6, kind: input, shape index: {}]
  %s7 = inlined_call_operand.vmem [shape: f32[1,64], index: 7, kind: input, shape index: {}]
  %s8 = inlined_call_operand.vmem [shape: f32[1,32], index: 8, kind: input, shape index: {}]
  %s9 = inlined_call_operand.vmem [shape: f32[1,32], index: 9, kind: input, shape index: {}]
  %s10 = inlined_call_operand.hbm [shape: f32[8,8,32], index: 10, kind: output, shape index: {}]
  %s11 = sld [smem:[#allocation0]]
  $region62: #{tpu_custom_call.1} parent=0
    _
  %s13 = ssub.s32 1, %s11
  %s14 = scalar_select 0, %s13, %s11
  $region1: #{tpu_custom_call.1} parent=0
    #allocation2 [shape = 'u8[512]{0}', space=smem, size = 0x200, scoped, tag = 'input window, operand 0, single buffered']
    #allocation3 [shape = 's32[1]{0}', space=sflag, size = 0x4, scoped, tag = 'scoped memory for tpu_custom_call.1']
    #allocation4 [shape = 's32[1]{0}', space=sflag, size = 0x4, scoped, tag = 'scoped memory for tpu_custom_call.1']
    #allocation5 [shape = 's32[1]{0}', space=sflag, size = 0x4, scoped, tag = 'scoped memory for tpu_custom_call.1']
    #allocation6 [shape = 'u8[32768]{0}', space=vmem, size = 0x8000, scoped, tag = 'input window, operand 1, single buffered']
    #allocation7 [shape = 'u8[32768]{0}', space=vmem, size = 0x8000, scoped, tag = 'input window, operand 2, single buffered']
    #allocation8 [shape = 's32[1]{0}', space=sflag, size = 0x4, scoped, tag = 'scoped memory for tpu_custom_call.1']
    #allocation9 [shape = 'u8[32768]{0}', space=vmem, size = 0x8000, scoped, tag = 'output window, operand 0, single buffered']
    %15 = vsyncpa [#allocation5], 0
    %16 = vsyncpa [#allocation3], 0
    %17 = vsyncpa [#allocation8], 0
    %18 = vsyncpa [#allocation4], 0
    // Predicated region
    $region2: #{tpu_custom_call.1} parent=1 // pred_check
      _
    $region3: #{tpu_custom_call.1} parent=1 // pred_check_branch
      %20 = sbr.rel (0) target = $region5
    $region4: #{tpu_custom_call.1} parent=1 // pred_region
      %s22 = ssub.s32 16, 16
      %23 = vsyncadd [#allocation5], %s22
      %26 = dma.hbm_to_smem %s0, 16, [#allocation2], [#allocation5]
    $region5: #{tpu_custom_call.1} parent=1 // pred_fallthru
      _
    // Predicated region
    $region6: #{tpu_custom_call.1} parent=1 // pred_check
      _
    $region7: #{tpu_custom_call.1} parent=1 // pred_check_branch
      %28 = sbr.rel (0) target = $region9
    $region8: #{tpu_custom_call.1} parent=1 // pred_region
      %s30 = ssub.s32 1024, 1024
      %31 = vsyncadd [#allocation3], %s30
      %s32 = sshll.u32 [#allocation6], 4
      %s33 = int_to_ptr.vmem [resolvable:$true] %s32
      %38 = dma.hbm_to_vmem [thread:$0]  %s1, 1024, %s33, [#allocation3], 128, 128, 8
    $region9: #{tpu_custom_call.1} parent=1 // pred_fallthru
      _
    // Predicated region
    $region10: #{tpu_custom_call.1} parent=1 // pred_check
      _
    $region11: #{tpu_custom_call.1} parent=1 // pred_check_branch
      %40 = sbr.rel (0) target = $region13
    $region12: #{tpu_custom_call.1} parent=1 // pred_region
      %s42 = ssub.s32 1024, 1024
      %43 = vsyncadd [#allocation8], %s42
      %s44 = sshll.u32 [#allocation7], 4
      %s45 = int_to_ptr.vmem [resolvable:$true] %s44
      %50 = dma.hbm_to_vmem [thread:$0]  %s2, 1024, %s45, [#allocation8], 128, 128, 8
    $region13: #{tpu_custom_call.1} parent=1 // pred_fallthru
      _
    // Predicated region
    $region14: #{tpu_custom_call.1} parent=1 // pred_check
      _
    $region15: #{tpu_custom_call.1} parent=1 // pred_check_branch
      %52 = sbr.rel (0) target = $region17
    $region16: #{tpu_custom_call.1} parent=1 // pred_region
      _
    $region17: #{tpu_custom_call.1} parent=1 // pred_fallthru
      _
    // Predicated region
    $region18: #{tpu_custom_call.1} parent=1 // pred_check
      _
    $region19: #{tpu_custom_call.1} parent=1 // pred_check_branch
      %54 = sbr.rel (0) target = $region21
    $region20: #{tpu_custom_call.1} parent=1 // pred_region
      _
    $region21: #{tpu_custom_call.1} parent=1 // pred_fallthru
      _
    // Predicated region
    $region22: #{tpu_custom_call.1} parent=1 // pred_check
      _
    $region23: #{tpu_custom_call.1} parent=1 // pred_check_branch
      %56 = sbr.rel (0) target = $region25
    $region24: #{tpu_custom_call.1} parent=1 // pred_region
      _
    $region25: #{tpu_custom_call.1} parent=1 // pred_fallthru
      _
    // Predicated region
    $region26: #{tpu_custom_call.1} parent=1 // pred_check
      _
    $region27: #{tpu_custom_call.1} parent=1 // pred_check_branch
      %58 = sbr.rel (0) target = $region29
    $region28: #{tpu_custom_call.1} parent=1 // pred_region
      _
    $region29: #{tpu_custom_call.1} parent=1 // pred_fallthru
      _
    // Predicated region
    $region30: #{tpu_custom_call.1} parent=1 // pred_check
      _
    $region31: #{tpu_custom_call.1} parent=1 // pred_check_branch
      %60 = sbr.rel (0) target = $region33
    $region32: #{tpu_custom_call.1} parent=1 // pred_region
      _
    $region33: #{tpu_custom_call.1} parent=1 // pred_fallthru
      _
    // Predicated region
    $region34: #{tpu_custom_call.1} parent=1 // pred_check
      _
    $region35: #{tpu_custom_call.1} parent=1 // pred_check_branch
      %62 = sbr.rel (0) target = $region37
    $region36: #{tpu_custom_call.1} parent=1 // pred_region
      _
    $region37: #{tpu_custom_call.1} parent=1 // pred_fallthru
      _
    // Predicated region
    $region38: #{tpu_custom_call.1} parent=1 // pred_check
      _
    $region39: #{tpu_custom_call.1} parent=1 // pred_check_branch
      %64 = sbr.rel (0) target = $region41
    $region40: #{tpu_custom_call.1} parent=1 // pred_region
      _
    $region41: #{tpu_custom_call.1} parent=1 // pred_fallthru
      _
    // Predicated region
    $region42: #{tpu_custom_call.1} parent=1 // pred_check
      _
    $region43: #{tpu_custom_call.1} parent=1 // pred_check_branch
      %66 = sbr.rel (0) target = $region45
    $region44: #{tpu_custom_call.1} parent=1 // pred_region
      %67 = dma.done [#allocation5], 16
    $region45: #{tpu_custom_call.1} parent=1 // pred_fallthru
      _
    // Predicated region
    $region46: #{tpu_custom_call.1} parent=1 // pred_check
      _
    $region47: #{tpu_custom_call.1} parent=1 // pred_check_branch
      %69 = sbr.rel (0) target = $region49
    $region48: #{tpu_custom_call.1} parent=1 // pred_region
      %70 = dma.done [#allocation3], 1024
    $region49: #{tpu_custom_call.1} parent=1 // pred_fallthru
      _
    // Predicated region
    $region50: #{tpu_custom_call.1} parent=1 // pred_check
      _
    $region51: #{tpu_custom_call.1} parent=1 // pred_check_branch
      %72 = sbr.rel (0) target = $region53
    $region52: #{tpu_custom_call.1} parent=1 // pred_region
      %73 = dma.done [#allocation8], 1024
    $region53: #{tpu_custom_call.1} parent=1 // pred_fallthru
      _
    %74 = sfence
    %s76 = sld [smem:[#allocation2]]
    %s77 = sld [smem:[#allocation2 + $0x1]]
    %v78 = vld [vmem:[%s3] sm:$0x1]
    %v79 = vld [vmem:[%s4] sm:$0x1]
    %v80 = vld [vmem:[%s5] sm:$0x1]
    %v81 = vld [vmem:[%s8] sm:$0x1]
    %v82 = vld [vmem:[%s9] sm:$0x1]
    %v83 = vld [vmem:[%s6] sm:$0xf]
    %v84 = vld [vmem:[%s6 + $0x4] sm:$0xf]
    %v85 = vld [vmem:[%s6 + $0x8] sm:$0xf]
    %v86 = vld [vmem:[%s6 + $0xc] sm:$0xf]
    %v87 = vld [vmem:[%s7] sm:$0x1]
    %v88 = vld [vmem:[#allocation6] sm:$0xff]
    %v89 = vld [vmem:[#allocation6 + $0x8] sm:$0xff]
    %v90 = vld [vmem:[#allocation6 + $0x10] sm:$0xff]
    %v91 = vld [vmem:[#allocation6 + $0x18] sm:$0xff]
    %v92 = vld [vmem:[#allocation6 + $0x20] sm:$0xff]
    %v93 = vld [vmem:[#allocation6 + $0x28] sm:$0xff]
    %v94 = vld [vmem:[#allocation6 + $0x30] sm:$0xff]
    %v95 = vld [vmem:[#allocation6 + $0x38] sm:$0xff]
    %v96 = vld [vmem:[#allocation7] sm:$0xff]
    %v97 = vld [vmem:[#allocation7 + $0x8] sm:$0xff]
    %v98 = vld [vmem:[#allocation7 + $0x10] sm:$0xff]
    %v99 = vld [vmem:[#allocation7 + $0x18] sm:$0xff]
    %v100 = vld [vmem:[#allocation7 + $0x20] sm:$0xff]
    %v101 = vld [vmem:[#allocation7 + $0x28] sm:$0xff]
    %v102 = vld [vmem:[#allocation7 + $0x30] sm:$0xff]
    %v103 = vld [vmem:[#allocation7 + $0x38] sm:$0xff]
    %v104 = vstv %s76
    %v105 = vmul.f32 %v104, %v88
    %v106 = vmul.f32 %v104, %v89
    %v107 = vmul.f32 %v104, %v90
    %v108 = vmul.f32 %v104, %v91
    %v109 = vmul.f32 %v104, %v92
    %v110 = vmul.f32 %v104, %v93
    %v111 = vmul.f32 %v104, %v94
    %v112 = vmul.f32 %v104, %v95
    %s113 = ssub.f32 1.0, %s76
    %v114 = vstv %s113
    %v115 = vmul.f32 %v114, %v96
    %v116 = vmul.f32 %v114, %v97
    %v117 = vmul.f32 %v114, %v98
    %v118 = vmul.f32 %v114, %v99
    %v119 = vmul.f32 %v114, %v100
    %v120 = vmul.f32 %v114, %v101
    %v121 = vmul.f32 %v114, %v102
    %v122 = vmul.f32 %v114, %v103
    %v123 = vadd.f32 %v105, %v115
    %v124 = vadd.f32 %v106, %v116
    %v125 = vadd.f32 %v107, %v117
    %v126 = vadd.f32 %v108, %v118
    %v127 = vadd.f32 %v109, %v119
    %v128 = vadd.f32 %v110, %v120
    %v129 = vadd.f32 %v111, %v121
    %v130 = vadd.f32 %v112, %v122
    %v132 = vlaneseq
    %v133 = vshrl.u32 %v132, 7
    %v134 = vsub.s32 0, %v133
    %v135 = vrot.slane %v78, %v134
    %v137 = vmul.f32 %v123, %v135
    %v138 = vmul.f32 %v124, %v135
    %v139 = vmul.f32 %v125, %v135
    %v140 = vmul.f32 %v126, %v135
    %v141 = vmul.f32 %v127, %v135
    %v142 = vmul.f32 %v128, %v135
    %v143 = vmul.f32 %v129, %v135
    %v144 = vmul.f32 %v130, %v135
    %vm145 = vcmask 261120
    %v146 = vsel %vm145, %v137, 0.0
    %147 = vadd.xlane.f32.xlu0 %v146
    %v148 = vpop.xlane.xlu0 %147
    %v149 = vsel %vm145, %v138, 0.0
    %150 = vadd.xlane.f32.xlu0 %v149
    %v151 = vpop.xlane.xlu0 %150
    %v152 = vsel %vm145, %v139, 0.0
    %153 = vadd.xlane.f32.xlu0 %v152
    %v154 = vpop.xlane.xlu0 %153
    %v155 = vsel %vm145, %v140, 0.0
    %156 = vadd.xlane.f32.xlu0 %v155
    %v157 = vpop.xlane.xlu0 %156
    %v158 = vsel %vm145, %v141, 0.0
    %159 = vadd.xlane.f32.xlu0 %v158
    %v160 = vpop.xlane.xlu0 %159
    %v161 = vsel %vm145, %v142, 0.0
    %162 = vadd.xlane.f32.xlu0 %v161
    %v163 = vpop.xlane.xlu0 %162
    %v164 = vsel %vm145, %v143, 0.0
    %165 = vadd.xlane.f32.xlu0 %v164
    %v166 = vpop.xlane.xlu0 %165
    %v167 = vsel %vm145, %v144, 0.0
    %168 = vadd.xlane.f32.xlu0 %v167
    %v169 = vpop.xlane.xlu0 %168
    %v170 = vstv %s77
    %v171 = vadd.f32 %v148, %v170
    %v172 = vadd.f32 %v151, %v170
    %v173 = vadd.f32 %v154, %v170
    %v174 = vadd.f32 %v157, %v170
    %v175 = vadd.f32 %v160, %v170
    %v176 = vadd.f32 %v163, %v170
    %v177 = vadd.f32 %v166, %v170
    %v178 = vadd.f32 %v169, %v170
    %v179 = vmin.f32 %v171, 0.0
    %v180 = vmin.f32 %v172, 0.0
    %v181 = vmin.f32 %v173, 0.0
    %v182 = vmin.f32 %v174, 0.0
    %v183 = vmin.f32 %v175, 0.0
    %v184 = vmin.f32 %v176, 0.0
    %v185 = vmin.f32 %v177, 0.0
    %v186 = vmin.f32 %v178, 0.0
    %v187 = vand.u32 2147483647, %v171
    %v188 = vand.u32 2147483647, %v172
    %v189 = vand.u32 2147483647, %v173
    %v190 = vand.u32 2147483647, %v174
    %v191 = vand.u32 2147483647, %v175
    %v192 = vand.u32 2147483647, %v176
    %v193 = vand.u32 2147483647, %v177
    %v194 = vand.u32 2147483647, %v178
    %v195 = vsub.f32 0.0, %v187
    %v196 = vsub.f32 0.0, %v188
    %v197 = vsub.f32 0.0, %v189
    %v198 = vsub.f32 0.0, %v190
    %v199 = vsub.f32 0.0, %v191
    %v200 = vsub.f32 0.0, %v192
    %v201 = vsub.f32 0.0, %v193
    %v202 = vsub.f32 0.0, %v194
    %v203 = vmul.f32 %v195, 1.442695
    %v204 = vpow.pop %v203
    %v205 = vmul.f32 %v196, 1.442695
    %v206 = vpow.pop %v205
    %v207 = vmul.f32 %v197, 1.442695
    %v208 = vpow.pop %v207
    %v209 = vmul.f32 %v198, 1.442695
    %v210 = vpow.pop %v209
    %v211 = vmul.f32 %v199, 1.442695
    %v212 = vpow.pop %v211
    %v213 = vmul.f32 %v200, 1.442695
    %v214 = vpow.pop %v213
    %v215 = vmul.f32 %v201, 1.442695
    %v216 = vpow.pop %v215
    %v217 = vmul.f32 %v202, 1.442695
    %v218 = vpow.pop %v217
    %v219 = vadd.f32 %v204, 1.0
    %v220 = vadd.f32 %v206, 1.0
    %v221 = vadd.f32 %v208, 1.0
    %v222 = vadd.f32 %v210, 1.0
    %v223 = vadd.f32 %v212, 1.0
    %v224 = vadd.f32 %v214, 1.0
    %v225 = vadd.f32 %v216, 1.0
    %v226 = vadd.f32 %v218, 1.0
    %v227 = vlog2.pop %v219
    %v228 = vmul.f32 %v227, 0.6931472
    %v229 = vlog2.pop %v220
    %v230 = vmul.f32 %v229, 0.6931472
    %v231 = vlog2.pop %v221
    %v232 = vmul.f32 %v231, 0.6931472
    %v233 = vlog2.pop %v222
    %v234 = vmul.f32 %v233, 0.6931472
    %v235 = vlog2.pop %v223
    %v236 = vmul.f32 %v235, 0.6931472
    %v237 = vlog2.pop %v224
    %v238 = vmul.f32 %v237, 0.6931472
    %v239 = vlog2.pop %v225
    %v240 = vmul.f32 %v239, 0.6931472
    %v241 = vlog2.pop %v226
    %v242 = vmul.f32 %v241, 0.6931472
    %v243 = vsub.f32 %v179, %v228
    %v244 = vsub.f32 %v180, %v230
    %v245 = vsub.f32 %v181, %v232
    %v246 = vsub.f32 %v182, %v234
    %v247 = vsub.f32 %v183, %v236
    %v248 = vsub.f32 %v184, %v238
    %v249 = vsub.f32 %v185, %v240
    %v250 = vsub.f32 %v186, %v242
    %v251 = vmax.f32 %v243, -60.0
    %v252 = vmax.f32 %v244, -60.0
    %v253 = vmax.f32 %v245, -60.0
    %v254 = vmax.f32 %v246, -60.0
    %v255 = vmax.f32 %v247, -60.0
    %v256 = vmax.f32 %v248, -60.0
    %v257 = vmax.f32 %v249, -60.0
    %v258 = vmax.f32 %v250, -60.0
    %v259 = vmul.f32 %v123, 1.442695
    %v260 = vpow.pop %v259
    %v261 = vmul.f32 %v124, 1.442695
    %v262 = vpow.pop %v261
    %v263 = vmul.f32 %v125, 1.442695
    %v264 = vpow.pop %v263
    %v265 = vmul.f32 %v126, 1.442695
    %v266 = vpow.pop %v265
    %v267 = vmul.f32 %v127, 1.442695
    %v268 = vpow.pop %v267
    %v269 = vmul.f32 %v128, 1.442695
    %v270 = vpow.pop %v269
    %v271 = vmul.f32 %v129, 1.442695
    %v272 = vpow.pop %v271
    %v273 = vmul.f32 %v130, 1.442695
    %v274 = vpow.pop %v273
    %v275 = vsel %vm145, %v260, 0.0
    %276 = vadd.xlane.f32.xlu0 %v275
    %v277 = vpop.xlane.xlu0 %276
    %v278 = vsel %vm145, %v262, 0.0
    %279 = vadd.xlane.f32.xlu0 %v278
    %v280 = vpop.xlane.xlu0 %279
    %v281 = vsel %vm145, %v264, 0.0
    %282 = vadd.xlane.f32.xlu0 %v281
    %v283 = vpop.xlane.xlu0 %282
    %v284 = vsel %vm145, %v266, 0.0
    %285 = vadd.xlane.f32.xlu0 %v284
    %v286 = vpop.xlane.xlu0 %285
    %v287 = vsel %vm145, %v268, 0.0
    %288 = vadd.xlane.f32.xlu0 %v287
    %v289 = vpop.xlane.xlu0 %288
    %v290 = vsel %vm145, %v270, 0.0
    %291 = vadd.xlane.f32.xlu0 %v290
    %v292 = vpop.xlane.xlu0 %291
    %v293 = vsel %vm145, %v272, 0.0
    %294 = vadd.xlane.f32.xlu0 %v293
    %v295 = vpop.xlane.xlu0 %294
    %v296 = vsel %vm145, %v274, 0.0
    %297 = vadd.xlane.f32.xlu0 %v296
    %v298 = vpop.xlane.xlu0 %297
    %v299 = vmul.f32 %v260, %v123
    %v300 = vmul.f32 %v262, %v124
    %v301 = vmul.f32 %v264, %v125
    %v302 = vmul.f32 %v266, %v126
    %v303 = vmul.f32 %v268, %v127
    %v304 = vmul.f32 %v270, %v128
    %v305 = vmul.f32 %v272, %v129
    %v306 = vmul.f32 %v274, %v130
    %v307 = vlaneseq
    %v308 = vshrl.u32 %v307, 7
    %v309 = vlaneseq
    %v310 = vand.u32 %v309, 127
    %vm311 = vcmp.le.s32.totalorder %v308, %v310
    %v312 = vsel %vm311, 1, 0
    %v313 = vcvt.s32.f32 %v312
    %v322 = vlaneseq
    %v323 = vshrl.u32 %v322, 7
    %v324 = vsub.s32 %v310, %v323
    %v325 = vrot.slane %v251, %v324
    %v326 = vlaneseq
    %v327 = vshrl.u32 %v326, 7
    %v328 = vsub.s32 %v310, %v327
    %v329 = vrot.slane %v252, %v328
    %v330 = vlaneseq
    %v331 = vshrl.u32 %v330, 7
    %v332 = vsub.s32 %v310, %v331
    %v333 = vrot.slane %v253, %v332
    %v334 = vlaneseq
    %v335 = vshrl.u32 %v334, 7
    %v336 = vsub.s32 %v310, %v335
    %v337 = vrot.slane %v254, %v336
    %v338 = vlaneseq
    %v339 = vshrl.u32 %v338, 7
    %v340 = vsub.s32 %v310, %v339
    %v341 = vrot.slane %v255, %v340
    %v342 = vlaneseq
    %v343 = vshrl.u32 %v342, 7
    %v344 = vsub.s32 %v310, %v343
    %v345 = vrot.slane %v256, %v344
    %v346 = vlaneseq
    %v347 = vshrl.u32 %v346, 7
    %v348 = vsub.s32 %v310, %v347
    %v349 = vrot.slane %v257, %v348
    %v350 = vlaneseq
    %v351 = vshrl.u32 %v350, 7
    %v352 = vsub.s32 %v310, %v351
    %v353 = vrot.slane %v258, %v352
    %vm354 = vcmask 1041409
    %v355 = vsel %vm354, %v329, %v325
    %vm356 = vcmask 1042434
    %v357 = vsel %vm356, %v333, %v355
    %vm358 = vcmask 1043459
    %v359 = vsel %vm358, %v337, %v357
    %vm360 = vcmask 1044484
    %v361 = vsel %vm360, %v341, %v359
    %vm362 = vcmask 1045509
    %v363 = vsel %vm362, %v345, %v361
    %vm364 = vcmask 1046534
    %v365 = vsel %vm364, %v349, %v363
    %vm366 = vcmask 1047559
    %v367 = vsel %vm366, %v353, %v365
    %vm368 = vcmask 64512
    %v369 = vsel %vm368, %v367, 0
    %371 = vmatprep.subr.mxu0 0.0
    %372 = vmatpush1.msra.mxu0 %v313
    %373 = vmatprep.subr.mxu0 0.0
    %374 = vmatpush1.msra.mxu0 0.0
    %375 = vmatprep.subr.mxu0 0.0
    %376 = vmatpush1.msra.mxu0 0.0
    %377 = vmatprep.subr.mxu0 0.0
    %378 = vmatpush1.msra.mxu0 0.0
    %379 = vmatprep.subr.mxu0 0.0
    %380 = vmatpush1.msra.mxu0 0.0
    %381 = vmatprep.subr.mxu0 0.0
    %382 = vmatpush1.msra.mxu0 0.0
    %383 = vmatprep.subr.mxu0 0.0
    %384 = vmatpush1.msra.mxu0 0.0
    %385 = vmatprep.subr.mxu0 0.0
    %386 = vmatpush1.msra.mxu0 0.0
    %387 = vmatprep.subr.mxu0 0.0
    %388 = vmatpush1.msra.mxu0 0.0
    %389 = vmatprep.subr.mxu0 0.0
    %390 = vmatpush1.msra.mxu0 0.0
    %391 = vmatprep.subr.mxu0 0.0
    %392 = vmatpush1.msra.mxu0 0.0
    %393 = vmatprep.subr.mxu0 0.0
    %394 = vmatpush1.msra.mxu0 0.0
    %395 = vmatprep.subr.mxu0 0.0
    %396 = vmatpush1.msra.mxu0 0.0
    %397 = vmatprep.subr.mxu0 0.0
    %398 = vmatpush1.msra.mxu0 0.0
    %399 = vmatprep.subr.mxu0 0.0
    %400 = vmatpush1.msra.mxu0 0.0
    %401 = vmatprep.subr.mxu0 0.0
    %402 = vmatpush1.msra.mxu0 0.0
    %403 = vmatprep.subr.mxu0 0.0
    %404 = vmatpush1.msra.mxu0 0.0
    %405 = vmatprep.subr.mxu0 0.0
    %406 = vmatpush1.msra.mxu0 0.0
    %407 = vmatprep.subr.mxu0 0.0
    %408 = vmatpush1.msra.mxu0 0.0
    %409 = vmatprep.subr.mxu0 0.0
    %410 = vmatpush1.msra.mxu0 0.0
    %411 = vmatprep.subr.mxu0 0.0
    %412 = vmatpush1.msra.mxu0 0.0
    %413 = vmatprep.subr.mxu0 0.0
    %414 = vmatpush1.msra.mxu0 0.0
    %415 = vmatprep.subr.mxu0 0.0
    %416 = vmatpush1.msra.mxu0 0.0
    %417 = vmatprep.subr.mxu0 0.0
    %418 = vmatpush1.msra.mxu0 0.0
    %419 = vmatprep.subr.mxu0 0.0
    %420 = vmatpush1.msra.mxu0 0.0
    %421 = vmatprep.subr.mxu0 0.0
    %422 = vmatpush1.msra.mxu0 0.0
    %423 = vmatprep.subr.mxu0 0.0
    %424 = vmatpush1.msra.mxu0 0.0
    %425 = vmatprep.subr.mxu0 0.0
    %426 = vmatpush1.msra.mxu0 0.0
    %427 = vmatprep.subr.mxu0 0.0
    %428 = vmatpush1.msra.mxu0 0.0
    %429 = vmatprep.subr.mxu0 0.0
    %430 = vmatpush1.msra.mxu0 0.0
    %431 = vmatprep.subr.mxu0 0.0
    %432 = vmatpush1.msra.mxu0 0.0
    %433 = vmatprep.subr.mxu0 0.0
    %434 = vmatpush1.msra.mxu0 0.0
    %435 = vmatprep.mubr.f32.mxu0 0.0
    %436 = vmatmul.mubr.f32.gmra.mrb[0].mxu0 %v369
    %v437 = vpop.f32.mrb[0].mxu0
    %v438 = vadd.f32 0.0, %v437
    %v439 = vpop.f32.mrb[0].mxu0
    %440 = vdwg.mxu0
    %v441 = vmul.f32 %v438, 1.442695
    %v442 = vpow.pop %v441
    %v443 = vlaneseq
    %v444 = vshrl.u32 %v443, 7
    %v445 = vsub.s32 0, %v444
    %v446 = vrot.slane %v438, %v445
    %448 = vbcast.lane.b32.xlu0 %v446, 256
    %v449 = vpop.permute.xlu0 %448
    %v450 = vlaneseq
    %v451 = vshrl.u32 %v450, 7
    %v452 = vsub.s32 1, %v451
    %v453 = vrot.slane %v438, %v452
    %455 = vbcast.lane.b32.xlu0 %v453, 256
    %v456 = vpop.permute.xlu0 %455
    %v457 = vlaneseq
    %v458 = vshrl.u32 %v457, 7
    %v459 = vsub.s32 2, %v458
    %v460 = vrot.slane %v438, %v459
    %462 = vbcast.lane.b32.xlu0 %v460, 256
    %v463 = vpop.permute.xlu0 %462
    %v464 = vlaneseq
    %v465 = vshrl.u32 %v464, 7
    %v466 = vsub.s32 3, %v465
    %v467 = vrot.slane %v438, %v466
    %469 = vbcast.lane.b32.xlu0 %v467, 256
    %v470 = vpop.permute.xlu0 %469
    %v471 = vlaneseq
    %v472 = vshrl.u32 %v471, 7
    %v473 = vsub.s32 4, %v472
    %v474 = vrot.slane %v438, %v473
    %476 = vbcast.lane.b32.xlu0 %v474, 256
    %v477 = vpop.permute.xlu0 %476
    %v478 = vlaneseq
    %v479 = vshrl.u32 %v478, 7
    %v480 = vsub.s32 5, %v479
    %v481 = vrot.slane %v438, %v480
    %483 = vbcast.lane.b32.xlu0 %v481, 256
    %v484 = vpop.permute.xlu0 %483
    %v485 = vlaneseq
    %v486 = vshrl.u32 %v485, 7
    %v487 = vsub.s32 6, %v486
    %v488 = vrot.slane %v438, %v487
    %490 = vbcast.lane.b32.xlu0 %v488, 256
    %v491 = vpop.permute.xlu0 %490
    %v492 = vlaneseq
    %v493 = vshrl.u32 %v492, 7
    %v494 = vsub.s32 7, %v493
    %v495 = vrot.slane %v438, %v494
    %497 = vbcast.lane.b32.xlu0 %v495, 256
    %v498 = vpop.permute.xlu0 %497
    %v500 = vcombine.high %v438, %v438
    %v502 = vunpack.c.l.s4 1966171168
    %v503 = vunpack.c.0.s8 %v502
    %v504 = vlaneseq
    %v505 = vshrl.u32 %v504, 7
    %v506 = vsub.s32 %v503, %v505
    %v507 = vrot.slane %v438, %v506
    %v509 = vunpack.c.l.s4 1966171168
    %v510 = vunpack.c.0.s8 %v509
    %v511 = vlaneseq
    %v512 = vshrl.u32 %v511, 7
    %v513 = vsub.s32 %v510, %v512
    %v514 = vrot.slane %v500, %v513
    %v515 = vcombine.high %v507, %v507
    %v516 = vcombine.high %v514, %v514
    %v518 = vunpack.c.l.s4 1966171168
    %v519 = vunpack.c.0.s8 %v518
    %v520 = vlaneseq
    %v521 = vshrl.u32 %v520, 7
    %v522 = vsub.s32 %v519, %v521
    %v523 = vrot.slane %v507, %v522
    %v525 = vunpack.c.l.s4 1966171168
    %v526 = vunpack.c.0.s8 %v525
    %v527 = vlaneseq
    %v528 = vshrl.u32 %v527, 7
    %v529 = vsub.s32 %v526, %v528
    %v530 = vrot.slane %v514, %v529
    %v532 = vunpack.c.l.s4 1966171168
    %v533 = vunpack.c.0.s8 %v532
    %v534 = vlaneseq
    %v535 = vshrl.u32 %v534, 7
    %v536 = vsub.s32 %v533, %v535
    %v537 = vrot.slane %v515, %v536
    %v539 = vunpack.c.l.s4 1966171168
    %v540 = vunpack.c.0.s8 %v539
    %v541 = vlaneseq
    %v542 = vshrl.u32 %v541, 7
    %v543 = vsub.s32 %v540, %v542
    %v544 = vrot.slane %v516, %v543
    %v545 = vcombine.high %v523, %v523
    %v546 = vcombine.high %v530, %v530
    %v547 = vcombine.high %v537, %v537
    %v548 = vcombine.high %v544, %v544
    %v549 = vlaneseq
    %v550 = vshrl.u32 %v549, 7
    %v551 = vsub.s32 0, %v550
    %v552 = vrot.slane %v523, %v551
    %v553 = vlaneseq
    %v554 = vshrl.u32 %v553, 7
    %v555 = vsub.s32 0, %v554
    %v556 = vrot.slane %v537, %v555
    %v557 = vlaneseq
    %v558 = vshrl.u32 %v557, 7
    %v559 = vsub.s32 0, %v558
    %v560 = vrot.slane %v545, %v559
    %v561 = vlaneseq
    %v562 = vshrl.u32 %v561, 7
    %v563 = vsub.s32 0, %v562
    %v564 = vrot.slane %v547, %v563
    %v565 = vlaneseq
    %v566 = vshrl.u32 %v565, 7
    %v567 = vsub.s32 0, %v566
    %v568 = vrot.slane %v530, %v567
    %v569 = vlaneseq
    %v570 = vshrl.u32 %v569, 7
    %v571 = vsub.s32 0, %v570
    %v572 = vrot.slane %v544, %v571
    %v573 = vlaneseq
    %v574 = vshrl.u32 %v573, 7
    %v575 = vsub.s32 0, %v574
    %v576 = vrot.slane %v546, %v575
    %v577 = vlaneseq
    %v578 = vshrl.u32 %v577, 7
    %v579 = vsub.s32 0, %v578
    %v580 = vrot.slane %v548, %v579
    %v589 = vsub.f32 %v449, %v552
    %v590 = vsub.f32 %v456, %v556
    %v591 = vsub.f32 %v463, %v560
    %v592 = vsub.f32 %v470, %v564
    %v593 = vsub.f32 %v477, %v568
    %v594 = vsub.f32 %v484, %v572
    %v595 = vsub.f32 %v491, %v576
    %v596 = vsub.f32 %v498, %v580
    %vm597 = vcmp.ge.s32.totalorder %v308, %v310
    %v598 = vsel %vm597, 1, 0
    %vm599 = vcmp.eq.s32.totalorder %v598, 1
    %v600 = vsel %vm599, %v589, -1e+30
    %v601 = vsel %vm599, %v590, -1e+30
    %v602 = vsel %vm599, %v591, -1e+30
    %v603 = vsel %vm599, %v592, -1e+30
    %v604 = vsel %vm599, %v593, -1e+30
    %v605 = vsel %vm599, %v594, -1e+30
    %v606 = vsel %vm599, %v595, -1e+30
    %v607 = vsel %vm599, %v596, -1e+30
    %v608 = vmul.f32 %v600, 1.442695
    %v609 = vpow.pop %v608
    %v610 = vmul.f32 %v601, 1.442695
    %v611 = vpow.pop %v610
    %v612 = vmul.f32 %v602, 1.442695
    %v613 = vpow.pop %v612
    %v614 = vmul.f32 %v603, 1.442695
    %v615 = vpow.pop %v614
    %v616 = vmul.f32 %v604, 1.442695
    %v617 = vpow.pop %v616
    %v618 = vmul.f32 %v605, 1.442695
    %v619 = vpow.pop %v618
    %v620 = vmul.f32 %v606, 1.442695
    %v621 = vpow.pop %v620
    %v622 = vmul.f32 %v607, 1.442695
    %v623 = vpow.pop %v622
    %v624 = vmul.f32 %v442, 0.0
    %v633 = vlaneseq
    %v634 = vshrl.u32 %v633, 7
    %v635 = vsub.s32 %v310, %v634
    %v636 = vrot.slane %v277, %v635
    %v637 = vlaneseq
    %v638 = vshrl.u32 %v637, 7
    %v639 = vsub.s32 %v310, %v638
    %v640 = vrot.slane %v280, %v639
    %v641 = vlaneseq
    %v642 = vshrl.u32 %v641, 7
    %v643 = vsub.s32 %v310, %v642
    %v644 = vrot.slane %v283, %v643
    %v645 = vlaneseq
    %v646 = vshrl.u32 %v645, 7
    %v647 = vsub.s32 %v310, %v646
    %v648 = vrot.slane %v286, %v647
    %v649 = vlaneseq
    %v650 = vshrl.u32 %v649, 7
    %v651 = vsub.s32 %v310, %v650
    %v652 = vrot.slane %v289, %v651
    %v653 = vlaneseq
    %v654 = vshrl.u32 %v653, 7
    %v655 = vsub.s32 %v310, %v654
    %v656 = vrot.slane %v292, %v655
    %v657 = vlaneseq
    %v658 = vshrl.u32 %v657, 7
    %v659 = vsub.s32 %v310, %v658
    %v660 = vrot.slane %v295, %v659
    %v661 = vlaneseq
    %v662 = vshrl.u32 %v661, 7
    %v663 = vsub.s32 %v310, %v662
    %v664 = vrot.slane %v298, %v663
    %v665 = vsel %vm356, %v636, %v636
    %v666 = vsel %vm358, %v636, %v665
    %v667 = vsel %vm360, %v636, %v666
    %v668 = vsel %vm362, %v636, %v667
    %v669 = vsel %vm364, %v636, %v668
    %v670 = vsel %vm366, %v636, %v669
    %v671 = vsel %vm356, %v640, %v640
    %v672 = vsel %vm358, %v640, %v671
    %v673 = vsel %vm360, %v640, %v672
    %v674 = vsel %vm362, %v640, %v673
    %v675 = vsel %vm364, %v640, %v674
    %v676 = vsel %vm366, %v640, %v675
    %v677 = vsel %vm356, %v644, %v644
    %v678 = vsel %vm358, %v644, %v677
    %v679 = vsel %vm360, %v644, %v678
    %v680 = vsel %vm362, %v644, %v679
    %v681 = vsel %vm364, %v644, %v680
    %v682 = vsel %vm366, %v644, %v681
    %v683 = vsel %vm356, %v648, %v648
    %v684 = vsel %vm358, %v648, %v683
    %v685 = vsel %vm360, %v648, %v684
    %v686 = vsel %vm362, %v648, %v685
    %v687 = vsel %vm364, %v648, %v686
    %v688 = vsel %vm366, %v648, %v687
    %v689 = vsel %vm356, %v652, %v652
    %v690 = vsel %vm358, %v652, %v689
    %v691 = vsel %vm360, %v652, %v690
    %v692 = vsel %vm362, %v652, %v691
    %v693 = vsel %vm364, %v652, %v692
    %v694 = vsel %vm366, %v652, %v693
    %v695 = vsel %vm356, %v656, %v656
    %v696 = vsel %vm358, %v656, %v695
    %v697 = vsel %vm360, %v656, %v696
    %v698 = vsel %vm362, %v656, %v697
    %v699 = vsel %vm364, %v656, %v698
    %v700 = vsel %vm366, %v656, %v699
    %v701 = vsel %vm356, %v660, %v660
    %v702 = vsel %vm358, %v660, %v701
    %v703 = vsel %vm360, %v660, %v702
    %v704 = vsel %vm362, %v660, %v703
    %v705 = vsel %vm364, %v660, %v704
    %v706 = vsel %vm366, %v660, %v705
    %v707 = vsel %vm356, %v664, %v664
    %v708 = vsel %vm358, %v664, %v707
    %v709 = vsel %vm360, %v664, %v708
    %v710 = vsel %vm362, %v664, %v709
    %v711 = vsel %vm364, %v664, %v710
    %v712 = vsel %vm366, %v664, %v711
    %v721 = vmul.f32 %v609, %v670
    %v722 = vmul.f32 %v611, %v676
    %v723 = vmul.f32 %v613, %v682
    %v724 = vmul.f32 %v615, %v688
    %v725 = vmul.f32 %v617, %v694
    %v726 = vmul.f32 %v619, %v700
    %v727 = vmul.f32 %v621, %v706
    %v728 = vmul.f32 %v623, %v712
    %v729 = vsel %vm368, %v721, 0.0
    %730 = vadd.xlane.f32.xlu0 %v729
    %v731 = vpop.xlane.xlu0 %730
    %v732 = vsel %vm368, %v722, 0.0
    %733 = vadd.xlane.f32.xlu0 %v732
    %v734 = vpop.xlane.xlu0 %733
    %v735 = vsel %vm368, %v723, 0.0
    %736 = vadd.xlane.f32.xlu0 %v735
    %v737 = vpop.xlane.xlu0 %736
    %v738 = vsel %vm368, %v724, 0.0
    %739 = vadd.xlane.f32.xlu0 %v738
    %v740 = vpop.xlane.xlu0 %739
    %v741 = vsel %vm368, %v725, 0.0
    %742 = vadd.xlane.f32.xlu0 %v741
    %v743 = vpop.xlane.xlu0 %742
    %v744 = vsel %vm368, %v726, 0.0
    %745 = vadd.xlane.f32.xlu0 %v744
    %v746 = vpop.xlane.xlu0 %745
    %v747 = vsel %vm368, %v727, 0.0
    %748 = vadd.xlane.f32.xlu0 %v747
    %v749 = vpop.xlane.xlu0 %748
    %v750 = vsel %vm368, %v728, 0.0
    %751 = vadd.xlane.f32.xlu0 %v750
    %v752 = vpop.xlane.xlu0 %751
    %v761 = vlaneseq
    %v762 = vshrl.u32 %v761, 7
    %v763 = vsub.s32 %v310, %v762
    %v764 = vrot.slane %v731, %v763
    %v765 = vlaneseq
    %v766 = vshrl.u32 %v765, 7
    %v767 = vsub.s32 %v310, %v766
    %v768 = vrot.slane %v734, %v767
    %v769 = vlaneseq
    %v770 = vshrl.u32 %v769, 7
    %v771 = vsub.s32 %v310, %v770
    %v772 = vrot.slane %v737, %v771
    %v773 = vlaneseq
    %v774 = vshrl.u32 %v773, 7
    %v775 = vsub.s32 %v310, %v774
    %v776 = vrot.slane %v740, %v775
    %v777 = vlaneseq
    %v778 = vshrl.u32 %v777, 7
    %v779 = vsub.s32 %v310, %v778
    %v780 = vrot.slane %v743, %v779
    %v781 = vlaneseq
    %v782 = vshrl.u32 %v781, 7
    %v783 = vsub.s32 %v310, %v782
    %v784 = vrot.slane %v746, %v783
    %v785 = vlaneseq
    %v786 = vshrl.u32 %v785, 7
    %v787 = vsub.s32 %v310, %v786
    %v788 = vrot.slane %v749, %v787
    %v789 = vlaneseq
    %v790 = vshrl.u32 %v789, 7
    %v791 = vsub.s32 %v310, %v790
    %v792 = vrot.slane %v752, %v791
    %v793 = vsel %vm354, %v768, %v764
    %v794 = vsel %vm356, %v772, %v793
    %v795 = vsel %vm358, %v776, %v794
    %v796 = vsel %vm360, %v780, %v795
    %v797 = vsel %vm362, %v784, %v796
    %v798 = vsel %vm364, %v788, %v797
    %v799 = vsel %vm366, %v792, %v798
    %v801 = vadd.f32 %v624, %v799
    %v802 = vlaneseq
    %v803 = vshrl.u32 %v802, 7
    %v804 = vsub.s32 0, %v803
    %v805 = vrot.slane %v442, %v804
    %807 = vbcast.lane.b32.xlu0 %v805, 256
    %v808 = vpop.permute.xlu0 %807
    %v809 = vlaneseq
    %v810 = vshrl.u32 %v809, 7
    %v811 = vsub.s32 1, %v810
    %v812 = vrot.slane %v442, %v811
    %814 = vbcast.lane.b32.xlu0 %v812, 256
    %v815 = vpop.permute.xlu0 %814
    %v816 = vlaneseq
    %v817 = vshrl.u32 %v816, 7
    %v818 = vsub.s32 2, %v817
    %v819 = vrot.slane %v442, %v818
    %821 = vbcast.lane.b32.xlu0 %v819, 256
    %v822 = vpop.permute.xlu0 %821
    %v823 = vlaneseq
    %v824 = vshrl.u32 %v823, 7
    %v825 = vsub.s32 3, %v824
    %v826 = vrot.slane %v442, %v825
    %828 = vbcast.lane.b32.xlu0 %v826, 256
    %v829 = vpop.permute.xlu0 %828
    %v830 = vlaneseq
    %v831 = vshrl.u32 %v830, 7
    %v832 = vsub.s32 4, %v831
    %v833 = vrot.slane %v442, %v832
    %835 = vbcast.lane.b32.xlu0 %v833, 256
    %v836 = vpop.permute.xlu0 %835
    %v837 = vlaneseq
    %v838 = vshrl.u32 %v837, 7
    %v839 = vsub.s32 5, %v838
    %v840 = vrot.slane %v442, %v839
    %842 = vbcast.lane.b32.xlu0 %v840, 256
    %v843 = vpop.permute.xlu0 %842
    %v844 = vlaneseq
    %v845 = vshrl.u32 %v844, 7
    %v846 = vsub.s32 6, %v845
    %v847 = vrot.slane %v442, %v846
    %849 = vbcast.lane.b32.xlu0 %v847, 256
    %v850 = vpop.permute.xlu0 %849
    %v851 = vlaneseq
    %v852 = vshrl.u32 %v851, 7
    %v853 = vsub.s32 7, %v852
    %v854 = vrot.slane %v442, %v853
    %856 = vbcast.lane.b32.xlu0 %v854, 256
    %v857 = vpop.permute.xlu0 %856
    %v858 = vmul.f32 %v808, 0.0
    %v859 = vmul.f32 %v815, 0.0
    %v860 = vmul.f32 %v822, 0.0
    %v861 = vmul.f32 %v829, 0.0
    %v862 = vmul.f32 %v836, 0.0
    %v863 = vmul.f32 %v843, 0.0
    %v864 = vmul.f32 %v850, 0.0
    %v865 = vmul.f32 %v857, 0.0
    %v867 = vsel %vm368, %v609, 0
    %869 = vmatprep.subr.mxu0 0.0
    %870 = vmatpush1.msra.mxu0 %v299
    %871 = vmatprep.subr.mxu0 0.0
    %872 = vmatpush1.msra.mxu0 0.0
    %873 = vmatprep.subr.mxu0 0.0
    %874 = vmatpush1.msra.mxu0 0.0
    %875 = vmatprep.subr.mxu0 0.0
    %876 = vmatpush1.msra.mxu0 0.0
    %877 = vmatprep.subr.mxu0 0.0
    %878 = vmatpush1.msra.mxu0 0.0
    %879 = vmatprep.subr.mxu0 0.0
    %880 = vmatpush1.msra.mxu0 0.0
    %881 = vmatprep.subr.mxu0 0.0
    %882 = vmatpush1.msra.mxu0 0.0
    %883 = vmatprep.subr.mxu0 0.0
    %884 = vmatpush1.msra.mxu0 0.0
    %885 = vmatprep.subr.mxu0 0.0
    %886 = vmatpush1.msra.mxu0 0.0
    %887 = vmatprep.subr.mxu0 0.0
    %888 = vmatpush1.msra.mxu0 0.0
    %889 = vmatprep.subr.mxu0 0.0
    %890 = vmatpush1.msra.mxu0 0.0
    %891 = vmatprep.subr.mxu0 0.0
    %892 = vmatpush1.msra.mxu0 0.0
    %893 = vmatprep.subr.mxu0 0.0
    %894 = vmatpush1.msra.mxu0 0.0
    %895 = vmatprep.subr.mxu0 0.0
    %896 = vmatpush1.msra.mxu0 0.0
    %897 = vmatprep.subr.mxu0 0.0
    %898 = vmatpush1.msra.mxu0 0.0
    %899 = vmatprep.subr.mxu0 0.0
    %900 = vmatpush1.msra.mxu0 0.0
    %901 = vmatprep.subr.mxu0 0.0
    %902 = vmatpush1.msra.mxu0 0.0
    %903 = vmatprep.subr.mxu0 0.0
    %904 = vmatpush1.msra.mxu0 0.0
    %905 = vmatprep.subr.mxu0 0.0
    %906 = vmatpush1.msra.mxu0 0.0
    %907 = vmatprep.subr.mxu0 0.0
    %908 = vmatpush1.msra.mxu0 0.0
    %909 = vmatprep.subr.mxu0 0.0
    %910 = vmatpush1.msra.mxu0 0.0
    %911 = vmatprep.subr.mxu0 0.0
    %912 = vmatpush1.msra.mxu0 0.0
    %913 = vmatprep.subr.mxu0 0.0
    %914 = vmatpush1.msra.mxu0 0.0
    %915 = vmatprep.subr.mxu0 0.0
    %916 = vmatpush1.msra.mxu0 0.0
    %917 = vmatprep.subr.mxu0 0.0
    %918 = vmatpush1.msra.mxu0 0.0
    %919 = vmatprep.subr.mxu0 0.0
    %920 = vmatpush1.msra.mxu0 0.0
    %921 = vmatprep.subr.mxu0 0.0
    %922 = vmatpush1.msra.mxu0 0.0
    %923 = vmatprep.subr.mxu0 0.0
    %924 = vmatpush1.msra.mxu0 0.0
    %925 = vmatprep.subr.mxu0 0.0
    %926 = vmatpush1.msra.mxu0 0.0
    %927 = vmatprep.subr.mxu0 0.0
    %928 = vmatpush1.msra.mxu0 0.0
    %929 = vmatprep.subr.mxu0 0.0
    %930 = vmatpush1.msra.mxu0 0.0
    %931 = vmatprep.subr.mxu0 0.0
    %932 = vmatpush1.msra.mxu0 0.0
    %933 = vmatprep.mubr.f32.mxu0 0.0
    %934 = vmatmul.mubr.f32.gmra.mrb[0].mxu0 %v867
    %v935 = vpop.f32.mrb[0].mxu0
    %v936 = vadd.f32 0.0, %v935
    %v937 = vpop.f32.mrb[0].mxu0
    %938 = vdwg.mxu0
    %v940 = vsel %vm368, %v611, 0
    %942 = vmatprep.subr.mxu0 0.0
    %943 = vmatpush1.msra.mxu0 %v300
    %944 = vmatprep.subr.mxu0 0.0
    %945 = vmatpush1.msra.mxu0 0.0
    %946 = vmatprep.subr.mxu0 0.0
    %947 = vmatpush1.msra.mxu0 0.0
    %948 = vmatprep.subr.mxu0 0.0
    %949 = vmatpush1.msra.mxu0 0.0
    %950 = vmatprep.subr.mxu0 0.0
    %951 = vmatpush1.msra.mxu0 0.0
    %952 = vmatprep.subr.mxu0 0.0
    %953 = vmatpush1.msra.mxu0 0.0
    %954 = vmatprep.subr.mxu0 0.0
    %955 = vmatpush1.msra.mxu0 0.0
    %956 = vmatprep.subr.mxu0 0.0
    %957 = vmatpush1.msra.mxu0 0.0
    %958 = vmatprep.subr.mxu0 0.0
    %959 = vmatpush1.msra.mxu0 0.0
    %960 = vmatprep.subr.mxu0 0.0
    %961 = vmatpush1.msra.mxu0 0.0
    %962 = vmatprep.subr.mxu0 0.0
    %963 = vmatpush1.msra.mxu0 0.0
    %964 = vmatprep.subr.mxu0 0.0
    %965 = vmatpush1.msra.mxu0 0.0
    %966 = vmatprep.subr.mxu0 0.0
    %967 = vmatpush1.msra.mxu0 0.0
    %968 = vmatprep.subr.mxu0 0.0
    %969 = vmatpush1.msra.mxu0 0.0
    %970 = vmatprep.subr.mxu0 0.0
    %971 = vmatpush1.msra.mxu0 0.0
    %972 = vmatprep.subr.mxu0 0.0
    %973 = vmatpush1.msra.mxu0 0.0
    %974 = vmatprep.subr.mxu0 0.0
    %975 = vmatpush1.msra.mxu0 0.0
    %976 = vmatprep.subr.mxu0 0.0
    %977 = vmatpush1.msra.mxu0 0.0
    %978 = vmatprep.subr.mxu0 0.0
    %979 = vmatpush1.msra.mxu0 0.0
    %980 = vmatprep.subr.mxu0 0.0
    %981 = vmatpush1.msra.mxu0 0.0
    %982 = vmatprep.subr.mxu0 0.0
    %983 = vmatpush1.msra.mxu0 0.0
    %984 = vmatprep.subr.mxu0 0.0
    %985 = vmatpush1.msra.mxu0 0.0
    %986 = vmatprep.subr.mxu0 0.0
    %987 = vmatpush1.msra.mxu0 0.0
    %988 = vmatprep.subr.mxu0 0.0
    %989 = vmatpush1.msra.mxu0 0.0
    %990 = vmatprep.subr.mxu0 0.0
    %991 = vmatpush1.msra.mxu0 0.0
    %992 = vmatprep.subr.mxu0 0.0
    %993 = vmatpush1.msra.mxu0 0.0
    %994 = vmatprep.subr.mxu0 0.0
    %995 = vmatpush1.msra.mxu0 0.0
    %996 = vmatprep.subr.mxu0 0.0
    %997 = vmatpush1.msra.mxu0 0.0
    %998 = vmatprep.subr.mxu0 0.0
    %999 = vmatpush1.msra.mxu0 0.0
    %1000 = vmatprep.subr.mxu0 0.0
    %1001 = vmatpush1.msra.mxu0 0.0
    %1002 = vmatprep.subr.mxu0 0.0
    %1003 = vmatpush1.msra.mxu0 0.0
    %1004 = vmatprep.subr.mxu0 0.0
    %1005 = vmatpush1.msra.mxu0 0.0
    %1006 = vmatprep.mubr.f32.mxu0 0.0
    %1007 = vmatmul.mubr.f32.gmra.mrb[0].mxu0 %v940
    %v1008 = vpop.f32.mrb[0].mxu0
    %v1009 = vadd.f32 0.0, %v1008
    %v1010 = vpop.f32.mrb[0].mxu0
    %1011 = vdwg.mxu0
    %v1013 = vsel %vm368, %v613, 0
    %1015 = vmatprep.subr.mxu0 0.0
    %1016 = vmatpush1.msra.mxu0 %v301
    %1017 = vmatprep.subr.mxu0 0.0
    %1018 = vmatpush1.msra.mxu0 0.0
    %1019 = vmatprep.subr.mxu0 0.0
    %1020 = vmatpush1.msra.mxu0 0.0
    %1021 = vmatprep.subr.mxu0 0.0
    %1022 = vmatpush1.msra.mxu0 0.0
    %1023 = vmatprep.subr.mxu0 0.0
    %1024 = vmatpush1.msra.mxu0 0.0
    %1025 = vmatprep.subr.mxu0 0.0
    %1026 = vmatpush1.msra.mxu0 0.0
    %1027 = vmatprep.subr.mxu0 0.0
    %1028 = vmatpush1.msra.mxu0 0.0
    %1029 = vmatprep.subr.mxu0 0.0
    %1030 = vmatpush1.msra.mxu0 0.0
    %1031 = vmatprep.subr.mxu0 0.0
    %1032 = vmatpush1.msra.mxu0 0.0
    %1033 = vmatprep.subr.mxu0 0.0
    %1034 = vmatpush1.msra.mxu0 0.0
    %1035 = vmatprep.subr.mxu0 0.0
    %1036 = vmatpush1.msra.mxu0 0.0
    %1037 = vmatprep.subr.mxu0 0.0
    %1038 = vmatpush1.msra.mxu0 0.0
    %1039 = vmatprep.subr.mxu0 0.0
    %1040 = vmatpush1.msra.mxu0 0.0
    %1041 = vmatprep.subr.mxu0 0.0
    %1042 = vmatpush1.msra.mxu0 0.0
    %1043 = vmatprep.subr.mxu0 0.0
    %1044 = vmatpush1.msra.mxu0 0.0
    %1045 = vmatprep.subr.mxu0 0.0
    %1046 = vmatpush1.msra.mxu0 0.0
    %1047 = vmatprep.subr.mxu0 0.0
    %1048 = vmatpush1.msra.mxu0 0.0
    %1049 = vmatprep.subr.mxu0 0.0
    %1050 = vmatpush1.msra.mxu0 0.0
    %1051 = vmatprep.subr.mxu0 0.0
    %1052 = vmatpush1.msra.mxu0 0.0
    %1053 = vmatprep.subr.mxu0 0.0
    %1054 = vmatpush1.msra.mxu0 0.0
    %1055 = vmatprep.subr.mxu0 0.0
    %1056 = vmatpush1.msra.mxu0 0.0
    %1057 = vmatprep.subr.mxu0 0.0
    %1058 = vmatpush1.msra.mxu0 0.0
    %1059 = vmatprep.subr.mxu0 0.0
    %1060 = vmatpush1.msra.mxu0 0.0
    %1061 = vmatprep.subr.mxu0 0.0
    %1062 = vmatpush1.msra.mxu0 0.0
    %1063 = vmatprep.subr.mxu0 0.0
    %1064 = vmatpush1.msra.mxu0 0.0
    %1065 = vmatprep.subr.mxu0 0.0
    %1066 = vmatpush1.msra.mxu0 0.0
    %1067 = vmatprep.subr.mxu0 0.0
    %1068 = vmatpush1.msra.mxu0 0.0
    %1069 = vmatprep.subr.mxu0 0.0
    %1070 = vmatpush1.msra.mxu0 0.0
    %1071 = vmatprep.subr.mxu0 0.0
    %1072 = vmatpush1.msra.mxu0 0.0
    %1073 = vmatprep.subr.mxu0 0.0
    %1074 = vmatpush1.msra.mxu0 0.0
    %1075 = vmatprep.subr.mxu0 0.0
    %1076 = vmatpush1.msra.mxu0 0.0
    %1077 = vmatprep.subr.mxu0 0.0
    %1078 = vmatpush1.msra.mxu0 0.0
    %1079 = vmatprep.mubr.f32.mxu0 0.0
    %1080 = vmatmul.mubr.f32.gmra.mrb[0].mxu0 %v1013
    %v1081 = vpop.f32.mrb[0].mxu0
    %v1082 = vadd.f32 0.0, %v1081
    %v1083 = vpop.f32.mrb[0].mxu0
    %1084 = vdwg.mxu0
    %v1086 = vsel %vm368, %v615, 0
    %1088 = vmatprep.subr.mxu0 0.0
    %1089 = vmatpush1.msra.mxu0 %v302
    %1090 = vmatprep.subr.mxu0 0.0
    %1091 = vmatpush1.msra.mxu0 0.0
    %1092 = vmatprep.subr.mxu0 0.0
    %1093 = vmatpush1.msra.mxu0 0.0
    %1094 = vmatprep.subr.mxu0 0.0
    %1095 = vmatpush1.msra.mxu0 0.0
    %1096 = vmatprep.subr.mxu0 0.0
    %1097 = vmatpush1.msra.mxu0 0.0
    %1098 = vmatprep.subr.mxu0 0.0
    %1099 = vmatpush1.msra.mxu0 0.0
    %1100 = vmatprep.subr.mxu0 0.0
    %1101 = vmatpush1.msra.mxu0 0.0
    %1102 = vmatprep.subr.mxu0 0.0
    %1103 = vmatpush1.msra.mxu0 0.0
    %1104 = vmatprep.subr.mxu0 0.0
    %1105 = vmatpush1.msra.mxu0 0.0
    %1106 = vmatprep.subr.mxu0 0.0
    %1107 = vmatpush1.msra.mxu0 0.0
    %1108 = vmatprep.subr.mxu0 0.0
    %1109 = vmatpush1.msra.mxu0 0.0
    %1110 = vmatprep.subr.mxu0 0.0
    %1111 = vmatpush1.msra.mxu0 0.0
    %1112 = vmatprep.subr.mxu0 0.0
    %1113 = vmatpush1.msra.mxu0 0.0
    %1114 = vmatprep.subr.mxu0 0.0
    %1115 = vmatpush1.msra.mxu0 0.0
    %1116 = vmatprep.subr.mxu0 0.0
    %1117 = vmatpush1.msra.mxu0 0.0
    %1118 = vmatprep.subr.mxu0 0.0
    %1119 = vmatpush1.msra.mxu0 0.0
    %1120 = vmatprep.subr.mxu0 0.0
    %1121 = vmatpush1.msra.mxu0 0.0
    %1122 = vmatprep.subr.mxu0 0.0
    %1123 = vmatpush1.msra.mxu0 0.0
    %1124 = vmatprep.subr.mxu0 0.0
    %1125 = vmatpush1.msra.mxu0 0.0
    %1126 = vmatprep.subr.mxu0 0.0
    %1127 = vmatpush1.msra.mxu0 0.0
    %1128 = vmatprep.subr.mxu0 0.0
    %1129 = vmatpush1.msra.mxu0 0.0
    %1130 = vmatprep.subr.mxu0 0.0
    %1131 = vmatpush1.msra.mxu0 0.0
    %1132 = vmatprep.subr.mxu0 0.0
    %1133 = vmatpush1.msra.mxu0 0.0
    %1134 = vmatprep.subr.mxu0 0.0
    %1135 = vmatpush1.msra.mxu0 0.0
    %1136 = vmatprep.subr.mxu0 0.0
    %1137 = vmatpush1.msra.mxu0 0.0
    %1138 = vmatprep.subr.mxu0 0.0
    %1139 = vmatpush1.msra.mxu0 0.0
    %1140 = vmatprep.subr.mxu0 0.0
    %1141 = vmatpush1.msra.mxu0 0.0
    %1142 = vmatprep.subr.mxu0 0.0
    %1143 = vmatpush1.msra.mxu0 0.0
    %1144 = vmatprep.subr.mxu0 0.0
    %1145 = vmatpush1.msra.mxu0 0.0
    %1146 = vmatprep.subr.mxu0 0.0
    %1147 = vmatpush1.msra.mxu0 0.0
    %1148 = vmatprep.subr.mxu0 0.0
    %1149 = vmatpush1.msra.mxu0 0.0
    %1150 = vmatprep.subr.mxu0 0.0
    %1151 = vmatpush1.msra.mxu0 0.0
    %1152 = vmatprep.mubr.f32.mxu0 0.0
    %1153 = vmatmul.mubr.f32.gmra.mrb[0].mxu0 %v1086
    %v1154 = vpop.f32.mrb[0].mxu0
    %v1155 = vadd.f32 0.0, %v1154
    %v1156 = vpop.f32.mrb[0].mxu0
    %1157 = vdwg.mxu0
    %v1159 = vsel %vm368, %v617, 0
    %1161 = vmatprep.subr.mxu0 0.0
    %1162 = vmatpush1.msra.mxu0 %v303
    %1163 = vmatprep.subr.mxu0 0.0
    %1164 = vmatpush1.msra.mxu0 0.0
    %1165 = vmatprep.subr.mxu0 0.0
    %1166 = vmatpush1.msra.mxu0 0.0
    %1167 = vmatprep.subr.mxu0 0.0
    %1168 = vmatpush1.msra.mxu0 0.0
    %1169 = vmatprep.subr.mxu0 0.0
    %1170 = vmatpush1.msra.mxu0 0.0
    %1171 = vmatprep.subr.mxu0 0.0
    %1172 = vmatpush1.msra.mxu0 0.0
    %1173 = vmatprep.subr.mxu0 0.0
    %1174 = vmatpush1.msra.mxu0 0.0
    %1175 = vmatprep.subr.mxu0 0.0
    %1176 = vmatpush1.msra.mxu0 0.0
    %1177 = vmatprep.subr.mxu0 0.0
    %1178 = vmatpush1.msra.mxu0 0.0
    %1179 = vmatprep.subr.mxu0 0.0
    %1180 = vmatpush1.msra.mxu0 0.0
    %1181 = vmatprep.subr.mxu0 0.0
    %1182 = vmatpush1.msra.mxu0 0.0
    %1183 = vmatprep.subr.mxu0 0.0
    %1184 = vmatpush1.msra.mxu0 0.0
    %1185 = vmatprep.subr.mxu0 0.0
    %1186 = vmatpush1.msra.mxu0 0.0
    %1187 = vmatprep.subr.mxu0 0.0
    %1188 = vmatpush1.msra.mxu0 0.0
    %1189 = vmatprep.subr.mxu0 0.0
    %1190 = vmatpush1.msra.mxu0 0.0
    %1191 = vmatprep.subr.mxu0 0.0
    %1192 = vmatpush1.msra.mxu0 0.0
    %1193 = vmatprep.subr.mxu0 0.0
    %1194 = vmatpush1.msra.mxu0 0.0
    %1195 = vmatprep.subr.mxu0 0.0
    %1196 = vmatpush1.msra.mxu0 0.0
    %1197 = vmatprep.subr.mxu0 0.0
    %1198 = vmatpush1.msra.mxu0 0.0
    %1199 = vmatprep.subr.mxu0 0.0
    %1200 = vmatpush1.msra.mxu0 0.0
    %1201 = vmatprep.subr.mxu0 0.0
    %1202 = vmatpush1.msra.mxu0 0.0
    %1203 = vmatprep.subr.mxu0 0.0
    %1204 = vmatpush1.msra.mxu0 0.0
    %1205 = vmatprep.subr.mxu0 0.0
    %1206 = vmatpush1.msra.mxu0 0.0
    %1207 = vmatprep.subr.mxu0 0.0
    %1208 = vmatpush1.msra.mxu0 0.0
    %1209 = vmatprep.subr.mxu0 0.0
    %1210 = vmatpush1.msra.mxu0 0.0
    %1211 = vmatprep.subr.mxu0 0.0
    %1212 = vmatpush1.msra.mxu0 0.0
    %1213 = vmatprep.subr.mxu0 0.0
    %1214 = vmatpush1.msra.mxu0 0.0
    %1215 = vmatprep.subr.mxu0 0.0
    %1216 = vmatpush1.msra.mxu0 0.0
    %1217 = vmatprep.subr.mxu0 0.0
    %1218 = vmatpush1.msra.mxu0 0.0
    %1219 = vmatprep.subr.mxu0 0.0
    %1220 = vmatpush1.msra.mxu0 0.0
    %1221 = vmatprep.subr.mxu0 0.0
    %1222 = vmatpush1.msra.mxu0 0.0
    %1223 = vmatprep.subr.mxu0 0.0
    %1224 = vmatpush1.msra.mxu0 0.0
    %1225 = vmatprep.mubr.f32.mxu0 0.0
    %1226 = vmatmul.mubr.f32.gmra.mrb[0].mxu0 %v1159
    %v1227 = vpop.f32.mrb[0].mxu0
    %v1228 = vadd.f32 0.0, %v1227
    %v1229 = vpop.f32.mrb[0].mxu0
    %1230 = vdwg.mxu0
    %v1232 = vsel %vm368, %v619, 0
    %1234 = vmatprep.subr.mxu0 0.0
    %1235 = vmatpush1.msra.mxu0 %v304
    %1236 = vmatprep.subr.mxu0 0.0
    %1237 = vmatpush1.msra.mxu0 0.0
    %1238 = vmatprep.subr.mxu0 0.0
    %1239 = vmatpush1.msra.mxu0 0.0
    %1240 = vmatprep.subr.mxu0 0.0
    %1241 = vmatpush1.msra.mxu0 0.0
    %1242 = vmatprep.subr.mxu0 0.0
    %1243 = vmatpush1.msra.mxu0 0.0
    %1244 = vmatprep.subr.mxu0 0.0
    %1245 = vmatpush1.msra.mxu0 0.0
    %1246 = vmatprep.subr.mxu0 0.0
    %1247 = vmatpush1.msra.mxu0 0.0
    %1248 = vmatprep.subr.mxu0 0.0
    %1249 = vmatpush1.msra.mxu0 0.0
    %1250 = vmatprep.subr.mxu0 0.0
    %1251 = vmatpush1.msra.mxu0 0.0
    %1252 = vmatprep.subr.mxu0 0.0
    %1253 = vmatpush1.msra.mxu0 0.0
    %1254 = vmatprep.subr.mxu0 0.0
    %1255 = vmatpush1.msra.mxu0 0.0
    %1256 = vmatprep.subr.mxu0 0.0
    %1257 = vmatpush1.msra.mxu0 0.0
    %1258 = vmatprep.subr.mxu0 0.0
    %1259 = vmatpush1.msra.mxu0 0.0
    %1260 = vmatprep.subr.mxu0 0.0
    %1261 = vmatpush1.msra.mxu0 0.0
    %1262 = vmatprep.subr.mxu0 0.0
    %1263 = vmatpush1.msra.mxu0 0.0
    %1264 = vmatprep.subr.mxu0 0.0
    %1265 = vmatpush1.msra.mxu0 0.0
    %1266 = vmatprep.subr.mxu0 0.0
    %1267 = vmatpush1.msra.mxu0 0.0
    %1268 = vmatprep.subr.mxu0 0.0
    %1269 = vmatpush1.msra.mxu0 0.0
    %1270 = vmatprep.subr.mxu0 0.0
    %1271 = vmatpush1.msra.mxu0 0.0
    %1272 = vmatprep.subr.mxu0 0.0
    %1273 = vmatpush1.msra.mxu0 0.0
    %1274 = vmatprep.subr.mxu0 0.0
    %1275 = vmatpush1.msra.mxu0 0.0
    %1276 = vmatprep.subr.mxu0 0.0
    %1277 = vmatpush1.msra.mxu0 0.0
    %1278 = vmatprep.subr.mxu0 0.0
    %1279 = vmatpush1.msra.mxu0 0.0
    %1280 = vmatprep.subr.mxu0 0.0
    %1281 = vmatpush1.msra.mxu0 0.0
    %1282 = vmatprep.subr.mxu0 0.0
    %1283 = vmatpush1.msra.mxu0 0.0
    %1284 = vmatprep.subr.mxu0 0.0
    %1285 = vmatpush1.msra.mxu0 0.0
    %1286 = vmatprep.subr.mxu0 0.0
    %1287 = vmatpush1.msra.mxu0 0.0
    %1288 = vmatprep.subr.mxu0 0.0
    %1289 = vmatpush1.msra.mxu0 0.0
    %1290 = vmatprep.subr.mxu0 0.0
    %1291 = vmatpush1.msra.mxu0 0.0
    %1292 = vmatprep.subr.mxu0 0.0
    %1293 = vmatpush1.msra.mxu0 0.0
    %1294 = vmatprep.subr.mxu0 0.0
    %1295 = vmatpush1.msra.mxu0 0.0
    %1296 = vmatprep.subr.mxu0 0.0
    %1297 = vmatpush1.msra.mxu0 0.0
    %1298 = vmatprep.mubr.f32.mxu0 0.0
    %1299 = vmatmul.mubr.f32.gmra.mrb[0].mxu0 %v1232
    %v1300 = vpop.f32.mrb[0].mxu0
    %v1301 = vadd.f32 0.0, %v1300
    %v1302 = vpop.f32.mrb[0].mxu0
    %1303 = vdwg.mxu0
    %v1305 = vsel %vm368, %v621, 0
    %1307 = vmatprep.subr.mxu0 0.0
    %1308 = vmatpush1.msra.mxu0 %v305
    %1309 = vmatprep.subr.mxu0 0.0
    %1310 = vmatpush1.msra.mxu0 0.0
    %1311 = vmatprep.subr.mxu0 0.0
    %1312 = vmatpush1.msra.mxu0 0.0
    %1313 = vmatprep.subr.mxu0 0.0
    %1314 = vmatpush1.msra.mxu0 0.0
    %1315 = vmatprep.subr.mxu0 0.0
    %1316 = vmatpush1.msra.mxu0 0.0
    %1317 = vmatprep.subr.mxu0 0.0
    %1318 = vmatpush1.msra.mxu0 0.0
    %1319 = vmatprep.subr.mxu0 0.0
    %1320 = vmatpush1.msra.mxu0 0.0
    %1321 = vmatprep.subr.mxu0 0.0
    %1322 = vmatpush1.msra.mxu0 0.0
    %1323 = vmatprep.subr.mxu0 0.0
    %1324 = vmatpush1.msra.mxu0 0.0
    %1325 = vmatprep.subr.mxu0 0.0
    %1326 = vmatpush1.msra.mxu0 0.0
    %1327 = vmatprep.subr.mxu0 0.0
    %1328 = vmatpush1.msra.mxu0 0.0
    %1329 = vmatprep.subr.mxu0 0.0
    %1330 = vmatpush1.msra.mxu0 0.0
    %1331 = vmatprep.subr.mxu0 0.0
    %1332 = vmatpush1.msra.mxu0 0.0
    %1333 = vmatprep.subr.mxu0 0.0
    %1334 = vmatpush1.msra.mxu0 0.0
    %1335 = vmatprep.subr.mxu0 0.0
    %1336 = vmatpush1.msra.mxu0 0.0
    %1337 = vmatprep.subr.mxu0 0.0
    %1338 = vmatpush1.msra.mxu0 0.0
    %1339 = vmatprep.subr.mxu0 0.0
    %1340 = vmatpush1.msra.mxu0 0.0
    %1341 = vmatprep.subr.mxu0 0.0
    %1342 = vmatpush1.msra.mxu0 0.0
    %1343 = vmatprep.subr.mxu0 0.0
    %1344 = vmatpush1.msra.mxu0 0.0
    %1345 = vmatprep.subr.mxu0 0.0
    %1346 = vmatpush1.msra.mxu0 0.0
    %1347 = vmatprep.subr.mxu0 0.0
    %1348 = vmatpush1.msra.mxu0 0.0
    %1349 = vmatprep.subr.mxu0 0.0
    %1350 = vmatpush1.msra.mxu0 0.0
    %1351 = vmatprep.subr.mxu0 0.0
    %1352 = vmatpush1.msra.mxu0 0.0
    %1353 = vmatprep.subr.mxu0 0.0
    %1354 = vmatpush1.msra.mxu0 0.0
    %1355 = vmatprep.subr.mxu0 0.0
    %1356 = vmatpush1.msra.mxu0 0.0
    %1357 = vmatprep.subr.mxu0 0.0
    %1358 = vmatpush1.msra.mxu0 0.0
    %1359 = vmatprep.subr.mxu0 0.0
    %1360 = vmatpush1.msra.mxu0 0.0
    %1361 = vmatprep.subr.mxu0 0.0
    %1362 = vmatpush1.msra.mxu0 0.0
    %1363 = vmatprep.subr.mxu0 0.0
    %1364 = vmatpush1.msra.mxu0 0.0
    %1365 = vmatprep.subr.mxu0 0.0
    %1366 = vmatpush1.msra.mxu0 0.0
    %1367 = vmatprep.subr.mxu0 0.0
    %1368 = vmatpush1.msra.mxu0 0.0
    %1369 = vmatprep.subr.mxu0 0.0
    %1370 = vmatpush1.msra.mxu0 0.0
    %1371 = vmatprep.mubr.f32.mxu0 0.0
    %1372 = vmatmul.mubr.f32.gmra.mrb[0].mxu0 %v1305
    %v1373 = vpop.f32.mrb[0].mxu0
    %v1374 = vadd.f32 0.0, %v1373
    %v1375 = vpop.f32.mrb[0].mxu0
    %1376 = vdwg.mxu0
    %v1378 = vsel %vm368, %v623, 0
    %1380 = vmatprep.subr.mxu0 0.0
    %1381 = vmatpush1.msra.mxu0 %v306
    %1382 = vmatprep.subr.mxu0 0.0
    %1383 = vmatpush1.msra.mxu0 0.0
    %1384 = vmatprep.subr.mxu0 0.0
    %1385 = vmatpush1.msra.mxu0 0.0
    %1386 = vmatprep.subr.mxu0 0.0
    %1387 = vmatpush1.msra.mxu0 0.0
    %1388 = vmatprep.subr.mxu0 0.0
    %1389 = vmatpush1.msra.mxu0 0.0
    %1390 = vmatprep.subr.mxu0 0.0
    %1391 = vmatpush1.msra.mxu0 0.0
    %1392 = vmatprep.subr.mxu0 0.0
    %1393 = vmatpush1.msra.mxu0 0.0
    %1394 = vmatprep.subr.mxu0 0.0
    %1395 = vmatpush1.msra.mxu0 0.0
    %1396 = vmatprep.subr.mxu0 0.0
    %1397 = vmatpush1.msra.mxu0 0.0
    %1398 = vmatprep.subr.mxu0 0.0
    %1399 = vmatpush1.msra.mxu0 0.0
    %1400 = vmatprep.subr.mxu0 0.0
    %1401 = vmatpush1.msra.mxu0 0.0
    %1402 = vmatprep.subr.mxu0 0.0
    %1403 = vmatpush1.msra.mxu0 0.0
    %1404 = vmatprep.subr.mxu0 0.0
    %1405 = vmatpush1.msra.mxu0 0.0
    %1406 = vmatprep.subr.mxu0 0.0
    %1407 = vmatpush1.msra.mxu0 0.0
    %1408 = vmatprep.subr.mxu0 0.0
    %1409 = vmatpush1.msra.mxu0 0.0
    %1410 = vmatprep.subr.mxu0 0.0
    %1411 = vmatpush1.msra.mxu0 0.0
    %1412 = vmatprep.subr.mxu0 0.0
    %1413 = vmatpush1.msra.mxu0 0.0
    %1414 = vmatprep.subr.mxu0 0.0
    %1415 = vmatpush1.msra.mxu0 0.0
    %1416 = vmatprep.subr.mxu0 0.0
    %1417 = vmatpush1.msra.mxu0 0.0
    %1418 = vmatprep.subr.mxu0 0.0
    %1419 = vmatpush1.msra.mxu0 0.0
    %1420 = vmatprep.subr.mxu0 0.0
    %1421 = vmatpush1.msra.mxu0 0.0
    %1422 = vmatprep.subr.mxu0 0.0
    %1423 = vmatpush1.msra.mxu0 0.0
    %1424 = vmatprep.subr.mxu0 0.0
    %1425 = vmatpush1.msra.mxu0 0.0
    %1426 = vmatprep.subr.mxu0 0.0
    %1427 = vmatpush1.msra.mxu0 0.0
    %1428 = vmatprep.subr.mxu0 0.0
    %1429 = vmatpush1.msra.mxu0 0.0
    %1430 = vmatprep.subr.mxu0 0.0
    %1431 = vmatpush1.msra.mxu0 0.0
    %1432 = vmatprep.subr.mxu0 0.0
    %1433 = vmatpush1.msra.mxu0 0.0
    %1434 = vmatprep.subr.mxu0 0.0
    %1435 = vmatpush1.msra.mxu0 0.0
    %1436 = vmatprep.subr.mxu0 0.0
    %1437 = vmatpush1.msra.mxu0 0.0
    %1438 = vmatprep.subr.mxu0 0.0
    %1439 = vmatpush1.msra.mxu0 0.0
    %1440 = vmatprep.subr.mxu0 0.0
    %1441 = vmatpush1.msra.mxu0 0.0
    %1442 = vmatprep.subr.mxu0 0.0
    %1443 = vmatpush1.msra.mxu0 0.0
    %1444 = vmatprep.mubr.f32.mxu0 0.0
    %1445 = vmatmul.mubr.f32.gmra.mrb[0].mxu0 %v1378
    %v1446 = vpop.f32.mrb[0].mxu0
    %v1447 = vadd.f32 0.0, %v1446
    %v1448 = vpop.f32.mrb[0].mxu0
    %1449 = vdwg.mxu0
    %v1450 = vadd.f32 %v858, %v936
    %v1451 = vadd.f32 %v859, %v1009
    %v1452 = vadd.f32 %v860, %v1082
    %v1453 = vadd.f32 %v861, %v1155
    %v1454 = vadd.f32 %v862, %v1228
    %v1455 = vadd.f32 %v863, %v1301
    %v1456 = vadd.f32 %v864, %v1374
    %v1457 = vadd.f32 %v865, %v1447
    %v1458 = vadd.f32 %v801, 1e-08
    %v1459 = vrcp.pop %v1458
    %v1460 = vlaneseq
    %v1461 = vshrl.u32 %v1460, 7
    %v1462 = vsub.s32 0, %v1461
    %v1463 = vrot.slane %v1459, %v1462
    %1465 = vbcast.lane.b32.xlu0 %v1463, 256
    %v1466 = vpop.permute.xlu0 %1465
    %v1467 = vlaneseq
    %v1468 = vshrl.u32 %v1467, 7
    %v1469 = vsub.s32 1, %v1468
    %v1470 = vrot.slane %v1459, %v1469
    %1472 = vbcast.lane.b32.xlu0 %v1470, 256
    %v1473 = vpop.permute.xlu0 %1472
    %v1474 = vlaneseq
    %v1475 = vshrl.u32 %v1474, 7
    %v1476 = vsub.s32 2, %v1475
    %v1477 = vrot.slane %v1459, %v1476
    %1479 = vbcast.lane.b32.xlu0 %v1477, 256
    %v1480 = vpop.permute.xlu0 %1479
    %v1481 = vlaneseq
    %v1482 = vshrl.u32 %v1481, 7
    %v1483 = vsub.s32 3, %v1482
    %v1484 = vrot.slane %v1459, %v1483
    %1486 = vbcast.lane.b32.xlu0 %v1484, 256
    %v1487 = vpop.permute.xlu0 %1486
    %v1488 = vlaneseq
    %v1489 = vshrl.u32 %v1488, 7
    %v1490 = vsub.s32 4, %v1489
    %v1491 = vrot.slane %v1459, %v1490
    %1493 = vbcast.lane.b32.xlu0 %v1491, 256
    %v1494 = vpop.permute.xlu0 %1493
    %v1495 = vlaneseq
    %v1496 = vshrl.u32 %v1495, 7
    %v1497 = vsub.s32 5, %v1496
    %v1498 = vrot.slane %v1459, %v1497
    %1500 = vbcast.lane.b32.xlu0 %v1498, 256
    %v1501 = vpop.permute.xlu0 %1500
    %v1502 = vlaneseq
    %v1503 = vshrl.u32 %v1502, 7
    %v1504 = vsub.s32 6, %v1503
    %v1505 = vrot.slane %v1459, %v1504
    %1507 = vbcast.lane.b32.xlu0 %v1505, 256
    %v1508 = vpop.permute.xlu0 %1507
    %v1509 = vlaneseq
    %v1510 = vshrl.u32 %v1509, 7
    %v1511 = vsub.s32 7, %v1510
    %v1512 = vrot.slane %v1459, %v1511
    %1514 = vbcast.lane.b32.xlu0 %v1512, 256
    %v1515 = vpop.permute.xlu0 %1514
    %v1516 = vmul.f32 %v1450, %v1466
    %v1517 = vmul.f32 %v1451, %v1473
    %v1518 = vmul.f32 %v1452, %v1480
    %v1519 = vmul.f32 %v1453, %v1487
    %v1520 = vmul.f32 %v1454, %v1494
    %v1521 = vmul.f32 %v1455, %v1501
    %v1522 = vmul.f32 %v1456, %v1508
    %v1523 = vmul.f32 %v1457, %v1515
    %v1524 = vsel %vm145, %v1516, 0.0
    %1525 = vadd.xlane.f32.xlu0 %v1524
    %v1526 = vpop.xlane.xlu0 %1525
    %v1527 = vsel %vm145, %v1517, 0.0
    %1528 = vadd.xlane.f32.xlu0 %v1527
    %v1529 = vpop.xlane.xlu0 %1528
    %v1530 = vsel %vm145, %v1518, 0.0
    %1531 = vadd.xlane.f32.xlu0 %v1530
    %v1532 = vpop.xlane.xlu0 %1531
    %v1533 = vsel %vm145, %v1519, 0.0
    %1534 = vadd.xlane.f32.xlu0 %v1533
    %v1535 = vpop.xlane.xlu0 %1534
    %v1536 = vsel %vm145, %v1520, 0.0
    %1537 = vadd.xlane.f32.xlu0 %v1536
    %v1538 = vpop.xlane.xlu0 %1537
    %v1539 = vsel %vm145, %v1521, 0.0
    %1540 = vadd.xlane.f32.xlu0 %v1539
    %v1541 = vpop.xlane.xlu0 %1540
    %v1542 = vsel %vm145, %v1522, 0.0
    %1543 = vadd.xlane.f32.xlu0 %v1542
    %v1544 = vpop.xlane.xlu0 %1543
    %v1545 = vsel %vm145, %v1523, 0.0
    %1546 = vadd.xlane.f32.xlu0 %v1545
    %v1547 = vpop.xlane.xlu0 %1546
    %v1548 = vrcp.pop 32.0
    %v1549 = vmul.f32 %v1526, %v1548
    %v1550 = vmul.f32 %v1529, %v1548
    %v1551 = vmul.f32 %v1532, %v1548
    %v1552 = vmul.f32 %v1535, %v1548
    %v1553 = vmul.f32 %v1538, %v1548
    %v1554 = vmul.f32 %v1541, %v1548
    %v1555 = vmul.f32 %v1544, %v1548
    %v1556 = vmul.f32 %v1547, %v1548
    %v1557 = vsub.f32 %v1516, %v1549
    %v1558 = vsub.f32 %v1517, %v1550
    %v1559 = vsub.f32 %v1518, %v1551
    %v1560 = vsub.f32 %v1519, %v1552
    %v1561 = vsub.f32 %v1520, %v1553
    %v1562 = vsub.f32 %v1521, %v1554
    %v1563 = vsub.f32 %v1522, %v1555
    %v1564 = vsub.f32 %v1523, %v1556
    %v1565 = vmul.f32 %v1557, %v1557
    %v1566 = vmul.f32 %v1558, %v1558
    %v1567 = vmul.f32 %v1559, %v1559
    %v1568 = vmul.f32 %v1560, %v1560
    %v1569 = vmul.f32 %v1561, %v1561
    %v1570 = vmul.f32 %v1562, %v1562
    %v1571 = vmul.f32 %v1563, %v1563
    %v1572 = vmul.f32 %v1564, %v1564
    %v1573 = vsel %vm145, %v1565, 0.0
    %1574 = vadd.xlane.f32.xlu0 %v1573
    %v1575 = vpop.xlane.xlu0 %1574
    %v1576 = vsel %vm145, %v1566, 0.0
    %1577 = vadd.xlane.f32.xlu0 %v1576
    %v1578 = vpop.xlane.xlu0 %1577
    %v1579 = vsel %vm145, %v1567, 0.0
    %1580 = vadd.xlane.f32.xlu0 %v1579
    %v1581 = vpop.xlane.xlu0 %1580
    %v1582 = vsel %vm145, %v1568, 0.0
    %1583 = vadd.xlane.f32.xlu0 %v1582
    %v1584 = vpop.xlane.xlu0 %1583
    %v1585 = vsel %vm145, %v1569, 0.0
    %1586 = vadd.xlane.f32.xlu0 %v1585
    %v1587 = vpop.xlane.xlu0 %1586
    %v1588 = vsel %vm145, %v1570, 0.0
    %1589 = vadd.xlane.f32.xlu0 %v1588
    %v1590 = vpop.xlane.xlu0 %1589
    %v1591 = vsel %vm145, %v1571, 0.0
    %1592 = vadd.xlane.f32.xlu0 %v1591
    %v1593 = vpop.xlane.xlu0 %1592
    %v1594 = vsel %vm145, %v1572, 0.0
    %1595 = vadd.xlane.f32.xlu0 %v1594
    %v1596 = vpop.xlane.xlu0 %1595
    %v1597 = vmul.f32 %v1575, %v1548
    %v1598 = vmul.f32 %v1578, %v1548
    %v1599 = vmul.f32 %v1581, %v1548
    %v1600 = vmul.f32 %v1584, %v1548
    %v1601 = vmul.f32 %v1587, %v1548
    %v1602 = vmul.f32 %v1590, %v1548
    %v1603 = vmul.f32 %v1593, %v1548
    %v1604 = vmul.f32 %v1596, %v1548
    %v1605 = vadd.f32 %v1597, 1e-05
    %v1606 = vadd.f32 %v1598, 1e-05
    %v1607 = vadd.f32 %v1599, 1e-05
    %v1608 = vadd.f32 %v1600, 1e-05
    %v1609 = vadd.f32 %v1601, 1e-05
    %v1610 = vadd.f32 %v1602, 1e-05
    %v1611 = vadd.f32 %v1603, 1e-05
    %v1612 = vadd.f32 %v1604, 1e-05
    %v1613 = vrsqrt.pop %v1605
    %v1614 = vrsqrt.pop %v1606
    %v1615 = vrsqrt.pop %v1607
    %v1616 = vrsqrt.pop %v1608
    %v1617 = vrsqrt.pop %v1609
    %v1618 = vrsqrt.pop %v1610
    %v1619 = vrsqrt.pop %v1611
    %v1620 = vrsqrt.pop %v1612
    %v1621 = vmul.f32 %v1557, %v1613
    %v1622 = vmul.f32 %v1558, %v1614
    %v1623 = vmul.f32 %v1559, %v1615
    %v1624 = vmul.f32 %v1560, %v1616
    %v1625 = vmul.f32 %v1561, %v1617
    %v1626 = vmul.f32 %v1562, %v1618
    %v1627 = vmul.f32 %v1563, %v1619
    %v1628 = vmul.f32 %v1564, %v1620
    %v1630 = vlaneseq
    %v1631 = vshrl.u32 %v1630, 7
    %v1632 = vsub.s32 0, %v1631
    %v1633 = vrot.slane %v79, %v1632
    %v1635 = vmul.f32 %v1621, %v1633
    %v1636 = vmul.f32 %v1622, %v1633
    %v1637 = vmul.f32 %v1623, %v1633
    %v1638 = vmul.f32 %v1624, %v1633
    %v1639 = vmul.f32 %v1625, %v1633
    %v1640 = vmul.f32 %v1626, %v1633
    %v1641 = vmul.f32 %v1627, %v1633
    %v1642 = vmul.f32 %v1628, %v1633
    %v1644 = vlaneseq
    %v1645 = vshrl.u32 %v1644, 7
    %v1646 = vsub.s32 0, %v1645
    %v1647 = vrot.slane %v80, %v1646
    %v1649 = vadd.f32 %v1635, %v1647
    %v1650 = vadd.f32 %v1636, %v1647
    %v1651 = vadd.f32 %v1637, %v1647
    %v1652 = vadd.f32 %v1638, %v1647
    %v1653 = vadd.f32 %v1639, %v1647
    %v1654 = vadd.f32 %v1640, %v1647
    %v1655 = vadd.f32 %v1641, %v1647
    %v1656 = vadd.f32 %v1642, %v1647
    %v1657 = vpack.c.bf16 %v1650, %v1649
    %v1658 = vpack.c.bf16 %v1652, %v1651
    %v1659 = vpack.c.bf16 %v1654, %v1653
    %v1660 = vpack.c.bf16 %v1656, %v1655
    %v1662 = vlaneseq
    %v1663 = vshrl.u32 %v1662, 7
    %v1664 = vsub.s32 0, %v1663
    %v1665 = vrot.slane %v87, %v1664
    %v1671 = vunpack.c.l.b16 %v83
    %v1672 = vunpack.c.l.b16 %v84
    %v1673 = vunpack.c.l.b16 %v85
    %v1674 = vunpack.c.l.b16 %v86
    %v1675 = vpack.c.b16 %v1672, %v1671
    %v1676 = vpack.c.b16 %v1674, %v1673
    %v1680 = vsel %vm145, %v1657, 0
    %v1683 = vsel %vm145, %v1658, 0
    %v1686 = vsel %vm145, %v1659, 0
    %v1689 = vsel %vm145, %v1660, 0
    %1691 = vmatprep.subr.bf16.mxu0 0
    %1692 = vmatpush1.bf16.msra.mxu0 %v1675
    %1693 = vmatprep.subr.bf16.mxu0 0
    %1694 = vmatpush1.bf16.msra.mxu0 %v1676
    %1695 = vmatprep.subr.bf16.mxu0 0
    %1696 = vmatpush1.bf16.msra.mxu0 0
    %1697 = vmatprep.subr.bf16.mxu0 0
    %1698 = vmatpush1.bf16.msra.mxu0 0
    %1699 = vmatprep.subr.bf16.mxu0 0
    %1700 = vmatpush1.bf16.msra.mxu0 0
    %1701 = vmatprep.subr.bf16.mxu0 0
    %1702 = vmatpush1.bf16.msra.mxu0 0
    %1703 = vmatprep.subr.bf16.mxu0 0
    %1704 = vmatpush1.bf16.msra.mxu0 0
    %1705 = vmatprep.subr.bf16.mxu0 0
    %1706 = vmatpush1.bf16.msra.mxu0 0
    %1707 = vmatprep.subr.bf16.mxu0 0
    %1708 = vmatpush1.bf16.msra.mxu0 0
    %1709 = vmatprep.subr.bf16.mxu0 0
    %1710 = vmatpush1.bf16.msra.mxu0 0
    %1711 = vmatprep.subr.bf16.mxu0 0
    %1712 = vmatpush1.bf16.msra.mxu0 0
    %1713 = vmatprep.subr.bf16.mxu0 0
    %1714 = vmatpush1.bf16.msra.mxu0 0
    %1715 = vmatprep.subr.bf16.mxu0 0
    %1716 = vmatpush1.bf16.msra.mxu0 0
    %1717 = vmatprep.subr.bf16.mxu0 0
    %1718 = vmatpush1.bf16.msra.mxu0 0
    %1719 = vmatprep.subr.bf16.mxu0 0
    %1720 = vmatpush1.bf16.msra.mxu0 0
    %1721 = vmatprep.subr.bf16.mxu0 0
    %1722 = vmatpush1.bf16.msra.mxu0 0
    %1723 = vmatprep.mubr.bf16.mxu0 0
    %1724 = vmatmul.mubr.bf16.gmra.mrb[0].mxu0 %v1680
    %v1725 = vpop.f32.mrb[0].mxu0
    %v1726 = vadd.f32 %v1665, %v1725
    %v1727 = vpop.f32.mrb[0].mxu0
    %v1728 = vpop.f32.mrb[0].mxu0
    %v1729 = vadd.f32 %v1665, %v1728
    %v1730 = vpop.f32.mrb[0].mxu0
    %1731 = vmatprep.mubr.bf16.mxu0 0
    %1732 = vmatmul.mubr.bf16.gmra.mrb[0].mxu0 %v1683
    %v1733 = vpop.f32.mrb[0].mxu0
    %v1734 = vadd.f32 %v1665, %v1733
    %v1735 = vpop.f32.mrb[0].mxu0
    %v1736 = vpop.f32.mrb[0].mxu0
    %v1737 = vadd.f32 %v1665, %v1736
    %v1738 = vpop.f32.mrb[0].mxu0
    %1739 = vmatprep.mubr.bf16.mxu0 0
    %1740 = vmatmul.mubr.bf16.gmra.mrb[0].mxu0 %v1686
    %v1741 = vpop.f32.mrb[0].mxu0
    %v1742 = vadd.f32 %v1665, %v1741
    %v1743 = vpop.f32.mrb[0].mxu0
    %v1744 = vpop.f32.mrb[0].mxu0
    %v1745 = vadd.f32 %v1665, %v1744
    %v1746 = vpop.f32.mrb[0].mxu0
    %1747 = vmatprep.mubr.bf16.mxu0 0
    %1748 = vmatmul.mubr.bf16.gmra.mrb[0].mxu0 %v1689
    %v1749 = vpop.f32.mrb[0].mxu0
    %v1750 = vadd.f32 %v1665, %v1749
    %v1751 = vpop.f32.mrb[0].mxu0
    %v1752 = vpop.f32.mrb[0].mxu0
    %v1753 = vadd.f32 %v1665, %v1752
    %v1754 = vpop.f32.mrb[0].mxu0
    %1755 = vdwg.mxu0
    %v1756 = vxor.u32 %v1726, 2147483648
    %v1757 = vxor.u32 %v1729, 2147483648
    %v1758 = vxor.u32 %v1734, 2147483648
    %v1759 = vxor.u32 %v1737, 2147483648
    %v1760 = vxor.u32 %v1742, 2147483648
    %v1761 = vxor.u32 %v1745, 2147483648
    %v1762 = vxor.u32 %v1750, 2147483648
    %v1763 = vxor.u32 %v1753, 2147483648
    %v1764 = vmul.f32 %v1756, 1.442695
    %v1765 = vpow.pop %v1764
    %v1766 = vmul.f32 %v1757, 1.442695
    %v1767 = vpow.pop %v1766
    %v1768 = vmul.f32 %v1758, 1.442695
    %v1769 = vpow.pop %v1768
    %v1770 = vmul.f32 %v1759, 1.442695
    %v1771 = vpow.pop %v1770
    %v1772 = vmul.f32 %v1760, 1.442695
    %v1773 = vpow.pop %v1772
    %v1774 = vmul.f32 %v1761, 1.442695
    %v1775 = vpow.pop %v1774
    %v1776 = vmul.f32 %v1762, 1.442695
    %v1777 = vpow.pop %v1776
    %v1778 = vmul.f32 %v1763, 1.442695
    %v1779 = vpow.pop %v1778
    %v1780 = vadd.f32 %v1765, 1.0
    %v1781 = vadd.f32 %v1767, 1.0
    %v1782 = vadd.f32 %v1769, 1.0
    %v1783 = vadd.f32 %v1771, 1.0
    %v1784 = vadd.f32 %v1773, 1.0
    %v1785 = vadd.f32 %v1775, 1.0
    %v1786 = vadd.f32 %v1777, 1.0
    %v1787 = vadd.f32 %v1779, 1.0
    %v1788 = vrcp.pop %v1780
    %v1789 = vmul.f32 1.0, %v1788
    %v1790 = vrcp.pop %v1781
    %v1791 = vmul.f32 1.0, %v1790
    %v1792 = vrcp.pop %v1782
    %v1793 = vmul.f32 1.0, %v1792
    %v1794 = vrcp.pop %v1783
    %v1795 = vmul.f32 1.0, %v1794
    %v1796 = vrcp.pop %v1784
    %v1797 = vmul.f32 1.0, %v1796
    %v1798 = vrcp.pop %v1785
    %v1799 = vmul.f32 1.0, %v1798
    %v1800 = vrcp.pop %v1786
    %v1801 = vmul.f32 1.0, %v1800
    %v1802 = vrcp.pop %v1787
    %v1803 = vmul.f32 1.0, %v1802
    %1812 = vrot.lane.b32.xlu0 %v1726, 96
    %v1813 = vpop.permute.xlu0 %1812
    %1814 = vrot.lane.b32.xlu0 %v1729, 96
    %v1815 = vpop.permute.xlu0 %1814
    %1816 = vrot.lane.b32.xlu0 %v1734, 96
    %v1817 = vpop.permute.xlu0 %1816
    %1818 = vrot.lane.b32.xlu0 %v1737, 96
    %v1819 = vpop.permute.xlu0 %1818
    %1820 = vrot.lane.b32.xlu0 %v1742, 96
    %v1821 = vpop.permute.xlu0 %1820
    %1822 = vrot.lane.b32.xlu0 %v1745, 96
    %v1823 = vpop.permute.xlu0 %1822
    %1824 = vrot.lane.b32.xlu0 %v1750, 96
    %v1825 = vpop.permute.xlu0 %1824
    %1826 = vrot.lane.b32.xlu0 %v1753, 96
    %v1827 = vpop.permute.xlu0 %1826
    %v1836 = vmul.f32 %v1789, %v1813
    %v1837 = vmul.f32 %v1791, %v1815
    %v1838 = vmul.f32 %v1793, %v1817
    %v1839 = vmul.f32 %v1795, %v1819
    %v1840 = vmul.f32 %v1797, %v1821
    %v1841 = vmul.f32 %v1799, %v1823
    %v1842 = vmul.f32 %v1801, %v1825
    %v1843 = vmul.f32 %v1803, %v1827
    %v1844 = vsel %vm145, %v1836, 0.0
    %1845 = vadd.xlane.f32.xlu0 %v1844
    %v1846 = vpop.xlane.xlu0 %1845
    %v1847 = vsel %vm145, %v1837, 0.0
    %1848 = vadd.xlane.f32.xlu0 %v1847
    %v1849 = vpop.xlane.xlu0 %1848
    %v1850 = vsel %vm145, %v1838, 0.0
    %1851 = vadd.xlane.f32.xlu0 %v1850
    %v1852 = vpop.xlane.xlu0 %1851
    %v1853 = vsel %vm145, %v1839, 0.0
    %1854 = vadd.xlane.f32.xlu0 %v1853
    %v1855 = vpop.xlane.xlu0 %1854
    %v1856 = vsel %vm145, %v1840, 0.0
    %1857 = vadd.xlane.f32.xlu0 %v1856
    %v1858 = vpop.xlane.xlu0 %1857
    %v1859 = vsel %vm145, %v1841, 0.0
    %1860 = vadd.xlane.f32.xlu0 %v1859
    %v1861 = vpop.xlane.xlu0 %1860
    %v1862 = vsel %vm145, %v1842, 0.0
    %1863 = vadd.xlane.f32.xlu0 %v1862
    %v1864 = vpop.xlane.xlu0 %1863
    %v1865 = vsel %vm145, %v1843, 0.0
    %1866 = vadd.xlane.f32.xlu0 %v1865
    %v1867 = vpop.xlane.xlu0 %1866
    %v1868 = vmul.f32 %v1846, %v1548
    %v1869 = vmul.f32 %v1849, %v1548
    %v1870 = vmul.f32 %v1852, %v1548
    %v1871 = vmul.f32 %v1855, %v1548
    %v1872 = vmul.f32 %v1858, %v1548
    %v1873 = vmul.f32 %v1861, %v1548
    %v1874 = vmul.f32 %v1864, %v1548
    %v1875 = vmul.f32 %v1867, %v1548
    %v1876 = vsub.f32 %v1836, %v1868
    %v1877 = vsub.f32 %v1837, %v1869
    %v1878 = vsub.f32 %v1838, %v1870
    %v1879 = vsub.f32 %v1839, %v1871
    %v1880 = vsub.f32 %v1840, %v1872
    %v1881 = vsub.f32 %v1841, %v1873
    %v1882 = vsub.f32 %v1842, %v1874
    %v1883 = vsub.f32 %v1843, %v1875
    %v1884 = vmul.f32 %v1876, %v1876
    %v1885 = vmul.f32 %v1877, %v1877
    %v1886 = vmul.f32 %v1878, %v1878
    %v1887 = vmul.f32 %v1879, %v1879
    %v1888 = vmul.f32 %v1880, %v1880
    %v1889 = vmul.f32 %v1881, %v1881
    %v1890 = vmul.f32 %v1882, %v1882
    %v1891 = vmul.f32 %v1883, %v1883
    %v1892 = vsel %vm145, %v1884, 0.0
    %1893 = vadd.xlane.f32.xlu0 %v1892
    %v1894 = vpop.xlane.xlu0 %1893
    %v1895 = vsel %vm145, %v1885, 0.0
    %1896 = vadd.xlane.f32.xlu0 %v1895
    %v1897 = vpop.xlane.xlu0 %1896
    %v1898 = vsel %vm145, %v1886, 0.0
    %1899 = vadd.xlane.f32.xlu0 %v1898
    %v1900 = vpop.xlane.xlu0 %1899
    %v1901 = vsel %vm145, %v1887, 0.0
    %1902 = vadd.xlane.f32.xlu0 %v1901
    %v1903 = vpop.xlane.xlu0 %1902
    %v1904 = vsel %vm145, %v1888, 0.0
    %1905 = vadd.xlane.f32.xlu0 %v1904
    %v1906 = vpop.xlane.xlu0 %1905
    %v1907 = vsel %vm145, %v1889, 0.0
    %1908 = vadd.xlane.f32.xlu0 %v1907
    %v1909 = vpop.xlane.xlu0 %1908
    %v1910 = vsel %vm145, %v1890, 0.0
    %1911 = vadd.xlane.f32.xlu0 %v1910
    %v1912 = vpop.xlane.xlu0 %1911
    %v1913 = vsel %vm145, %v1891, 0.0
    %1914 = vadd.xlane.f32.xlu0 %v1913
    %v1915 = vpop.xlane.xlu0 %1914
    %v1916 = vmul.f32 %v1894, %v1548
    %v1917 = vmul.f32 %v1897, %v1548
    %v1918 = vmul.f32 %v1900, %v1548
    %v1919 = vmul.f32 %v1903, %v1548
    %v1920 = vmul.f32 %v1906, %v1548
    %v1921 = vmul.f32 %v1909, %v1548
    %v1922 = vmul.f32 %v1912, %v1548
    %v1923 = vmul.f32 %v1915, %v1548
    %v1924 = vadd.f32 %v1916, 1e-05
    %v1925 = vadd.f32 %v1917, 1e-05
    %v1926 = vadd.f32 %v1918, 1e-05
    %v1927 = vadd.f32 %v1919, 1e-05
    %v1928 = vadd.f32 %v1920, 1e-05
    %v1929 = vadd.f32 %v1921, 1e-05
    %v1930 = vadd.f32 %v1922, 1e-05
    %v1931 = vadd.f32 %v1923, 1e-05
    %v1932 = vrsqrt.pop %v1924
    %v1933 = vrsqrt.pop %v1925
    %v1934 = vrsqrt.pop %v1926
    %v1935 = vrsqrt.pop %v1927
    %v1936 = vrsqrt.pop %v1928
    %v1937 = vrsqrt.pop %v1929
    %v1938 = vrsqrt.pop %v1930
    %v1939 = vrsqrt.pop %v1931
    %v1940 = vmul.f32 %v1876, %v1932
    %v1941 = vmul.f32 %v1877, %v1933
    %v1942 = vmul.f32 %v1878, %v1934
    %v1943 = vmul.f32 %v1879, %v1935
    %v1944 = vmul.f32 %v1880, %v1936
    %v1945 = vmul.f32 %v1881, %v1937
    %v1946 = vmul.f32 %v1882, %v1938
    %v1947 = vmul.f32 %v1883, %v1939
    %v1949 = vlaneseq
    %v1950 = vshrl.u32 %v1949, 7
    %v1951 = vsub.s32 0, %v1950
    %v1952 = vrot.slane %v81, %v1951
    %v1954 = vmul.f32 %v1940, %v1952
    %v1955 = vmul.f32 %v1941, %v1952
    %v1956 = vmul.f32 %v1942, %v1952
    %v1957 = vmul.f32 %v1943, %v1952
    %v1958 = vmul.f32 %v1944, %v1952
    %v1959 = vmul.f32 %v1945, %v1952
    %v1960 = vmul.f32 %v1946, %v1952
    %v1961 = vmul.f32 %v1947, %v1952
    %v1963 = vlaneseq
    %v1964 = vshrl.u32 %v1963, 7
    %v1965 = vsub.s32 0, %v1964
    %v1966 = vrot.slane %v82, %v1965
    %v1968 = vadd.f32 %v1954, %v1966
    %v1969 = vadd.f32 %v1955, %v1966
    %v1970 = vadd.f32 %v1956, %v1966
    %v1971 = vadd.f32 %v1957, %v1966
    %v1972 = vadd.f32 %v1958, %v1966
    %v1973 = vadd.f32 %v1959, %v1966
    %v1974 = vadd.f32 %v1960, %v1966
    %v1975 = vadd.f32 %v1961, %v1966
    %v1976 = vadd.f32 %v123, %v1968
    %v1977 = vadd.f32 %v124, %v1969
    %v1978 = vadd.f32 %v125, %v1970
    %v1979 = vadd.f32 %v126, %v1971
    %v1980 = vadd.f32 %v127, %v1972
    %v1981 = vadd.f32 %v128, %v1973
    %v1982 = vadd.f32 %v129, %v1974
    %v1983 = vadd.f32 %v130, %v1975
    %1984 = vst.msk [vmem:[#allocation9] sm:$0xff] %vm145, %v1976
    %1985 = vst.msk [vmem:[#allocation9 + $0x8] sm:$0xff] %vm145, %v1977
    %1986 = vst.msk [vmem:[#allocation9 + $0x10] sm:$0xff] %vm145, %v1978
    %1987 = vst.msk [vmem:[#allocation9 + $0x18] sm:$0xff] %vm145, %v1979
    %1988 = vst.msk [vmem:[#allocation9 + $0x20] sm:$0xff] %vm145, %v1980
    %1989 = vst.msk [vmem:[#allocation9 + $0x28] sm:$0xff] %vm145, %v1981
    %1990 = vst.msk [vmem:[#allocation9 + $0x30] sm:$0xff] %vm145, %v1982
    %1991 = vst.msk [vmem:[#allocation9 + $0x38] sm:$0xff] %vm145, %v1983
    // Predicated region
    $region54: #{tpu_custom_call.1} parent=1 // pred_check
      _
    $region55: #{tpu_custom_call.1} parent=1 // pred_check_branch
      %1993 = sbr.rel (0) target = $region57
    $region56: #{tpu_custom_call.1} parent=1 // pred_region
      %s1995 = ssub.s32 1024, 1024
      %1996 = vsyncadd [#allocation4], %s1995
      %s1997 = sshll.u32 [#allocation9], 4
      %s1998 = int_to_ptr.vmem [resolvable:$true] %s1997
      %2003 = dma.vmem_to_hbm [thread:$0]  %s1998, 1024, %s10, [#allocation4], 128, 128, 8
    $region57: #{tpu_custom_call.1} parent=1 // pred_fallthru
      _
    // Predicated region
    $region58: #{tpu_custom_call.1} parent=1 // pred_check
      _
    $region59: #{tpu_custom_call.1} parent=1 // pred_check_branch
      %2005 = sbr.rel (0) target = $region61
    $region60: #{tpu_custom_call.1} parent=1 // pred_region
      %2006 = dma.done [#allocation4], 1024
    $region61: #{tpu_custom_call.1} parent=1 // pred_fallthru
      _
    %2007 = vsyncpa [#allocation3], 1
    %2008 = vsyncpa [#allocation8], 1
    %2009 = vsyncpa [#allocation4], 1
    %2010 = vsyncpa [#allocation5], 1

</llo_original>
